<compile_context>
chip_gen: v6e
topology: v6e:2x2x1
jax: 0.10.0
libtpu: 0.0.40
codegen_flags: <defaults>
</compile_context>

<pallas_src>
import math
from functools import partial

import jax
import jax.numpy as jnp
from jax.experimental import pallas as pl
from jax.experimental.pallas import tpu as pltpu


# ---------------------------------------------------------------------------
# Kernel
# ---------------------------------------------------------------------------
def adapter_kernel(x_ref, *refs, ln_in, ln_out, add_residual,
                   residual_is_x, eps=1e-5):
    refs = list(refs)
    res_ref = refs.pop(0) if (add_residual and not residual_is_x) else None
    if ln_in or ln_out:
        ln_g_ref = refs.pop(0)
        ln_b_ref = refs.pop(0)
    else:
        ln_g_ref = ln_b_ref = None
    wd_ref, bd_ref, wu_ref, bu_ref, out_ref = refs

    def layernorm(v):                                  # f32 in, f32 out
        mu = jnp.mean(v, axis=-1, keepdims=True)
        xc = v - mu
        var = jnp.mean(xc * xc, axis=-1, keepdims=True)
        inv = jax.lax.rsqrt(var + eps)
        return xc * inv * ln_g_ref[...].astype(jnp.float32) \
               + ln_b_ref[...].astype(jnp.float32)

    # Down-projection input: bf16 MXU operand.  Only take the f32 detour when
    # the input LayerNorm actually needs it.
    if ln_in:
        h = layernorm(x_ref[...].astype(jnp.float32)).astype(jnp.bfloat16)
    else:
        h = x_ref[...].astype(jnp.bfloat16)

    # Down projection + ReLU (bf16 operands, f32 accumulation on the MXU).
    down = jnp.dot(h, wd_ref[...], preferred_element_type=jnp.float32) \
           + bd_ref[...]
    down = jnp.maximum(down, 0.0)

    # dropout: identity (inference path).

    # Up projection.  `scale` is already folded into wu/bu at prep time.
    up = jnp.dot(down.astype(jnp.bfloat16), wu_ref[...],
                 preferred_element_type=jnp.float32) + bu_ref[...]

    if ln_out:
        up = layernorm(up)

    if add_residual:
        # residual == x: re-read the already-resident VMEM block instead of
        # streaming a duplicate copy of x from HBM.
        res = x_ref[...] if residual_is_x else res_ref[...]
        up = up + res.astype(jnp.float32)

    out_ref[...] = up.astype(out_ref.dtype)


# ---------------------------------------------------------------------------
# Wrapper helpers
# ---------------------------------------------------------------------------
def _round_up(x, m):
    return ((x + m - 1) // m) * m


def _vmem_limit_bytes():
    """Generation-aware scoped-VMEM limit: min(64 MiB, physical/2).
    v5e/v6e (128 MiB physical) -> 64 MiB; v7x (64 MiB physical) -> 32 MiB."""
    try:
        cap = pltpu.get_tpu_info().vmem_capacity_bytes
        return int(min(64 * 1024 * 1024, cap // 2))
    except Exception:
        return 32 * 1024 * 1024        # conservative fallback


def _pick_tm(n_rows, d, itemsize, n_row_streams, vmem_limit, tm_cap=1024):
    """Row tile: as large as possible (multiple of 8, <= tm_cap) while the
    double-buffered row streams fit in ~55% of the scoped VMEM budget.  No
    artificial halving to manufacture extra grid steps (hurts 1-TC v5e/v6e);
    on v7x typical ViT token counts still give >= 4 steps at TM=1024."""
    if n_rows <= 8:
        return n_rows                  # block dim == full array dim is legal
    budget = int(vmem_limit * 0.55)
    per_row = 2 * n_row_streams * d * itemsize      # 2 = double-buffered
    tm_fit = max(8, (budget // max(per_row, 1)) // 8 * 8)
    return max(8, min(tm_cap, tm_fit, _round_up(n_rows, 8)))


# ---------------------------------------------------------------------------
# Wrapper
# ---------------------------------------------------------------------------
def adapter_forward(x, params, *, layernorm_option="in", add_residual=True,
                    residual=None, single_buffer_params=True):
    """x: (B, S, D). `params` must come from prepare_adapter_params()
    (scale is folded into the up-projection weights there)."""
    B, S, D = x.shape
    N = B * S
    x2 = x.reshape(N, D)

    ln_in = layernorm_option == "in"
    ln_out = layernorm_option == "out"
    residual_is_x = residual is None
    need_res_stream = add_residual and not residual_is_x
    res2 = residual.reshape(N, D) if need_res_stream else None

    down_p = params["wd"].shape[1]          # lane-padded bottleneck dim

    vmem_limit = _vmem_limit_bytes()
    n_row_streams = 2 + (1 if need_res_stream else 0)   # x + out (+ residual)
    TM = _pick_tm(N, D, x2.dtype.itemsize, n_row_streams, vmem_limit)
    grid = (pl.cdiv(N, TM),)                # ragged last tile handled by Pallas

    kern = partial(adapter_kernel, ln_in=ln_in, ln_out=ln_out,
                   add_residual=add_residual, residual_is_x=residual_is_x)

    inputs = [x2]
    if need_res_stream:
        inputs.append(res2)
    if ln_in or ln_out:
        inputs += [params["ln_g"], params["ln_b"]]
    inputs += [params["wd"], params["bd"], params["wu"], params["bu"]]

    def run(single_buffer):
        # Row streams (x / residual / out): default double-buffering.
        # NOTE: sweep pipeline_mode=pl.Buffered(3) here on v7x if a bundle
        # dump shows exposed DMA waits at step start.
        row_spec = pl.BlockSpec((TM, D), lambda i: (i, 0))
        if single_buffer:
            # Grid-invariant params: single buffer (constant index_map means no
            # re-DMA anyway; this reclaims the duplicate VMEM copy).
            full = lambda shape: pl.BlockSpec(shape, lambda i: (0, 0),
                                              pipeline_mode=pl.Buffered(1))
        else:
            full = lambda shape: pl.BlockSpec(shape, lambda i: (0, 0))

        in_specs = [row_spec]
        if need_res_stream:
            in_specs.append(row_spec)
        if ln_in or ln_out:
            in_specs += [full((1, D)), full((1, D))]
        in_specs += [
            full((D, down_p)),       # W_down (pre-transposed, bf16, lane-padded)
            full((1, down_p)),       # b_down (lane-padded)
            full((down_p, D)),       # W_up   (pre-transposed, bf16, scale folded)
            full((1, D)),            # b_up   (scale folded)
        ]

        return pl.pallas_call(
            kern,
            out_shape=jax.ShapeDtypeStruct((N, D), x.dtype),
            grid_spec=pltpu.PrefetchScalarGridSpec(
                num_scalar_prefetch=0,
                grid=grid,
                in_specs=in_specs,
                out_specs=row_spec,
            ),
            compiler_params=pltpu.CompilerParams(
                dimension_semantics=("parallel",),
                vmem_limit_bytes=vmem_limit,
            ),
        )(*inputs)

    if single_buffer_params:
        try:
            out2 = run(True)
        except Exception:
            # pipeline_mode=Buffered(1) not supported on this jax build;
            # fall back to default double-buffered params.
            out2 = run(False)
    else:
        out2 = run(False)

    return out2.reshape(B, S, D)


# ---------------------------------------------------------------------------
# Parameters
# ---------------------------------------------------------------------------
def init_adapter_params(key, d_model, down_size):
    # torch Linear weight is (out, in); stored pre-transposed (in, out).
    # kaiming_uniform_(a=sqrt(5)) on (down_size, d_model): bound = 1/sqrt(D).
    bound = 1.0 / math.sqrt(d_model)
    wd_t = jax.random.uniform(key, (down_size, d_model), jnp.float32,
                              minval=-bound, maxval=bound)
    return {
        "wd": wd_t.T,                                        # (D, down)
        "bd": jnp.zeros((down_size,), jnp.float32),
        "wu": jnp.zeros((down_size, d_model), jnp.float32),  # (down, D), zeros
        "bu": jnp.zeros((d_model,), jnp.float32),
        "ln_g": jnp.ones((d_model,), jnp.float32),
        "ln_b": jnp.zeros((d_model,), jnp.float32),
    }


def prepare_adapter_params(params, *, scale=1.0, lane=128):
    """Zero-pad the bottleneck dim to a full 128-lane multiple, cast the matmul
    weights to bf16 (MXU operands) and fold `scale` into the up-projection:
    scale*(h@Wu + bu) == h@(scale*Wu) + scale*bu (exact up to bf16 rounding)."""
    D, down = params["wd"].shape
    down_p = _round_up(down, lane)
    pad = down_p - down
    return {
        "wd": jnp.pad(params["wd"], ((0, 0), (0, pad))).astype(jnp.bfloat16),
        "bd": jnp.pad(params["bd"], ((0, pad),)).reshape(1, down_p)
                 .astype(jnp.float32),
        "wu": (scale * jnp.pad(params["wu"], ((0, pad), (0, 0))))
                 .astype(jnp.bfloat16),
        "bu": (scale * params["bu"]).reshape(1, D).astype(jnp.float32),
        "ln_g": params["ln_g"].reshape(1, D).astype(jnp.float32),
        "ln_b": params["ln_b"].reshape(1, D).astype(jnp.float32),
    }


# ---------------------------------------------------------------------------
# Pure-JAX reference (mirrors the kernel's bf16 MXU operand precision)
# ---------------------------------------------------------------------------
def adapter_reference(x, raw, *, scale, layernorm_option="in",
                      add_residual=True, residual=None, eps=1e-5):
    residual = x if residual is None else residual
    xf = x.astype(jnp.float32)

    def ln(v):
        mu = jnp.mean(v, axis=-1, keepdims=True)
        var = jnp.mean((v - mu) ** 2, axis=-1, keepdims=True)
        return (v - mu) * jax.lax.rsqrt(var + eps) * raw["ln_g"] + raw["ln_b"]

    h = ln(xf) if layernorm_option == "in" else xf
    down = jnp.dot(h.astype(jnp.bfloat16), raw["wd"].astype(jnp.bfloat16),
                   preferred_element_type=jnp.float32) + raw["bd"]
    down = jnp.maximum(down, 0.0)
    up = jnp.dot(down.astype(jnp.bfloat16), raw["wu"].astype(jnp.bfloat16),
                 preferred_element_type=jnp.float32) + raw["bu"]
    up = up * scale
    if layernorm_option == "out":
        up = ln(up)
    return up + residual.astype(jnp.float32) if add_residual else up


# ---------------------------------------------------------------------------
if __name__ == "__main__":
    # ViT-like token count (CLS + 14x14 patches).  d_model=128 keeps the demo
    # small while being lane-dense (unmasked output stores), and the odd token
    # count exercises the ragged-tile path.
    B, S, D, DOWN = 2, 197, 128, 16
    SCALE = 0.5

    key = jax.random.PRNGKey(0)
    kx, kw, kwu, kr = jax.random.split(key, 4)

    x = jax.random.normal(kx, (B, S, D), jnp.float32)
    raw = init_adapter_params(kw, D, DOWN)
    # up_proj weights are zero by module init -> output would equal residual.
    # Overwrite with small random values so the full compute path is exercised.
    raw["wu"] = 0.02 * jax.random.normal(kwu, (DOWN, D), jnp.float32)
    params = prepare_adapter_params(raw, scale=SCALE)

    # 1) f32, residual is None (residual == x, no extra HBM stream).
    out = adapter_forward(x, params, layernorm_option="in", add_residual=True)
    out = jax.block_until_ready(out)
    ref = adapter_reference(x, raw, scale=SCALE, layernorm_option="in",
                            add_residual=True)
    assert out.shape == (B, S, D)
    assert jnp.allclose(out, ref, atol=2e-3, rtol=2e-3), "mismatch (residual=x)"

    # 2) f32, explicit residual tensor (separate residual stream path).
    res = jax.random.normal(kr, (B, S, D), jnp.float32)
    out2 = adapter_forward(x, params, layernorm_option="in",
                           add_residual=True, residual=res)
    out2 = jax.block_until_ready(out2)
    ref2 = adapter_reference(x, raw, scale=SCALE, layernorm_option="in",
                             add_residual=True, residual=res)
    assert jnp.allclose(out2, ref2, atol=2e-3, rtol=2e-3), \
        "mismatch (explicit residual)"

    # 3) bf16 activation I/O (halves HBM bytes on the mem-bound path).
    x_bf = x.astype(jnp.bfloat16)
    out3 = adapter_forward(x_bf, params, layernorm_option="in",
                           add_residual=True)
    out3 = jax.block_until_ready(out3)
    ref3 = adapter_reference(x_bf, raw, scale=SCALE, layernorm_option="in",
                             add_residual=True)
    assert out3.dtype == jnp.bfloat16
    assert jnp.allclose(out3.astype(jnp.float32), ref3, atol=2e-2, rtol=2e-2), \
        "mismatch (bf16 activations)"

    print("KERNEL_OK")
</pallas_src>

<mosaic_0001>
module attributes {stable_mosaic.version = 11 : i64} {
  func.func @adapter_kernel(%arg0: i32, %arg1: memref<400x128xf32, #tpu.memory_space<vmem>>, %arg2: memref<1x128xf32, #tpu.memory_space<vmem>>, %arg3: memref<1x128xf32, #tpu.memory_space<vmem>>, %arg4: memref<128x128xbf16, #tpu.memory_space<vmem>>, %arg5: memref<1x128xf32, #tpu.memory_space<vmem>>, %arg6: memref<128x128xbf16, #tpu.memory_space<vmem>>, %arg7: memref<1x128xf32, #tpu.memory_space<vmem>>, %arg8: memref<400x128xf32, #tpu.memory_space<vmem>>) attributes {dimension_semantics = [#tpu.dimension_semantics<parallel>], iteration_bounds = array<i64: 1>, scalar_prefetch = 0 : i64, scratch_operands = 0 : i64, tpu.core_type = #tpu.core_type<tc>, window_params = [{transform_indices = @transform_0, window_bounds = array<i64: 400, 128>}, {pipeline_mode = #tpu.pipeline_mode<synchronous>, transform_indices = @transform_1, window_bounds = array<i64: 1, 128>}, {pipeline_mode = #tpu.pipeline_mode<synchronous>, transform_indices = @transform_2, window_bounds = array<i64: 1, 128>}, {pipeline_mode = #tpu.pipeline_mode<synchronous>, transform_indices = @transform_3, window_bounds = array<i64: 128, 128>}, {pipeline_mode = #tpu.pipeline_mode<synchronous>, transform_indices = @transform_4, window_bounds = array<i64: 1, 128>}, {pipeline_mode = #tpu.pipeline_mode<synchronous>, transform_indices = @transform_5, window_bounds = array<i64: 128, 128>}, {pipeline_mode = #tpu.pipeline_mode<synchronous>, transform_indices = @transform_6, window_bounds = array<i64: 1, 128>}, {transform_indices = @transform_7, window_bounds = array<i64: 400, 128>}]} {
    %c0 = arith.constant 0 : index
    %c0_0 = arith.constant 0 : index
    %0 = vector.load %arg1[%c0, %c0_0] : memref<400x128xf32, #tpu.memory_space<vmem>>, vector<400x128xf32>
    %cst = arith.constant dense<0.000000e+00> : vector<400xf32>
    %1 = vector.multi_reduction <add>, %0, %cst [1] : vector<400x128xf32> to vector<400xf32>
    %2 = vector.shape_cast %1 : vector<400xf32> to vector<400x1xf32>
    %cst_1 = arith.constant 1.280000e+02 : f32
    %3 = vector.broadcast %cst_1 : f32 to vector<400x1xf32>
    %4 = arith.divf %2, %3 : vector<400x1xf32>
    %5 = vector.broadcast %4 : vector<400x1xf32> to vector<400x128xf32>
    %6 = arith.subf %0, %5 : vector<400x128xf32>
    %7 = arith.mulf %6, %6 : vector<400x128xf32>
    %cst_2 = arith.constant dense<0.000000e+00> : vector<400xf32>
    %8 = vector.multi_reduction <add>, %7, %cst_2 [1] : vector<400x128xf32> to vector<400xf32>
    %9 = vector.shape_cast %8 : vector<400xf32> to vector<400x1xf32>
    %cst_3 = arith.constant 1.280000e+02 : f32
    %10 = vector.broadcast %cst_3 : f32 to vector<400x1xf32>
    %11 = arith.divf %9, %10 : vector<400x1xf32>
    %cst_4 = arith.constant 9.99999974E-6 : f32
    %12 = vector.broadcast %cst_4 : f32 to vector<400x1xf32>
    %13 = arith.addf %11, %12 : vector<400x1xf32>
    %14 = math.rsqrt %13 : vector<400x1xf32>
    %15 = vector.broadcast %14 : vector<400x1xf32> to vector<400x128xf32>
    %16 = arith.mulf %6, %15 : vector<400x128xf32>
    %c0_5 = arith.constant 0 : index
    %c0_6 = arith.constant 0 : index
    %17 = vector.load %arg2[%c0_5, %c0_6] : memref<1x128xf32, #tpu.memory_space<vmem>>, vector<1x128xf32>
    %18 = vector.broadcast %17 : vector<1x128xf32> to vector<400x128xf32>
    %19 = arith.mulf %16, %18 : vector<400x128xf32>
    %c0_7 = arith.constant 0 : index
    %c0_8 = arith.constant 0 : index
    %20 = vector.load %arg3[%c0_7, %c0_8] : memref<1x128xf32, #tpu.memory_space<vmem>>, vector<1x128xf32>
    %21 = vector.broadcast %20 : vector<1x128xf32> to vector<400x128xf32>
    %22 = arith.addf %19, %21 : vector<400x128xf32>
    %23 = arith.truncf %22 : vector<400x128xf32> to vector<400x128xbf16>
    %c0_9 = arith.constant 0 : index
    %c0_10 = arith.constant 0 : index
    %24 = vector.load %arg4[%c0_9, %c0_10] : memref<128x128xbf16, #tpu.memory_space<vmem>>, vector<128x128xbf16>
    %cst_11 = arith.constant dense<0.000000e+00> : vector<400x128xf32>
    %25 = tpu.matmul %23, %24, %cst_11 {dimension_numbers = #tpu.dot_dimension_numbers<[1], [0], [0], [1], [0, 0, 1, 1], [], []>} : vector<400x128xbf16>, vector<128x128xbf16>, vector<400x128xf32> -> vector<400x128xf32>
    %c0_12 = arith.constant 0 : index
    %c0_13 = arith.constant 0 : index
    %26 = vector.load %arg5[%c0_12, %c0_13] : memref<1x128xf32, #tpu.memory_space<vmem>>, vector<1x128xf32>
    %27 = vector.broadcast %26 : vector<1x128xf32> to vector<400x128xf32>
    %28 = arith.addf %25, %27 : vector<400x128xf32>
    %cst_14 = arith.constant 0.000000e+00 : f32
    %29 = vector.broadcast %cst_14 : f32 to vector<400x128xf32>
    %30 = arith.maximumf %28, %29 : vector<400x128xf32>
    %31 = arith.truncf %30 : vector<400x128xf32> to vector<400x128xbf16>
    %c0_15 = arith.constant 0 : index
    %c0_16 = arith.constant 0 : index
    %32 = vector.load %arg6[%c0_15, %c0_16] : memref<128x128xbf16, #tpu.memory_space<vmem>>, vector<128x128xbf16>
    %cst_17 = arith.constant dense<0.000000e+00> : vector<400x128xf32>
    %33 = tpu.matmul %31, %32, %cst_17 {dimension_numbers = #tpu.dot_dimension_numbers<[1], [0], [0], [1], [0, 0, 1, 1], [], []>} : vector<400x128xbf16>, vector<128x128xbf16>, vector<400x128xf32> -> vector<400x128xf32>
    %c0_18 = arith.constant 0 : index
    %c0_19 = arith.constant 0 : index
    %34 = vector.load %arg7[%c0_18, %c0_19] : memref<1x128xf32, #tpu.memory_space<vmem>>, vector<1x128xf32>
    %35 = vector.broadcast %34 : vector<1x128xf32> to vector<400x128xf32>
    %36 = arith.addf %33, %35 : vector<400x128xf32>
    %c0_20 = arith.constant 0 : index
    %c0_21 = arith.constant 0 : index
    %37 = vector.load %arg1[%c0_20, %c0_21] : memref<400x128xf32, #tpu.memory_space<vmem>>, vector<400x128xf32>
    %38 = arith.addf %36, %37 : vector<400x128xf32>
    %c0_22 = arith.constant 0 : index
    %c0_23 = arith.constant 0 : index
    %39 = vector.load %arg8[%c0_22, %c0_23] : memref<400x128xf32, #tpu.memory_space<vmem>>, vector<400x128xf32>
    tpu.vector_store %arg8[%c0_22, %c0_23], %38 {strides = array<i32>} : memref<400x128xf32, #tpu.memory_space<vmem>>, vector<400x128xf32>,
    return
  }
  func.func @transform_0(%arg0: i32) -> (i32, i32) {
    %c0_i32 = arith.constant 0 : i32
    %c0_i32_0 = arith.constant 0 : i32
    return %arg0, %c0_i32 : i32, i32
  }
  func.func @transform_1(%arg0: i32) -> (i32, i32) {
    %c0_i32 = arith.constant 0 : i32
    %c0_i32_0 = arith.constant 0 : i32
    %c0_i32_1 = arith.constant 0 : i32
    return %c0_i32, %c0_i32_0 : i32, i32
  }
  func.func @transform_2(%arg0: i32) -> (i32, i32) {
    %c0_i32 = arith.constant 0 : i32
    %c0_i32_0 = arith.constant 0 : i32
    %c0_i32_1 = arith.constant 0 : i32
    return %c0_i32, %c0_i32_0 : i32, i32
  }
  func.func @transform_3(%arg0: i32) -> (i32, i32) {
    %c0_i32 = arith.constant 0 : i32
    %c0_i32_0 = arith.constant 0 : i32
    %c0_i32_1 = arith.constant 0 : i32
    return %c0_i32, %c0_i32_0 : i32, i32
  }
  func.func @transform_4(%arg0: i32) -> (i32, i32) {
    %c0_i32 = arith.constant 0 : i32
    %c0_i32_0 = arith.constant 0 : i32
    %c0_i32_1 = arith.constant 0 : i32
    return %c0_i32, %c0_i32_0 : i32, i32
  }
  func.func @transform_5(%arg0: i32) -> (i32, i32) {
    %c0_i32 = arith.constant 0 : i32
    %c0_i32_0 = arith.constant 0 : i32
    %c0_i32_1 = arith.constant 0 : i32
    return %c0_i32, %c0_i32_0 : i32, i32
  }
  func.func @transform_6(%arg0: i32) -> (i32, i32) {
    %c0_i32 = arith.constant 0 : i32
    %c0_i32_0 = arith.constant 0 : i32
    %c0_i32_1 = arith.constant 0 : i32
    return %c0_i32, %c0_i32_0 : i32, i32
  }
  func.func @transform_7(%arg0: i32) -> (i32, i32) {
    %c0_i32 = arith.constant 0 : i32
    %c0_i32_0 = arith.constant 0 : i32
    return %arg0, %c0_i32 : i32, i32
  }
}

module attributes {stable_mosaic.version = 11 : i64} {
  func.func @adapter_kernel(%arg0: i32, %arg1: memref<400x128xf32, #tpu.memory_space<vmem>>, %arg2: memref<1x128xf32, #tpu.memory_space<vmem>>, %arg3: memref<1x128xf32, #tpu.memory_space<vmem>>, %arg4: memref<128x128xbf16, #tpu.memory_space<vmem>>, %arg5: memref<1x128xf32, #tpu.memory_space<vmem>>, %arg6: memref<128x128xbf16, #tpu.memory_space<vmem>>, %arg7: memref<1x128xf32, #tpu.memory_space<vmem>>, %arg8: memref<400x128xf32, #tpu.memory_space<vmem>>) attributes {dimension_semantics = [#tpu.dimension_semantics<parallel>], iteration_bounds = array<i64: 1>, scalar_prefetch = 0 : i64, scratch_operands = 0 : i64, tpu.core_type = #tpu.core_type<tc>, window_params = [{transform_indices = @transform_0, window_bounds = array<i64: 400, 128>}, {pipeline_mode = #tpu.pipeline_mode<synchronous>, transform_indices = @transform_1, window_bounds = array<i64: 1, 128>}, {pipeline_mode = #tpu.pipeline_mode<synchronous>, transform_indices = @transform_2, window_bounds = array<i64: 1, 128>}, {pipeline_mode = #tpu.pipeline_mode<synchronous>, transform_indices = @transform_3, window_bounds = array<i64: 128, 128>}, {pipeline_mode = #tpu.pipeline_mode<synchronous>, transform_indices = @transform_4, window_bounds = array<i64: 1, 128>}, {pipeline_mode = #tpu.pipeline_mode<synchronous>, transform_indices = @transform_5, window_bounds = array<i64: 128, 128>}, {pipeline_mode = #tpu.pipeline_mode<synchronous>, transform_indices = @transform_6, window_bounds = array<i64: 1, 128>}, {transform_indices = @transform_7, window_bounds = array<i64: 400, 128>}]} {
    %c0 = arith.constant 0 : index
    %c0_0 = arith.constant 0 : index
    %0 = vector.load %arg1[%c0, %c0_0] : memref<400x128xf32, #tpu.memory_space<vmem>>, vector<400x128xf32>
    %cst = arith.constant dense<0.000000e+00> : vector<400xf32>
    %1 = vector.multi_reduction <add>, %0, %cst [1] : vector<400x128xf32> to vector<400xf32>
    %2 = vector.shape_cast %1 : vector<400xf32> to vector<400x1xf32>
    %cst_1 = arith.constant 1.280000e+02 : f32
    %3 = vector.broadcast %cst_1 : f32 to vector<400x1xf32>
    %4 = arith.divf %2, %3 : vector<400x1xf32>
    %5 = vector.broadcast %4 : vector<400x1xf32> to vector<400x128xf32>
    %6 = arith.subf %0, %5 : vector<400x128xf32>
    %7 = arith.mulf %6, %6 : vector<400x128xf32>
    %cst_2 = arith.constant dense<0.000000e+00> : vector<400xf32>
    %8 = vector.multi_reduction <add>, %7, %cst_2 [1] : vector<400x128xf32> to vector<400xf32>
    %9 = vector.shape_cast %8 : vector<400xf32> to vector<400x1xf32>
    %cst_3 = arith.constant 1.280000e+02 : f32
    %10 = vector.broadcast %cst_3 : f32 to vector<400x1xf32>
    %11 = arith.divf %9, %10 : vector<400x1xf32>
    %cst_4 = arith.constant 9.99999974E-6 : f32
    %12 = vector.broadcast %cst_4 : f32 to vector<400x1xf32>
    %13 = arith.addf %11, %12 : vector<400x1xf32>
    %14 = math.rsqrt %13 : vector<400x1xf32>
    %15 = vector.broadcast %14 : vector<400x1xf32> to vector<400x128xf32>
    %16 = arith.mulf %6, %15 : vector<400x128xf32>
    %c0_5 = arith.constant 0 : index
    %c0_6 = arith.constant 0 : index
    %17 = vector.load %arg2[%c0_5, %c0_6] : memref<1x128xf32, #tpu.memory_space<vmem>>, vector<1x128xf32>
    %18 = vector.broadcast %17 : vector<1x128xf32> to vector<400x128xf32>
    %19 = arith.mulf %16, %18 : vector<400x128xf32>
    %c0_7 = arith.constant 0 : index
    %c0_8 = arith.constant 0 : index
    %20 = vector.load %arg3[%c0_7, %c0_8] : memref<1x128xf32, #tpu.memory_space<vmem>>, vector<1x128xf32>
    %21 = vector.broadcast %20 : vector<1x128xf32> to vector<400x128xf32>
    %22 = arith.addf %19, %21 : vector<400x128xf32>
    %23 = arith.truncf %22 : vector<400x128xf32> to vector<400x128xbf16>
    %c0_9 = arith.constant 0 : index
    %c0_10 = arith.constant 0 : index
    %24 = vector.load %arg4[%c0_9, %c0_10] : memref<128x128xbf16, #tpu.memory_space<vmem>>, vector<128x128xbf16>
    %cst_11 = arith.constant dense<0.000000e+00> : vector<400x128xf32>
    %25 = tpu.matmul %23, %24, %cst_11 {dimension_numbers = #tpu.dot_dimension_numbers<[1], [0], [0], [1], [0, 0, 1, 1], [], []>} : vector<400x128xbf16>, vector<128x128xbf16>, vector<400x128xf32> -> vector<400x128xf32>
    %c0_12 = arith.constant 0 : index
    %c0_13 = arith.constant 0 : index
    %26 = vector.load %arg5[%c0_12, %c0_13] : memref<1x128xf32, #tpu.memory_space<vmem>>, vector<1x128xf32>
    %27 = vector.broadcast %26 : vector<1x128xf32> to vector<400x128xf32>
    %28 = arith.addf %25, %27 : vector<400x128xf32>
    %cst_14 = arith.constant 0.000000e+00 : f32
    %29 = vector.broadcast %cst_14 : f32 to vector<400x128xf32>
    %30 = arith.maximumf %28, %29 : vector<400x128xf32>
    %31 = arith.truncf %30 : vector<400x128xf32> to vector<400x128xbf16>
    %c0_15 = arith.constant 0 : index
    %c0_16 = arith.constant 0 : index
    %32 = vector.load %arg6[%c0_15, %c0_16] : memref<128x128xbf16, #tpu.memory_space<vmem>>, vector<128x128xbf16>
    %cst_17 = arith.constant dense<0.000000e+00> : vector<400x128xf32>
    %33 = tpu.matmul %31, %32, %cst_17 {dimension_numbers = #tpu.dot_dimension_numbers<[1], [0], [0], [1], [0, 0, 1, 1], [], []>} : vector<400x128xbf16>, vector<128x128xbf16>, vector<400x128xf32> -> vector<400x128xf32>
    %c0_18 = arith.constant 0 : index
    %c0_19 = arith.constant 0 : index
    %34 = vector.load %arg7[%c0_18, %c0_19] : memref<1x128xf32, #tpu.memory_space<vmem>>, vector<1x128xf32>
    %35 = vector.broadcast %34 : vector<1x128xf32> to vector<400x128xf32>
    %36 = arith.addf %33, %35 : vector<400x128xf32>
    %c0_20 = arith.constant 0 : index
    %c0_21 = arith.constant 0 : index
    %37 = vector.load %arg1[%c0_20, %c0_21] : memref<400x128xf32, #tpu.memory_space<vmem>>, vector<400x128xf32>
    %38 = arith.addf %36, %37 : vector<400x128xf32>
    %c0_22 = arith.constant 0 : index
    %c0_23 = arith.constant 0 : index
    %39 = vector.load %arg8[%c0_22, %c0_23] : memref<400x128xf32, #tpu.memory_space<vmem>>, vector<400x128xf32>
    tpu.vector_store %arg8[%c0_22, %c0_23], %38 {strides = array<i32>} : memref<400x128xf32, #tpu.memory_space<vmem>>, vector<400x128xf32>,
    return
  }
  func.func @transform_0(%arg0: i32) -> (i32, i32) {
    %c0_i32 = arith.constant 0 : i32
    %c0_i32_0 = arith.constant 0 : i32
    return %arg0, %c0_i32 : i32, i32
  }
  func.func @transform_1(%arg0: i32) -> (i32, i32) {
    %c0_i32 = arith.constant 0 : i32
    %c0_i32_0 = arith.constant 0 : i32
    %c0_i32_1 = arith.constant 0 : i32
    return %c0_i32, %c0_i32_0 : i32, i32
  }
  func.func @transform_2(%arg0: i32) -> (i32, i32) {
    %c0_i32 = arith.constant 0 : i32
    %c0_i32_0 = arith.constant 0 : i32
    %c0_i32_1 = arith.constant 0 : i32
    return %c0_i32, %c0_i32_0 : i32, i32
  }
  func.func @transform_3(%arg0: i32) -> (i32, i32) {
    %c0_i32 = arith.constant 0 : i32
    %c0_i32_0 = arith.constant 0 : i32
    %c0_i32_1 = arith.constant 0 : i32
    return %c0_i32, %c0_i32_0 : i32, i32
  }
  func.func @transform_4(%arg0: i32) -> (i32, i32) {
    %c0_i32 = arith.constant 0 : i32
    %c0_i32_0 = arith.constant 0 : i32
    %c0_i32_1 = arith.constant 0 : i32
    return %c0_i32, %c0_i32_0 : i32, i32
  }
  func.func @transform_5(%arg0: i32) -> (i32, i32) {
    %c0_i32 = arith.constant 0 : i32
    %c0_i32_0 = arith.constant 0 : i32
    %c0_i32_1 = arith.constant 0 : i32
    return %c0_i32, %c0_i32_0 : i32, i32
  }
  func.func @transform_6(%arg0: i32) -> (i32, i32) {
    %c0_i32 = arith.constant 0 : i32
    %c0_i32_0 = arith.constant 0 : i32
    %c0_i32_1 = arith.constant 0 : i32
    return %c0_i32, %c0_i32_0 : i32, i32
  }
  func.func @transform_7(%arg0: i32) -> (i32, i32) {
    %c0_i32 = arith.constant 0 : i32
    %c0_i32_0 = arith.constant 0 : i32
    return %arg0, %c0_i32 : i32, i32
  }
}

</mosaic_0001>

<llo_original>
// kernel: tpu_custom_call.1
$region0: #{tpu_custom_call.1}
  #allocation0 [shape = 'u32[]', space=smem, size = 0x4, offset = 0x4, fixed_abs, tag = 'smem constant byte address 0x4 - core index']
  #allocation1 [shape = 'u32[144,128]{1,0:T(1,128)}', space=vmem, size = 0x12000, scoped, tag = 'internal scratch']
  %s0 = inlined_call_operand.hbm [shape: f32[394,128], index: 0, kind: input, shape index: {}]
  %s1 = inlined_call_operand.vmem [shape: f32[1,128], index: 1, kind: input, shape index: {}]
  %s2 = inlined_call_operand.vmem [shape: f32[1,128], index: 2, kind: input, shape index: {}]
  %s3 = inlined_call_operand.hbm [shape: bf16[128,128], index: 3, kind: input, shape index: {}]
  %s4 = inlined_call_operand.vmem [shape: f32[1,128], index: 4, kind: input, shape index: {}]
  %s5 = inlined_call_operand.hbm [shape: bf16[128,128], index: 5, kind: input, shape index: {}]
  %s6 = inlined_call_operand.vmem [shape: f32[1,128], index: 6, kind: input, shape index: {}]
  %s7 = inlined_call_operand.hbm [shape: f32[394,128], index: 7, kind: output, shape index: {}]
  %s8 = sld [smem:[#allocation0]]
  $region50: #{tpu_custom_call.1} parent=0
    _
  %s10 = ssub.s32 1, %s8
  %s11 = scalar_select 0, %s10, %s8
  $region1: #{tpu_custom_call.1} parent=0
    #allocation2 [shape = 'u8[204800]{0}', space=vmem, size = 0x32000, scoped, tag = 'input window, operand 0, single buffered']
    #allocation3 [shape = 's32[1]{0}', space=sflag, size = 0x4, scoped, tag = 'scoped memory for tpu_custom_call.1']
    #allocation4 [shape = 's32[1]{0}', space=sflag, size = 0x4, scoped, tag = 'scoped memory for tpu_custom_call.1']
    #allocation5 [shape = 'u8[32768]{0}', space=vmem, size = 0x8000, scoped, tag = 'input window, operand 3, single buffered']
    #allocation6 [shape = 's32[1]{0}', space=sflag, size = 0x4, scoped, tag = 'scoped memory for tpu_custom_call.1']
    #allocation7 [shape = 'u8[32768]{0}', space=vmem, size = 0x8000, scoped, tag = 'input window, operand 5, single buffered']
    #allocation8 [shape = 'u8[204800]{0}', space=vmem, size = 0x32000, scoped, tag = 'output window, operand 0, single buffered']
    %12 = vsyncpa [#allocation3], 0
    %13 = vsyncpa [#allocation6], 0
    %14 = vsyncpa [#allocation4], 0
    // Predicated region
    $region2: #{tpu_custom_call.1} parent=1 // pred_check
      _
    $region3: #{tpu_custom_call.1} parent=1 // pred_check_branch
      %16 = sbr.rel (0) target = $region5
    $region4: #{tpu_custom_call.1} parent=1 // pred_region
      %s18 = ssub.s32 6400, 6400
      %19 = vsyncadd [#allocation3], %s18
      %s20 = sshll.u32 [#allocation2], 4
      %s21 = int_to_ptr.vmem [resolvable:$true] %s20
      %26 = dma.hbm_to_vmem [thread:$0]  %s0, 6400, %s21, [#allocation3], 128, 128, 8
    $region5: #{tpu_custom_call.1} parent=1 // pred_fallthru
      _
    // Predicated region
    $region6: #{tpu_custom_call.1} parent=1 // pred_check
      _
    $region7: #{tpu_custom_call.1} parent=1 // pred_check_branch
      %28 = sbr.rel (0) target = $region9
    $region8: #{tpu_custom_call.1} parent=1 // pred_region
      _
    $region9: #{tpu_custom_call.1} parent=1 // pred_fallthru
      _
    // Predicated region
    $region10: #{tpu_custom_call.1} parent=1 // pred_check
      _
    $region11: #{tpu_custom_call.1} parent=1 // pred_check_branch
      %30 = sbr.rel (0) target = $region13
    $region12: #{tpu_custom_call.1} parent=1 // pred_region
      _
    $region13: #{tpu_custom_call.1} parent=1 // pred_fallthru
      _
    // Predicated region
    $region14: #{tpu_custom_call.1} parent=1 // pred_check
      _
    $region15: #{tpu_custom_call.1} parent=1 // pred_check_branch
      %32 = sbr.rel (0) target = $region17
    $region16: #{tpu_custom_call.1} parent=1 // pred_region
      %s34 = ssub.s32 1024, 1024
      %35 = vsyncadd [#allocation6], %s34
      %s36 = sshll.u32 [#allocation5], 4
      %s37 = int_to_ptr.vmem [resolvable:$true] %s36
      %42 = dma.hbm_to_vmem [thread:$0]  %s3, 1024, %s37, [#allocation6], 64, 64, 4
    $region17: #{tpu_custom_call.1} parent=1 // pred_fallthru
      _
    // Predicated region
    $region18: #{tpu_custom_call.1} parent=1 // pred_check
      _
    $region19: #{tpu_custom_call.1} parent=1 // pred_check_branch
      %44 = sbr.rel (0) target = $region21
    $region20: #{tpu_custom_call.1} parent=1 // pred_region
      _
    $region21: #{tpu_custom_call.1} parent=1 // pred_fallthru
      _
    // Predicated region
    $region22: #{tpu_custom_call.1} parent=1 // pred_check
      _
    $region23: #{tpu_custom_call.1} parent=1 // pred_check_branch
      %46 = sbr.rel (0) target = $region25
    $region24: #{tpu_custom_call.1} parent=1 // pred_region
      %s48 = ssub.s32 1024, 1024
      %49 = vsyncadd [#allocation6], %s48
      %s50 = sshll.u32 [#allocation7], 4
      %s51 = int_to_ptr.vmem [resolvable:$true] %s50
      %56 = dma.hbm_to_vmem [thread:$0]  %s5, 1024, %s51, [#allocation6], 64, 64, 4
    $region25: #{tpu_custom_call.1} parent=1 // pred_fallthru
      _
    // Predicated region
    $region26: #{tpu_custom_call.1} parent=1 // pred_check
      _
    $region27: #{tpu_custom_call.1} parent=1 // pred_check_branch
      %58 = sbr.rel (0) target = $region29
    $region28: #{tpu_custom_call.1} parent=1 // pred_region
      _
    $region29: #{tpu_custom_call.1} parent=1 // pred_fallthru
      _
    // Predicated region
    $region30: #{tpu_custom_call.1} parent=1 // pred_check
      _
    $region31: #{tpu_custom_call.1} parent=1 // pred_check_branch
      %60 = sbr.rel (0) target = $region33
    $region32: #{tpu_custom_call.1} parent=1 // pred_region
      %61 = dma.done [#allocation3], 6400
    $region33: #{tpu_custom_call.1} parent=1 // pred_fallthru
      _
    // Predicated region
    $region34: #{tpu_custom_call.1} parent=1 // pred_check
      _
    $region35: #{tpu_custom_call.1} parent=1 // pred_check_branch
      %63 = sbr.rel (0) target = $region37
    $region36: #{tpu_custom_call.1} parent=1 // pred_region
      %64 = dma.done [#allocation6], 1024
    $region37: #{tpu_custom_call.1} parent=1 // pred_fallthru
      _
    // Predicated region
    $region38: #{tpu_custom_call.1} parent=1 // pred_check
      _
    $region39: #{tpu_custom_call.1} parent=1 // pred_check_branch
      %66 = sbr.rel (0) target = $region41
    $region40: #{tpu_custom_call.1} parent=1 // pred_region
      %67 = dma.done [#allocation6], 1024
    $region41: #{tpu_custom_call.1} parent=1 // pred_fallthru
      _
    %v69 = vld [vmem:[#allocation2] sm:$0xff]
    %v70 = vld [vmem:[#allocation2 + $0x8] sm:$0xff]
    %v71 = vld [vmem:[#allocation2 + $0x10] sm:$0xff]
    %v72 = vld [vmem:[#allocation2 + $0x18] sm:$0xff]
    %v73 = vld [vmem:[#allocation2 + $0x20] sm:$0xff]
    %v74 = vld [vmem:[#allocation2 + $0x28] sm:$0xff]
    %v75 = vld [vmem:[#allocation2 + $0x30] sm:$0xff]
    %v76 = vld [vmem:[#allocation2 + $0x38] sm:$0xff]
    %v77 = vld [vmem:[#allocation2 + $0x40] sm:$0xff]
    %v78 = vld [vmem:[#allocation2 + $0x48] sm:$0xff]
    %v79 = vld [vmem:[#allocation2 + $0x50] sm:$0xff]
    %v80 = vld [vmem:[#allocation2 + $0x58] sm:$0xff]
    %v81 = vld [vmem:[#allocation2 + $0x60] sm:$0xff]
    %v82 = vld [vmem:[#allocation2 + $0x68] sm:$0xff]
    %v83 = vld [vmem:[#allocation2 + $0x70] sm:$0xff]
    %v84 = vld [vmem:[#allocation2 + $0x78] sm:$0xff]
    %v85 = vld [vmem:[#allocation2 + $0x80] sm:$0xff]
    %v86 = vld [vmem:[#allocation2 + $0x88] sm:$0xff]
    %v87 = vld [vmem:[#allocation2 + $0x90] sm:$0xff]
    %v88 = vld [vmem:[#allocation2 + $0x98] sm:$0xff]
    %v89 = vld [vmem:[#allocation2 + $0xa0] sm:$0xff]
    %v90 = vld [vmem:[#allocation2 + $0xa8] sm:$0xff]
    %v91 = vld [vmem:[#allocation2 + $0xb0] sm:$0xff]
    %v92 = vld [vmem:[#allocation2 + $0xb8] sm:$0xff]
    %v93 = vld [vmem:[#allocation2 + $0xc0] sm:$0xff]
    %v94 = vld [vmem:[#allocation2 + $0xc8] sm:$0xff]
    %v95 = vld [vmem:[#allocation2 + $0xd0] sm:$0xff]
    %v96 = vld [vmem:[#allocation2 + $0xd8] sm:$0xff]
    %v97 = vld [vmem:[#allocation2 + $0xe0] sm:$0xff]
    %v98 = vld [vmem:[#allocation2 + $0xe8] sm:$0xff]
    %v99 = vld [vmem:[#allocation2 + $0xf0] sm:$0xff]
    %v100 = vld [vmem:[#allocation2 + $0xf8] sm:$0xff]
    %v101 = vld [vmem:[#allocation2 + $0x100] sm:$0xff]
    %v102 = vld [vmem:[#allocation2 + $0x108] sm:$0xff]
    %v103 = vld [vmem:[#allocation2 + $0x110] sm:$0xff]
    %v104 = vld [vmem:[#allocation2 + $0x118] sm:$0xff]
    %v105 = vld [vmem:[#allocation2 + $0x120] sm:$0xff]
    %v106 = vld [vmem:[#allocation2 + $0x128] sm:$0xff]
    %v107 = vld [vmem:[#allocation2 + $0x130] sm:$0xff]
    %v108 = vld [vmem:[#allocation2 + $0x138] sm:$0xff]
    %v109 = vld [vmem:[#allocation2 + $0x140] sm:$0xff]
    %v110 = vld [vmem:[#allocation2 + $0x148] sm:$0xff]
    %v111 = vld [vmem:[#allocation2 + $0x150] sm:$0xff]
    %v112 = vld [vmem:[#allocation2 + $0x158] sm:$0xff]
    %v113 = vld [vmem:[#allocation2 + $0x160] sm:$0xff]
    %v114 = vld [vmem:[#allocation2 + $0x168] sm:$0xff]
    %v115 = vld [vmem:[#allocation2 + $0x170] sm:$0xff]
    %v116 = vld [vmem:[#allocation2 + $0x178] sm:$0xff]
    %v117 = vld [vmem:[#allocation2 + $0x180] sm:$0xff]
    %v118 = vld [vmem:[#allocation2 + $0x188] sm:$0xff]
    %119 = vadd.xlane.f32.xlu0 %v69
    %v120 = vpop.xlane.xlu0 %119
    %121 = vadd.xlane.f32.xlu0 %v70
    %v122 = vpop.xlane.xlu0 %121
    %123 = vadd.xlane.f32.xlu0 %v71
    %v124 = vpop.xlane.xlu0 %123
    %125 = vadd.xlane.f32.xlu0 %v72
    %v126 = vpop.xlane.xlu0 %125
    %127 = vadd.xlane.f32.xlu0 %v73
    %v128 = vpop.xlane.xlu0 %127
    %129 = vadd.xlane.f32.xlu0 %v74
    %v130 = vpop.xlane.xlu0 %129
    %131 = vadd.xlane.f32.xlu0 %v75
    %v132 = vpop.xlane.xlu0 %131
    %133 = vadd.xlane.f32.xlu0 %v76
    %v134 = vpop.xlane.xlu0 %133
    %135 = vadd.xlane.f32.xlu0 %v77
    %v136 = vpop.xlane.xlu0 %135
    %137 = vadd.xlane.f32.xlu0 %v78
    %v138 = vpop.xlane.xlu0 %137
    %139 = vadd.xlane.f32.xlu0 %v79
    %v140 = vpop.xlane.xlu0 %139
    %141 = vadd.xlane.f32.xlu0 %v80
    %v142 = vpop.xlane.xlu0 %141
    %143 = vadd.xlane.f32.xlu0 %v81
    %v144 = vpop.xlane.xlu0 %143
    %145 = vadd.xlane.f32.xlu0 %v82
    %v146 = vpop.xlane.xlu0 %145
    %147 = vadd.xlane.f32.xlu0 %v83
    %v148 = vpop.xlane.xlu0 %147
    %149 = vadd.xlane.f32.xlu0 %v84
    %v150 = vpop.xlane.xlu0 %149
    %151 = vadd.xlane.f32.xlu0 %v85
    %v152 = vpop.xlane.xlu0 %151
    %153 = vadd.xlane.f32.xlu0 %v86
    %v154 = vpop.xlane.xlu0 %153
    %155 = vadd.xlane.f32.xlu0 %v87
    %v156 = vpop.xlane.xlu0 %155
    %157 = vadd.xlane.f32.xlu0 %v88
    %v158 = vpop.xlane.xlu0 %157
    %159 = vadd.xlane.f32.xlu0 %v89
    %v160 = vpop.xlane.xlu0 %159
    %161 = vadd.xlane.f32.xlu0 %v90
    %v162 = vpop.xlane.xlu0 %161
    %163 = vadd.xlane.f32.xlu0 %v91
    %v164 = vpop.xlane.xlu0 %163
    %165 = vadd.xlane.f32.xlu0 %v92
    %v166 = vpop.xlane.xlu0 %165
    %167 = vadd.xlane.f32.xlu0 %v93
    %v168 = vpop.xlane.xlu0 %167
    %169 = vadd.xlane.f32.xlu0 %v94
    %v170 = vpop.xlane.xlu0 %169
    %171 = vadd.xlane.f32.xlu0 %v95
    %v172 = vpop.xlane.xlu0 %171
    %173 = vadd.xlane.f32.xlu0 %v96
    %v174 = vpop.xlane.xlu0 %173
    %175 = vadd.xlane.f32.xlu0 %v97
    %v176 = vpop.xlane.xlu0 %175
    %177 = vadd.xlane.f32.xlu0 %v98
    %v178 = vpop.xlane.xlu0 %177
    %179 = vadd.xlane.f32.xlu0 %v99
    %v180 = vpop.xlane.xlu0 %179
    %181 = vadd.xlane.f32.xlu0 %v100
    %v182 = vpop.xlane.xlu0 %181
    %183 = vadd.xlane.f32.xlu0 %v101
    %v184 = vpop.xlane.xlu0 %183
    %185 = vadd.xlane.f32.xlu0 %v102
    %v186 = vpop.xlane.xlu0 %185
    %187 = vadd.xlane.f32.xlu0 %v103
    %v188 = vpop.xlane.xlu0 %187
    %189 = vadd.xlane.f32.xlu0 %v104
    %v190 = vpop.xlane.xlu0 %189
    %191 = vadd.xlane.f32.xlu0 %v105
    %v192 = vpop.xlane.xlu0 %191
    %193 = vadd.xlane.f32.xlu0 %v106
    %v194 = vpop.xlane.xlu0 %193
    %195 = vadd.xlane.f32.xlu0 %v107
    %v196 = vpop.xlane.xlu0 %195
    %197 = vadd.xlane.f32.xlu0 %v108
    %v198 = vpop.xlane.xlu0 %197
    %199 = vadd.xlane.f32.xlu0 %v109
    %v200 = vpop.xlane.xlu0 %199
    %201 = vadd.xlane.f32.xlu0 %v110
    %v202 = vpop.xlane.xlu0 %201
    %203 = vadd.xlane.f32.xlu0 %v111
    %v204 = vpop.xlane.xlu0 %203
    %205 = vadd.xlane.f32.xlu0 %v112
    %v206 = vpop.xlane.xlu0 %205
    %207 = vadd.xlane.f32.xlu0 %v113
    %v208 = vpop.xlane.xlu0 %207
    %209 = vadd.xlane.f32.xlu0 %v114
    %v210 = vpop.xlane.xlu0 %209
    %211 = vadd.xlane.f32.xlu0 %v115
    %v212 = vpop.xlane.xlu0 %211
    %213 = vadd.xlane.f32.xlu0 %v116
    %v214 = vpop.xlane.xlu0 %213
    %215 = vadd.xlane.f32.xlu0 %v117
    %v216 = vpop.xlane.xlu0 %215
    %217 = vadd.xlane.f32.xlu0 %v118
    %v218 = vpop.xlane.xlu0 %217
    %v219 = vrcp.pop 128.0
    %v220 = vmul.f32 %v120, %v219
    %v221 = vmul.f32 %v122, %v219
    %v222 = vmul.f32 %v124, %v219
    %v223 = vmul.f32 %v126, %v219
    %v224 = vmul.f32 %v128, %v219
    %v225 = vmul.f32 %v130, %v219
    %v226 = vmul.f32 %v132, %v219
    %v227 = vmul.f32 %v134, %v219
    %v228 = vmul.f32 %v136, %v219
    %v229 = vmul.f32 %v138, %v219
    %v230 = vmul.f32 %v140, %v219
    %v231 = vmul.f32 %v142, %v219
    %v232 = vmul.f32 %v144, %v219
    %v233 = vmul.f32 %v146, %v219
    %v234 = vmul.f32 %v148, %v219
    %v235 = vmul.f32 %v150, %v219
    %v236 = vmul.f32 %v152, %v219
    %v237 = vmul.f32 %v154, %v219
    %v238 = vmul.f32 %v156, %v219
    %v239 = vmul.f32 %v158, %v219
    %v240 = vmul.f32 %v160, %v219
    %v241 = vmul.f32 %v162, %v219
    %v242 = vmul.f32 %v164, %v219
    %v243 = vmul.f32 %v166, %v219
    %v244 = vmul.f32 %v168, %v219
    %v245 = vmul.f32 %v170, %v219
    %v246 = vmul.f32 %v172, %v219
    %v247 = vmul.f32 %v174, %v219
    %v248 = vmul.f32 %v176, %v219
    %v249 = vmul.f32 %v178, %v219
    %v250 = vmul.f32 %v180, %v219
    %v251 = vmul.f32 %v182, %v219
    %v252 = vmul.f32 %v184, %v219
    %v253 = vmul.f32 %v186, %v219
    %v254 = vmul.f32 %v188, %v219
    %v255 = vmul.f32 %v190, %v219
    %v256 = vmul.f32 %v192, %v219
    %v257 = vmul.f32 %v194, %v219
    %v258 = vmul.f32 %v196, %v219
    %v259 = vmul.f32 %v198, %v219
    %v260 = vmul.f32 %v200, %v219
    %v261 = vmul.f32 %v202, %v219
    %v262 = vmul.f32 %v204, %v219
    %v263 = vmul.f32 %v206, %v219
    %v264 = vmul.f32 %v208, %v219
    %v265 = vmul.f32 %v210, %v219
    %v266 = vmul.f32 %v212, %v219
    %v267 = vmul.f32 %v214, %v219
    %v268 = vmul.f32 %v216, %v219
    %v269 = vmul.f32 %v218, %v219
    %v270 = vsub.f32 %v69, %v220
    %v271 = vsub.f32 %v70, %v221
    %v272 = vsub.f32 %v71, %v222
    %v273 = vsub.f32 %v72, %v223
    %v274 = vsub.f32 %v73, %v224
    %v275 = vsub.f32 %v74, %v225
    %v276 = vsub.f32 %v75, %v226
    %v277 = vsub.f32 %v76, %v227
    %v278 = vsub.f32 %v77, %v228
    %v279 = vsub.f32 %v78, %v229
    %v280 = vsub.f32 %v79, %v230
    %v281 = vsub.f32 %v80, %v231
    %v282 = vsub.f32 %v81, %v232
    %v283 = vsub.f32 %v82, %v233
    %v284 = vsub.f32 %v83, %v234
    %v285 = vsub.f32 %v84, %v235
    %v286 = vsub.f32 %v85, %v236
    %v287 = vsub.f32 %v86, %v237
    %v288 = vsub.f32 %v87, %v238
    %v289 = vsub.f32 %v88, %v239
    %v290 = vsub.f32 %v89, %v240
    %v291 = vsub.f32 %v90, %v241
    %v292 = vsub.f32 %v91, %v242
    %v293 = vsub.f32 %v92, %v243
    %v294 = vsub.f32 %v93, %v244
    %v295 = vsub.f32 %v94, %v245
    %v296 = vsub.f32 %v95, %v246
    %v297 = vsub.f32 %v96, %v247
    %v298 = vsub.f32 %v97, %v248
    %v299 = vsub.f32 %v98, %v249
    %v300 = vsub.f32 %v99, %v250
    %v301 = vsub.f32 %v100, %v251
    %v302 = vsub.f32 %v101, %v252
    %v303 = vsub.f32 %v102, %v253
    %v304 = vsub.f32 %v103, %v254
    %v305 = vsub.f32 %v104, %v255
    %v306 = vsub.f32 %v105, %v256
    %v307 = vsub.f32 %v106, %v257
    %v308 = vsub.f32 %v107, %v258
    %v309 = vsub.f32 %v108, %v259
    %v310 = vsub.f32 %v109, %v260
    %v311 = vsub.f32 %v110, %v261
    %v312 = vsub.f32 %v111, %v262
    %v313 = vsub.f32 %v112, %v263
    %v314 = vsub.f32 %v113, %v264
    %v315 = vsub.f32 %v114, %v265
    %v316 = vsub.f32 %v115, %v266
    %v317 = vsub.f32 %v116, %v267
    %v318 = vsub.f32 %v117, %v268
    %v319 = vsub.f32 %v118, %v269
    %v320 = vmul.f32 %v270, %v270
    %v321 = vmul.f32 %v271, %v271
    %v322 = vmul.f32 %v272, %v272
    %v323 = vmul.f32 %v273, %v273
    %v324 = vmul.f32 %v274, %v274
    %v325 = vmul.f32 %v275, %v275
    %v326 = vmul.f32 %v276, %v276
    %v327 = vmul.f32 %v277, %v277
    %v328 = vmul.f32 %v278, %v278
    %v329 = vmul.f32 %v279, %v279
    %v330 = vmul.f32 %v280, %v280
    %v331 = vmul.f32 %v281, %v281
    %v332 = vmul.f32 %v282, %v282
    %v333 = vmul.f32 %v283, %v283
    %v334 = vmul.f32 %v284, %v284
    %v335 = vmul.f32 %v285, %v285
    %v336 = vmul.f32 %v286, %v286
    %v337 = vmul.f32 %v287, %v287
    %v338 = vmul.f32 %v288, %v288
    %v339 = vmul.f32 %v289, %v289
    %v340 = vmul.f32 %v290, %v290
    %v341 = vmul.f32 %v291, %v291
    %v342 = vmul.f32 %v292, %v292
    %v343 = vmul.f32 %v293, %v293
    %v344 = vmul.f32 %v294, %v294
    %v345 = vmul.f32 %v295, %v295
    %v346 = vmul.f32 %v296, %v296
    %v347 = vmul.f32 %v297, %v297
    %v348 = vmul.f32 %v298, %v298
    %v349 = vmul.f32 %v299, %v299
    %v350 = vmul.f32 %v300, %v300
    %v351 = vmul.f32 %v301, %v301
    %v352 = vmul.f32 %v302, %v302
    %v353 = vmul.f32 %v303, %v303
    %v354 = vmul.f32 %v304, %v304
    %v355 = vmul.f32 %v305, %v305
    %v356 = vmul.f32 %v306, %v306
    %v357 = vmul.f32 %v307, %v307
    %v358 = vmul.f32 %v308, %v308
    %v359 = vmul.f32 %v309, %v309
    %v360 = vmul.f32 %v310, %v310
    %v361 = vmul.f32 %v311, %v311
    %v362 = vmul.f32 %v312, %v312
    %v363 = vmul.f32 %v313, %v313
    %v364 = vmul.f32 %v314, %v314
    %v365 = vmul.f32 %v315, %v315
    %v366 = vmul.f32 %v316, %v316
    %v367 = vmul.f32 %v317, %v317
    %v368 = vmul.f32 %v318, %v318
    %v369 = vmul.f32 %v319, %v319
    %370 = vadd.xlane.f32.xlu0 %v320
    %v371 = vpop.xlane.xlu0 %370
    %372 = vadd.xlane.f32.xlu0 %v321
    %v373 = vpop.xlane.xlu0 %372
    %374 = vadd.xlane.f32.xlu0 %v322
    %v375 = vpop.xlane.xlu0 %374
    %376 = vadd.xlane.f32.xlu0 %v323
    %v377 = vpop.xlane.xlu0 %376
    %378 = vadd.xlane.f32.xlu0 %v324
    %v379 = vpop.xlane.xlu0 %378
    %380 = vadd.xlane.f32.xlu0 %v325
    %v381 = vpop.xlane.xlu0 %380
    %382 = vadd.xlane.f32.xlu0 %v326
    %v383 = vpop.xlane.xlu0 %382
    %384 = vadd.xlane.f32.xlu0 %v327
    %v385 = vpop.xlane.xlu0 %384
    %386 = vadd.xlane.f32.xlu0 %v328
    %v387 = vpop.xlane.xlu0 %386
    %388 = vadd.xlane.f32.xlu0 %v329
    %v389 = vpop.xlane.xlu0 %388
    %390 = vadd.xlane.f32.xlu0 %v330
    %v391 = vpop.xlane.xlu0 %390
    %392 = vadd.xlane.f32.xlu0 %v331
    %v393 = vpop.xlane.xlu0 %392
    %394 = vadd.xlane.f32.xlu0 %v332
    %v395 = vpop.xlane.xlu0 %394
    %396 = vadd.xlane.f32.xlu0 %v333
    %v397 = vpop.xlane.xlu0 %396
    %398 = vadd.xlane.f32.xlu0 %v334
    %v399 = vpop.xlane.xlu0 %398
    %400 = vadd.xlane.f32.xlu0 %v335
    %v401 = vpop.xlane.xlu0 %400
    %402 = vadd.xlane.f32.xlu0 %v336
    %v403 = vpop.xlane.xlu0 %402
    %404 = vadd.xlane.f32.xlu0 %v337
    %v405 = vpop.xlane.xlu0 %404
    %406 = vadd.xlane.f32.xlu0 %v338
    %v407 = vpop.xlane.xlu0 %406
    %408 = vadd.xlane.f32.xlu0 %v339
    %v409 = vpop.xlane.xlu0 %408
    %410 = vadd.xlane.f32.xlu0 %v340
    %v411 = vpop.xlane.xlu0 %410
    %412 = vadd.xlane.f32.xlu0 %v341
    %v413 = vpop.xlane.xlu0 %412
    %414 = vadd.xlane.f32.xlu0 %v342
    %v415 = vpop.xlane.xlu0 %414
    %416 = vadd.xlane.f32.xlu0 %v343
    %v417 = vpop.xlane.xlu0 %416
    %418 = vadd.xlane.f32.xlu0 %v344
    %v419 = vpop.xlane.xlu0 %418
    %420 = vadd.xlane.f32.xlu0 %v345
    %v421 = vpop.xlane.xlu0 %420
    %422 = vadd.xlane.f32.xlu0 %v346
    %v423 = vpop.xlane.xlu0 %422
    %424 = vadd.xlane.f32.xlu0 %v347
    %v425 = vpop.xlane.xlu0 %424
    %426 = vadd.xlane.f32.xlu0 %v348
    %v427 = vpop.xlane.xlu0 %426
    %428 = vadd.xlane.f32.xlu0 %v349
    %v429 = vpop.xlane.xlu0 %428
    %430 = vadd.xlane.f32.xlu0 %v350
    %v431 = vpop.xlane.xlu0 %430
    %432 = vadd.xlane.f32.xlu0 %v351
    %v433 = vpop.xlane.xlu0 %432
    %434 = vadd.xlane.f32.xlu0 %v352
    %v435 = vpop.xlane.xlu0 %434
    %436 = vadd.xlane.f32.xlu0 %v353
    %v437 = vpop.xlane.xlu0 %436
    %438 = vadd.xlane.f32.xlu0 %v354
    %v439 = vpop.xlane.xlu0 %438
    %440 = vadd.xlane.f32.xlu0 %v355
    %v441 = vpop.xlane.xlu0 %440
    %442 = vadd.xlane.f32.xlu0 %v356
    %v443 = vpop.xlane.xlu0 %442
    %444 = vadd.xlane.f32.xlu0 %v357
    %v445 = vpop.xlane.xlu0 %444
    %446 = vadd.xlane.f32.xlu0 %v358
    %v447 = vpop.xlane.xlu0 %446
    %448 = vadd.xlane.f32.xlu0 %v359
    %v449 = vpop.xlane.xlu0 %448
    %450 = vadd.xlane.f32.xlu0 %v360
    %v451 = vpop.xlane.xlu0 %450
    %452 = vadd.xlane.f32.xlu0 %v361
    %v453 = vpop.xlane.xlu0 %452
    %454 = vadd.xlane.f32.xlu0 %v362
    %v455 = vpop.xlane.xlu0 %454
    %456 = vadd.xlane.f32.xlu0 %v363
    %v457 = vpop.xlane.xlu0 %456
    %458 = vadd.xlane.f32.xlu0 %v364
    %v459 = vpop.xlane.xlu0 %458
    %460 = vadd.xlane.f32.xlu0 %v365
    %v461 = vpop.xlane.xlu0 %460
    %462 = vadd.xlane.f32.xlu0 %v366
    %v463 = vpop.xlane.xlu0 %462
    %464 = vadd.xlane.f32.xlu0 %v367
    %v465 = vpop.xlane.xlu0 %464
    %466 = vadd.xlane.f32.xlu0 %v368
    %v467 = vpop.xlane.xlu0 %466
    %468 = vadd.xlane.f32.xlu0 %v369
    %v469 = vpop.xlane.xlu0 %468
    %v470 = vmul.f32 %v371, %v219
    %v471 = vmul.f32 %v373, %v219
    %v472 = vmul.f32 %v375, %v219
    %v473 = vmul.f32 %v377, %v219
    %v474 = vmul.f32 %v379, %v219
    %v475 = vmul.f32 %v381, %v219
    %v476 = vmul.f32 %v383, %v219
    %v477 = vmul.f32 %v385, %v219
    %v478 = vmul.f32 %v387, %v219
    %v479 = vmul.f32 %v389, %v219
    %v480 = vmul.f32 %v391, %v219
    %v481 = vmul.f32 %v393, %v219
    %v482 = vmul.f32 %v395, %v219
    %v483 = vmul.f32 %v397, %v219
    %v484 = vmul.f32 %v399, %v219
    %v485 = vmul.f32 %v401, %v219
    %v486 = vmul.f32 %v403, %v219
    %v487 = vmul.f32 %v405, %v219
    %v488 = vmul.f32 %v407, %v219
    %v489 = vmul.f32 %v409, %v219
    %v490 = vmul.f32 %v411, %v219
    %v491 = vmul.f32 %v413, %v219
    %v492 = vmul.f32 %v415, %v219
    %v493 = vmul.f32 %v417, %v219
    %v494 = vmul.f32 %v419, %v219
    %v495 = vmul.f32 %v421, %v219
    %v496 = vmul.f32 %v423, %v219
    %v497 = vmul.f32 %v425, %v219
    %v498 = vmul.f32 %v427, %v219
    %v499 = vmul.f32 %v429, %v219
    %v500 = vmul.f32 %v431, %v219
    %v501 = vmul.f32 %v433, %v219
    %v502 = vmul.f32 %v435, %v219
    %v503 = vmul.f32 %v437, %v219
    %v504 = vmul.f32 %v439, %v219
    %v505 = vmul.f32 %v441, %v219
    %v506 = vmul.f32 %v443, %v219
    %v507 = vmul.f32 %v445, %v219
    %v508 = vmul.f32 %v447, %v219
    %v509 = vmul.f32 %v449, %v219
    %v510 = vmul.f32 %v451, %v219
    %v511 = vmul.f32 %v453, %v219
    %v512 = vmul.f32 %v455, %v219
    %v513 = vmul.f32 %v457, %v219
    %v514 = vmul.f32 %v459, %v219
    %v515 = vmul.f32 %v461, %v219
    %v516 = vmul.f32 %v463, %v219
    %v517 = vmul.f32 %v465, %v219
    %v518 = vmul.f32 %v467, %v219
    %v519 = vmul.f32 %v469, %v219
    %v520 = vadd.f32 %v470, 1e-05
    %v521 = vadd.f32 %v471, 1e-05
    %v522 = vadd.f32 %v472, 1e-05
    %v523 = vadd.f32 %v473, 1e-05
    %v524 = vadd.f32 %v474, 1e-05
    %v525 = vadd.f32 %v475, 1e-05
    %v526 = vadd.f32 %v476, 1e-05
    %v527 = vadd.f32 %v477, 1e-05
    %v528 = vadd.f32 %v478, 1e-05
    %v529 = vadd.f32 %v479, 1e-05
    %v530 = vadd.f32 %v480, 1e-05
    %v531 = vadd.f32 %v481, 1e-05
    %v532 = vadd.f32 %v482, 1e-05
    %v533 = vadd.f32 %v483, 1e-05
    %v534 = vadd.f32 %v484, 1e-05
    %v535 = vadd.f32 %v485, 1e-05
    %v536 = vadd.f32 %v486, 1e-05
    %v537 = vadd.f32 %v487, 1e-05
    %v538 = vadd.f32 %v488, 1e-05
    %v539 = vadd.f32 %v489, 1e-05
    %v540 = vadd.f32 %v490, 1e-05
    %v541 = vadd.f32 %v491, 1e-05
    %v542 = vadd.f32 %v492, 1e-05
    %v543 = vadd.f32 %v493, 1e-05
    %v544 = vadd.f32 %v494, 1e-05
    %v545 = vadd.f32 %v495, 1e-05
    %v546 = vadd.f32 %v496, 1e-05
    %v547 = vadd.f32 %v497, 1e-05
    %v548 = vadd.f32 %v498, 1e-05
    %v549 = vadd.f32 %v499, 1e-05
    %v550 = vadd.f32 %v500, 1e-05
    %v551 = vadd.f32 %v501, 1e-05
    %v552 = vadd.f32 %v502, 1e-05
    %v553 = vadd.f32 %v503, 1e-05
    %v554 = vadd.f32 %v504, 1e-05
    %v555 = vadd.f32 %v505, 1e-05
    %v556 = vadd.f32 %v506, 1e-05
    %v557 = vadd.f32 %v507, 1e-05
    %v558 = vadd.f32 %v508, 1e-05
    %v559 = vadd.f32 %v509, 1e-05
    %v560 = vadd.f32 %v510, 1e-05
    %v561 = vadd.f32 %v511, 1e-05
    %v562 = vadd.f32 %v512, 1e-05
    %v563 = vadd.f32 %v513, 1e-05
    %v564 = vadd.f32 %v514, 1e-05
    %v565 = vadd.f32 %v515, 1e-05
    %v566 = vadd.f32 %v516, 1e-05
    %v567 = vadd.f32 %v517, 1e-05
    %v568 = vadd.f32 %v518, 1e-05
    %v569 = vadd.f32 %v519, 1e-05
    %v570 = vrsqrt.pop %v520
    %v571 = vrsqrt.pop %v521
    %v572 = vrsqrt.pop %v522
    %v573 = vrsqrt.pop %v523
    %v574 = vrsqrt.pop %v524
    %v575 = vrsqrt.pop %v525
    %v576 = vrsqrt.pop %v526
    %v577 = vrsqrt.pop %v527
    %v578 = vrsqrt.pop %v528
    %v579 = vrsqrt.pop %v529
    %v580 = vrsqrt.pop %v530
    %v581 = vrsqrt.pop %v531
    %v582 = vrsqrt.pop %v532
    %v583 = vrsqrt.pop %v533
    %v584 = vrsqrt.pop %v534
    %v585 = vrsqrt.pop %v535
    %v586 = vrsqrt.pop %v536
    %v587 = vrsqrt.pop %v537
    %v588 = vrsqrt.pop %v538
    %v589 = vrsqrt.pop %v539
    %v590 = vrsqrt.pop %v540
    %v591 = vrsqrt.pop %v541
    %v592 = vrsqrt.pop %v542
    %v593 = vrsqrt.pop %v543
    %v594 = vrsqrt.pop %v544
    %v595 = vrsqrt.pop %v545
    %v596 = vrsqrt.pop %v546
    %v597 = vrsqrt.pop %v547
    %v598 = vrsqrt.pop %v548
    %v599 = vrsqrt.pop %v549
    %v600 = vrsqrt.pop %v550
    %v601 = vrsqrt.pop %v551
    %v602 = vrsqrt.pop %v552
    %v603 = vrsqrt.pop %v553
    %v604 = vrsqrt.pop %v554
    %v605 = vrsqrt.pop %v555
    %v606 = vrsqrt.pop %v556
    %v607 = vrsqrt.pop %v557
    %v608 = vrsqrt.pop %v558
    %v609 = vrsqrt.pop %v559
    %v610 = vrsqrt.pop %v560
    %v611 = vrsqrt.pop %v561
    %v612 = vrsqrt.pop %v562
    %v613 = vrsqrt.pop %v563
    %v614 = vrsqrt.pop %v564
    %v615 = vrsqrt.pop %v565
    %v616 = vrsqrt.pop %v566
    %v617 = vrsqrt.pop %v567
    %v618 = vrsqrt.pop %v568
    %v619 = vrsqrt.pop %v569
    %v620 = vmul.f32 %v270, %v570
    %v621 = vmul.f32 %v271, %v571
    %v622 = vmul.f32 %v272, %v572
    %v623 = vmul.f32 %v273, %v573
    %v624 = vmul.f32 %v274, %v574
    %v625 = vmul.f32 %v275, %v575
    %v626 = vmul.f32 %v276, %v576
    %v627 = vmul.f32 %v277, %v577
    %v628 = vmul.f32 %v278, %v578
    %v629 = vmul.f32 %v279, %v579
    %v630 = vmul.f32 %v280, %v580
    %v631 = vmul.f32 %v281, %v581
    %v632 = vmul.f32 %v282, %v582
    %v633 = vmul.f32 %v283, %v583
    %v634 = vmul.f32 %v284, %v584
    %v635 = vmul.f32 %v285, %v585
    %v636 = vmul.f32 %v286, %v586
    %v637 = vmul.f32 %v287, %v587
    %v638 = vmul.f32 %v288, %v588
    %v639 = vmul.f32 %v289, %v589
    %v640 = vmul.f32 %v290, %v590
    %v641 = vmul.f32 %v291, %v591
    %v642 = vmul.f32 %v292, %v592
    %v643 = vmul.f32 %v293, %v593
    %v644 = vmul.f32 %v294, %v594
    %v645 = vmul.f32 %v295, %v595
    %v646 = vmul.f32 %v296, %v596
    %v647 = vmul.f32 %v297, %v597
    %v648 = vmul.f32 %v298, %v598
    %v649 = vmul.f32 %v299, %v599
    %v650 = vmul.f32 %v300, %v600
    %v651 = vmul.f32 %v301, %v601
    %v652 = vmul.f32 %v302, %v602
    %v653 = vmul.f32 %v303, %v603
    %v654 = vmul.f32 %v304, %v604
    %v655 = vmul.f32 %v305, %v605
    %v656 = vmul.f32 %v306, %v606
    %v657 = vmul.f32 %v307, %v607
    %v658 = vmul.f32 %v308, %v608
    %v659 = vmul.f32 %v309, %v609
    %v660 = vmul.f32 %v310, %v610
    %v661 = vmul.f32 %v311, %v611
    %v662 = vmul.f32 %v312, %v612
    %v663 = vmul.f32 %v313, %v613
    %v664 = vmul.f32 %v314, %v614
    %v665 = vmul.f32 %v315, %v615
    %v666 = vmul.f32 %v316, %v616
    %v667 = vmul.f32 %v317, %v617
    %v668 = vmul.f32 %v318, %v618
    %v669 = vmul.f32 %v319, %v619
    %v670 = vld [vmem:[%s1] sm:$0x1]
    %v672 = vlaneseq
    %v673 = vshrl.u32 %v672, 7
    %v674 = vsub.s32 0, %v673
    %v675 = vrot.slane %v670, %v674
    %v677 = vmul.f32 %v620, %v675
    %v678 = vmul.f32 %v621, %v675
    %v679 = vmul.f32 %v622, %v675
    %v680 = vmul.f32 %v623, %v675
    %v681 = vmul.f32 %v624, %v675
    %v682 = vmul.f32 %v625, %v675
    %v683 = vmul.f32 %v626, %v675
    %v684 = vmul.f32 %v627, %v675
    %v685 = vmul.f32 %v628, %v675
    %v686 = vmul.f32 %v629, %v675
    %v687 = vmul.f32 %v630, %v675
    %v688 = vmul.f32 %v631, %v675
    %v689 = vmul.f32 %v632, %v675
    %v690 = vmul.f32 %v633, %v675
    %v691 = vmul.f32 %v634, %v675
    %v692 = vmul.f32 %v635, %v675
    %v693 = vmul.f32 %v636, %v675
    %v694 = vmul.f32 %v637, %v675
    %v695 = vmul.f32 %v638, %v675
    %v696 = vmul.f32 %v639, %v675
    %v697 = vmul.f32 %v640, %v675
    %v698 = vmul.f32 %v641, %v675
    %v699 = vmul.f32 %v642, %v675
    %v700 = vmul.f32 %v643, %v675
    %v701 = vmul.f32 %v644, %v675
    %v702 = vmul.f32 %v645, %v675
    %v703 = vmul.f32 %v646, %v675
    %v704 = vmul.f32 %v647, %v675
    %v705 = vmul.f32 %v648, %v675
    %v706 = vmul.f32 %v649, %v675
    %v707 = vmul.f32 %v650, %v675
    %v708 = vmul.f32 %v651, %v675
    %v709 = vmul.f32 %v652, %v675
    %v710 = vmul.f32 %v653, %v675
    %v711 = vmul.f32 %v654, %v675
    %v712 = vmul.f32 %v655, %v675
    %v713 = vmul.f32 %v656, %v675
    %v714 = vmul.f32 %v657, %v675
    %v715 = vmul.f32 %v658, %v675
    %v716 = vmul.f32 %v659, %v675
    %v717 = vmul.f32 %v660, %v675
    %v718 = vmul.f32 %v661, %v675
    %v719 = vmul.f32 %v662, %v675
    %v720 = vmul.f32 %v663, %v675
    %v721 = vmul.f32 %v664, %v675
    %v722 = vmul.f32 %v665, %v675
    %v723 = vmul.f32 %v666, %v675
    %v724 = vmul.f32 %v667, %v675
    %v725 = vmul.f32 %v668, %v675
    %v726 = vmul.f32 %v669, %v675
    %v727 = vld [vmem:[%s2] sm:$0x1]
    %v729 = vlaneseq
    %v730 = vshrl.u32 %v729, 7
    %v731 = vsub.s32 0, %v730
    %v732 = vrot.slane %v727, %v731
    %v734 = vadd.f32 %v677, %v732
    %v735 = vadd.f32 %v678, %v732
    %v736 = vadd.f32 %v679, %v732
    %v737 = vadd.f32 %v680, %v732
    %v738 = vadd.f32 %v681, %v732
    %v739 = vadd.f32 %v682, %v732
    %v740 = vadd.f32 %v683, %v732
    %v741 = vadd.f32 %v684, %v732
    %v742 = vadd.f32 %v685, %v732
    %v743 = vadd.f32 %v686, %v732
    %v744 = vadd.f32 %v687, %v732
    %v745 = vadd.f32 %v688, %v732
    %v746 = vadd.f32 %v689, %v732
    %v747 = vadd.f32 %v690, %v732
    %v748 = vadd.f32 %v691, %v732
    %v749 = vadd.f32 %v692, %v732
    %v750 = vadd.f32 %v693, %v732
    %v751 = vadd.f32 %v694, %v732
    %v752 = vadd.f32 %v695, %v732
    %v753 = vadd.f32 %v696, %v732
    %v754 = vadd.f32 %v697, %v732
    %v755 = vadd.f32 %v698, %v732
    %v756 = vadd.f32 %v699, %v732
    %v757 = vadd.f32 %v700, %v732
    %v758 = vadd.f32 %v701, %v732
    %v759 = vadd.f32 %v702, %v732
    %v760 = vadd.f32 %v703, %v732
    %v761 = vadd.f32 %v704, %v732
    %v762 = vadd.f32 %v705, %v732
    %v763 = vadd.f32 %v706, %v732
    %v764 = vadd.f32 %v707, %v732
    %v765 = vadd.f32 %v708, %v732
    %v766 = vadd.f32 %v709, %v732
    %v767 = vadd.f32 %v710, %v732
    %v768 = vadd.f32 %v711, %v732
    %v769 = vadd.f32 %v712, %v732
    %v770 = vadd.f32 %v713, %v732
    %v771 = vadd.f32 %v714, %v732
    %v772 = vadd.f32 %v715, %v732
    %v773 = vadd.f32 %v716, %v732
    %v774 = vadd.f32 %v717, %v732
    %v775 = vadd.f32 %v718, %v732
    %v776 = vadd.f32 %v719, %v732
    %v777 = vadd.f32 %v720, %v732
    %v778 = vadd.f32 %v721, %v732
    %v779 = vadd.f32 %v722, %v732
    %v780 = vadd.f32 %v723, %v732
    %v781 = vadd.f32 %v724, %v732
    %v782 = vadd.f32 %v725, %v732
    %v783 = vadd.f32 %v726, %v732
    %v784 = vpack.c.bf16 %v735, %v734
    %v785 = vpack.c.bf16 %v737, %v736
    %v786 = vpack.c.bf16 %v739, %v738
    %v787 = vpack.c.bf16 %v741, %v740
    %v788 = vpack.c.bf16 %v743, %v742
    %v789 = vpack.c.bf16 %v745, %v744
    %v790 = vpack.c.bf16 %v747, %v746
    %v791 = vpack.c.bf16 %v749, %v748
    %v792 = vpack.c.bf16 %v751, %v750
    %v793 = vpack.c.bf16 %v753, %v752
    %v794 = vpack.c.bf16 %v755, %v754
    %v795 = vpack.c.bf16 %v757, %v756
    %v796 = vpack.c.bf16 %v759, %v758
    %v797 = vpack.c.bf16 %v761, %v760
    %v798 = vpack.c.bf16 %v763, %v762
    %v799 = vpack.c.bf16 %v765, %v764
    %v800 = vpack.c.bf16 %v767, %v766
    %v801 = vpack.c.bf16 %v769, %v768
    %v802 = vpack.c.bf16 %v771, %v770
    %v803 = vpack.c.bf16 %v773, %v772
    %v804 = vpack.c.bf16 %v775, %v774
    %v805 = vpack.c.bf16 %v777, %v776
    %v806 = vpack.c.bf16 %v779, %v778
    %v807 = vpack.c.bf16 %v781, %v780
    %v808 = vpack.c.bf16 %v783, %v782
    %v809 = vld [vmem:[#allocation5] sm:$0xf]
    %v810 = vld [vmem:[#allocation5 + $0x4] sm:$0xf]
    %v811 = vld [vmem:[#allocation5 + $0x8] sm:$0xf]
    %v812 = vld [vmem:[#allocation5 + $0xc] sm:$0xf]
    %v813 = vld [vmem:[#allocation5 + $0x10] sm:$0xf]
    %v814 = vld [vmem:[#allocation5 + $0x14] sm:$0xf]
    %v815 = vld [vmem:[#allocation5 + $0x18] sm:$0xf]
    %v816 = vld [vmem:[#allocation5 + $0x1c] sm:$0xf]
    %v817 = vld [vmem:[#allocation5 + $0x20] sm:$0xf]
    %v818 = vld [vmem:[#allocation5 + $0x24] sm:$0xf]
    %v819 = vld [vmem:[#allocation5 + $0x28] sm:$0xf]
    %v820 = vld [vmem:[#allocation5 + $0x2c] sm:$0xf]
    %v821 = vld [vmem:[#allocation5 + $0x30] sm:$0xf]
    %v822 = vld [vmem:[#allocation5 + $0x34] sm:$0xf]
    %v823 = vld [vmem:[#allocation5 + $0x38] sm:$0xf]
    %v824 = vld [vmem:[#allocation5 + $0x3c] sm:$0xf]
    %v825 = vld [vmem:[%s4] sm:$0x1]
    %v827 = vlaneseq
    %v828 = vshrl.u32 %v827, 7
    %v829 = vsub.s32 0, %v828
    %v830 = vrot.slane %v825, %v829
    %v848 = vunpack.c.l.b16 %v809
    %v849 = vunpack.c.l.b16 %v810
    %v850 = vunpack.c.l.b16 %v811
    %v851 = vunpack.c.l.b16 %v812
    %v852 = vunpack.c.l.b16 %v813
    %v853 = vunpack.c.l.b16 %v814
    %v854 = vunpack.c.l.b16 %v815
    %v855 = vunpack.c.l.b16 %v816
    %v856 = vunpack.c.l.b16 %v817
    %v857 = vunpack.c.l.b16 %v818
    %v858 = vunpack.c.l.b16 %v819
    %v859 = vunpack.c.l.b16 %v820
    %v860 = vunpack.c.l.b16 %v821
    %v861 = vunpack.c.l.b16 %v822
    %v862 = vunpack.c.l.b16 %v823
    %v863 = vunpack.c.l.b16 %v824
    %v864 = vpack.c.b16 %v849, %v848
    %v865 = vpack.c.b16 %v851, %v850
    %v866 = vpack.c.b16 %v853, %v852
    %v867 = vpack.c.b16 %v855, %v854
    %v868 = vpack.c.b16 %v857, %v856
    %v869 = vpack.c.b16 %v859, %v858
    %v870 = vpack.c.b16 %v861, %v860
    %v871 = vpack.c.b16 %v863, %v862
    %880 = vmatprep.subr.bf16.mxu0 0
    %881 = vmatpush1.bf16.msra.mxu0 %v871
    %882 = vmatprep.subr.bf16.mxu0 0
    %883 = vmatpush1.bf16.msra.mxu0 %v870
    %884 = vmatprep.subr.bf16.mxu0 0
    %885 = vmatpush1.bf16.msra.mxu0 %v869
    %886 = vmatprep.subr.bf16.mxu0 0
    %887 = vmatpush1.bf16.msra.mxu0 %v868
    %888 = vmatprep.subr.bf16.mxu0 0
    %889 = vmatpush1.bf16.msra.mxu0 %v867
    %890 = vmatprep.subr.bf16.mxu0 0
    %891 = vmatpush1.bf16.msra.mxu0 %v866
    %892 = vmatprep.subr.bf16.mxu0 0
    %893 = vmatpush1.bf16.msra.mxu0 %v865
    %894 = vmatprep.subr.bf16.mxu0 0
    %895 = vmatpush1.bf16.msra.mxu0 %v864
    %896 = vmatprep.subr.bf16.mxu0 0
    %897 = vmatpush2.bf16.msra.mxu0 0
    %898 = vmatprep.subr.bf16.mxu0 0
    %899 = vmatpush2.bf16.msra.mxu0 0
    %900 = vmatprep.subr.bf16.mxu0 0
    %901 = vmatpush2.bf16.msra.mxu0 0
    %902 = vmatprep.subr.bf16.mxu0 0
    %903 = vmatpush2.bf16.msra.mxu0 0
    %904 = vmatprep.subr.bf16.mxu0 0
    %905 = vmatpush2.bf16.msra.mxu0 0
    %906 = vmatprep.subr.bf16.mxu0 0
    %907 = vmatpush2.bf16.msra.mxu0 0
    %908 = vmatprep.subr.bf16.mxu0 0
    %909 = vmatpush2.bf16.msra.mxu0 0
    %910 = vmatprep.subr.bf16.mxu0 0
    %911 = vmatpush2.bf16.msra.mxu0 0
    %912 = vmatprep.mubr.bf16.mxu0 0
    %913 = vmatmul.mubr.bf16.gmra.mxu0 %v784
    %v914 = vpop.f32.mrf.mxu0
    %v915 = vadd.f32 %v830, %v914
    %v916 = vpop.f32.mrf.mxu0
    %v917 = vpop.f32.mrf.mxu0
    %v918 = vadd.f32 %v830, %v917
    %v919 = vpop.f32.mrf.mxu0
    %920 = vmatprep.mubr.bf16.mxu0 0
    %921 = vmatmul.mubr.bf16.gmra.mxu0 %v785
    %v922 = vpop.f32.mrf.mxu0
    %v923 = vadd.f32 %v830, %v922
    %v924 = vpop.f32.mrf.mxu0
    %v925 = vpop.f32.mrf.mxu0
    %v926 = vadd.f32 %v830, %v925
    %v927 = vpop.f32.mrf.mxu0
    %928 = vmatprep.mubr.bf16.mxu0 0
    %929 = vmatmul.mubr.bf16.gmra.mxu0 %v786
    %v930 = vpop.f32.mrf.mxu0
    %v931 = vadd.f32 %v830, %v930
    %v932 = vpop.f32.mrf.mxu0
    %v933 = vpop.f32.mrf.mxu0
    %v934 = vadd.f32 %v830, %v933
    %v935 = vpop.f32.mrf.mxu0
    %936 = vmatprep.mubr.bf16.mxu0 0
    %937 = vmatmul.mubr.bf16.gmra.mxu0 %v787
    %v938 = vpop.f32.mrf.mxu0
    %v939 = vadd.f32 %v830, %v938
    %v940 = vpop.f32.mrf.mxu0
    %v941 = vpop.f32.mrf.mxu0
    %v942 = vadd.f32 %v830, %v941
    %v943 = vpop.f32.mrf.mxu0
    %944 = vmatprep.mubr.bf16.mxu0 0
    %945 = vmatmul.mubr.bf16.gmra.mxu0 %v788
    %v946 = vpop.f32.mrf.mxu0
    %v947 = vadd.f32 %v830, %v946
    %v948 = vpop.f32.mrf.mxu0
    %v949 = vpop.f32.mrf.mxu0
    %v950 = vadd.f32 %v830, %v949
    %v951 = vpop.f32.mrf.mxu0
    %952 = vmatprep.mubr.bf16.mxu0 0
    %953 = vmatmul.mubr.bf16.gmra.mxu0 %v789
    %v954 = vpop.f32.mrf.mxu0
    %v955 = vadd.f32 %v830, %v954
    %v956 = vpop.f32.mrf.mxu0
    %v957 = vpop.f32.mrf.mxu0
    %v958 = vadd.f32 %v830, %v957
    %v959 = vpop.f32.mrf.mxu0
    %960 = vmatprep.mubr.bf16.mxu0 0
    %961 = vmatmul.mubr.bf16.gmra.mxu0 %v790
    %v962 = vpop.f32.mrf.mxu0
    %v963 = vadd.f32 %v830, %v962
    %v964 = vpop.f32.mrf.mxu0
    %v965 = vpop.f32.mrf.mxu0
    %v966 = vadd.f32 %v830, %v965
    %v967 = vpop.f32.mrf.mxu0
    %968 = vmatprep.mubr.bf16.mxu0 0
    %969 = vmatmul.mubr.bf16.gmra.mxu0 %v791
    %v970 = vpop.f32.mrf.mxu0
    %v971 = vadd.f32 %v830, %v970
    %v972 = vpop.f32.mrf.mxu0
    %v973 = vpop.f32.mrf.mxu0
    %v974 = vadd.f32 %v830, %v973
    %v975 = vpop.f32.mrf.mxu0
    %976 = vmatprep.mubr.bf16.mxu0 0
    %977 = vmatmul.mubr.bf16.gmra.mxu0 %v792
    %v978 = vpop.f32.mrf.mxu0
    %v979 = vadd.f32 %v830, %v978
    %v980 = vpop.f32.mrf.mxu0
    %v981 = vpop.f32.mrf.mxu0
    %v982 = vadd.f32 %v830, %v981
    %v983 = vpop.f32.mrf.mxu0
    %984 = vmatprep.mubr.bf16.mxu0 0
    %985 = vmatmul.mubr.bf16.gmra.mxu0 %v793
    %v986 = vpop.f32.mrf.mxu0
    %v987 = vadd.f32 %v830, %v986
    %v988 = vpop.f32.mrf.mxu0
    %v989 = vpop.f32.mrf.mxu0
    %v990 = vadd.f32 %v830, %v989
    %v991 = vpop.f32.mrf.mxu0
    %992 = vmatprep.mubr.bf16.mxu0 0
    %993 = vmatmul.mubr.bf16.gmra.mxu0 %v794
    %v994 = vpop.f32.mrf.mxu0
    %v995 = vadd.f32 %v830, %v994
    %v996 = vpop.f32.mrf.mxu0
    %v997 = vpop.f32.mrf.mxu0
    %v998 = vadd.f32 %v830, %v997
    %v999 = vpop.f32.mrf.mxu0
    %1000 = vmatprep.mubr.bf16.mxu0 0
    %1001 = vmatmul.mubr.bf16.gmra.mxu0 %v795
    %v1002 = vpop.f32.mrf.mxu0
    %v1003 = vadd.f32 %v830, %v1002
    %v1004 = vpop.f32.mrf.mxu0
    %v1005 = vpop.f32.mrf.mxu0
    %v1006 = vadd.f32 %v830, %v1005
    %v1007 = vpop.f32.mrf.mxu0
    %1008 = vmatprep.mubr.bf16.mxu0 0
    %1009 = vmatmul.mubr.bf16.gmra.mxu0 %v796
    %v1010 = vpop.f32.mrf.mxu0
    %v1011 = vadd.f32 %v830, %v1010
    %v1012 = vpop.f32.mrf.mxu0
    %v1013 = vpop.f32.mrf.mxu0
    %v1014 = vadd.f32 %v830, %v1013
    %v1015 = vpop.f32.mrf.mxu0
    %1016 = vmatprep.mubr.bf16.mxu0 0
    %1017 = vmatmul.mubr.bf16.gmra.mxu0 %v797
    %v1018 = vpop.f32.mrf.mxu0
    %v1019 = vadd.f32 %v830, %v1018
    %v1020 = vpop.f32.mrf.mxu0
    %v1021 = vpop.f32.mrf.mxu0
    %v1022 = vadd.f32 %v830, %v1021
    %v1023 = vpop.f32.mrf.mxu0
    %1024 = vmatprep.mubr.bf16.mxu0 0
    %1025 = vmatmul.mubr.bf16.gmra.mxu0 %v798
    %v1026 = vpop.f32.mrf.mxu0
    %v1027 = vadd.f32 %v830, %v1026
    %v1028 = vpop.f32.mrf.mxu0
    %v1029 = vpop.f32.mrf.mxu0
    %v1030 = vadd.f32 %v830, %v1029
    %v1031 = vpop.f32.mrf.mxu0
    %1032 = vmatprep.mubr.bf16.mxu0 0
    %1033 = vmatmul.mubr.bf16.gmra.mxu0 %v799
    %v1034 = vpop.f32.mrf.mxu0
    %v1035 = vadd.f32 %v830, %v1034
    %v1036 = vpop.f32.mrf.mxu0
    %v1037 = vpop.f32.mrf.mxu0
    %v1038 = vadd.f32 %v830, %v1037
    %v1039 = vpop.f32.mrf.mxu0
    %1040 = vmatprep.mubr.bf16.mxu0 0
    %1041 = vmatmul.mubr.bf16.gmra.mxu0 %v800
    %v1042 = vpop.f32.mrf.mxu0
    %v1043 = vadd.f32 %v830, %v1042
    %v1044 = vpop.f32.mrf.mxu0
    %v1045 = vpop.f32.mrf.mxu0
    %v1046 = vadd.f32 %v830, %v1045
    %v1047 = vpop.f32.mrf.mxu0
    %1048 = vmatprep.mubr.bf16.mxu0 0
    %1049 = vmatmul.mubr.bf16.gmra.mxu0 %v801
    %v1050 = vpop.f32.mrf.mxu0
    %v1051 = vadd.f32 %v830, %v1050
    %v1052 = vpop.f32.mrf.mxu0
    %v1053 = vpop.f32.mrf.mxu0
    %v1054 = vadd.f32 %v830, %v1053
    %v1055 = vpop.f32.mrf.mxu0
    %1056 = vmatprep.mubr.bf16.mxu0 0
    %1057 = vmatmul.mubr.bf16.gmra.mxu0 %v802
    %v1058 = vpop.f32.mrf.mxu0
    %v1059 = vadd.f32 %v830, %v1058
    %v1060 = vpop.f32.mrf.mxu0
    %v1061 = vpop.f32.mrf.mxu0
    %v1062 = vadd.f32 %v830, %v1061
    %v1063 = vpop.f32.mrf.mxu0
    %1064 = vmatprep.mubr.bf16.mxu0 0
    %1065 = vmatmul.mubr.bf16.gmra.mxu0 %v803
    %v1066 = vpop.f32.mrf.mxu0
    %v1067 = vadd.f32 %v830, %v1066
    %v1068 = vpop.f32.mrf.mxu0
    %v1069 = vpop.f32.mrf.mxu0
    %v1070 = vadd.f32 %v830, %v1069
    %v1071 = vpop.f32.mrf.mxu0
    %1072 = vmatprep.mubr.bf16.mxu0 0
    %1073 = vmatmul.mubr.bf16.gmra.mxu0 %v804
    %v1074 = vpop.f32.mrf.mxu0
    %v1075 = vadd.f32 %v830, %v1074
    %v1076 = vpop.f32.mrf.mxu0
    %v1077 = vpop.f32.mrf.mxu0
    %v1078 = vadd.f32 %v830, %v1077
    %v1079 = vpop.f32.mrf.mxu0
    %1080 = vmatprep.mubr.bf16.mxu0 0
    %1081 = vmatmul.mubr.bf16.gmra.mxu0 %v805
    %v1082 = vpop.f32.mrf.mxu0
    %v1083 = vadd.f32 %v830, %v1082
    %v1084 = vpop.f32.mrf.mxu0
    %v1085 = vpop.f32.mrf.mxu0
    %v1086 = vadd.f32 %v830, %v1085
    %v1087 = vpop.f32.mrf.mxu0
    %1088 = vmatprep.mubr.bf16.mxu0 0
    %1089 = vmatmul.mubr.bf16.gmra.mxu0 %v806
    %v1090 = vpop.f32.mrf.mxu0
    %v1091 = vadd.f32 %v830, %v1090
    %v1092 = vpop.f32.mrf.mxu0
    %v1093 = vpop.f32.mrf.mxu0
    %v1094 = vadd.f32 %v830, %v1093
    %v1095 = vpop.f32.mrf.mxu0
    %1096 = vmatprep.mubr.bf16.mxu0 0
    %1097 = vmatmul.mubr.bf16.gmra.mxu0 %v807
    %v1098 = vpop.f32.mrf.mxu0
    %v1099 = vadd.f32 %v830, %v1098
    %v1100 = vpop.f32.mrf.mxu0
    %v1101 = vpop.f32.mrf.mxu0
    %v1102 = vadd.f32 %v830, %v1101
    %v1103 = vpop.f32.mrf.mxu0
    %1104 = vmatprep.mubr.bf16.mxu0 0
    %1105 = vmatmul.mubr.bf16.gmra.mxu0 %v808
    %v1106 = vpop.f32.mrf.mxu0
    %v1107 = vadd.f32 %v830, %v1106
    %v1108 = vpop.f32.mrf.mxu0
    %v1109 = vpop.f32.mrf.mxu0
    %v1110 = vadd.f32 %v830, %v1109
    %v1111 = vpop.f32.mrf.mxu0
    %1112 = vdwg.mxu0
    %v1113 = vmax.f32 %v915, 0.0
    %v1114 = vmax.f32 %v918, 0.0
    %v1115 = vmax.f32 %v923, 0.0
    %v1116 = vmax.f32 %v926, 0.0
    %v1117 = vmax.f32 %v931, 0.0
    %v1118 = vmax.f32 %v934, 0.0
    %v1119 = vmax.f32 %v939, 0.0
    %v1120 = vmax.f32 %v942, 0.0
    %v1121 = vmax.f32 %v947, 0.0
    %v1122 = vmax.f32 %v950, 0.0
    %v1123 = vmax.f32 %v955, 0.0
    %v1124 = vmax.f32 %v958, 0.0
    %v1125 = vmax.f32 %v963, 0.0
    %v1126 = vmax.f32 %v966, 0.0
    %v1127 = vmax.f32 %v971, 0.0
    %v1128 = vmax.f32 %v974, 0.0
    %v1129 = vmax.f32 %v979, 0.0
    %v1130 = vmax.f32 %v982, 0.0
    %v1131 = vmax.f32 %v987, 0.0
    %v1132 = vmax.f32 %v990, 0.0
    %v1133 = vmax.f32 %v995, 0.0
    %v1134 = vmax.f32 %v998, 0.0
    %v1135 = vmax.f32 %v1003, 0.0
    %v1136 = vmax.f32 %v1006, 0.0
    %v1137 = vmax.f32 %v1011, 0.0
    %v1138 = vmax.f32 %v1014, 0.0
    %v1139 = vmax.f32 %v1019, 0.0
    %v1140 = vmax.f32 %v1022, 0.0
    %v1141 = vmax.f32 %v1027, 0.0
    %v1142 = vmax.f32 %v1030, 0.0
    %v1143 = vmax.f32 %v1035, 0.0
    %v1144 = vmax.f32 %v1038, 0.0
    %v1145 = vmax.f32 %v1043, 0.0
    %v1146 = vmax.f32 %v1046, 0.0
    %v1147 = vmax.f32 %v1051, 0.0
    %v1148 = vmax.f32 %v1054, 0.0
    %v1149 = vmax.f32 %v1059, 0.0
    %v1150 = vmax.f32 %v1062, 0.0
    %v1151 = vmax.f32 %v1067, 0.0
    %v1152 = vmax.f32 %v1070, 0.0
    %v1153 = vmax.f32 %v1075, 0.0
    %v1154 = vmax.f32 %v1078, 0.0
    %v1155 = vmax.f32 %v1083, 0.0
    %v1156 = vmax.f32 %v1086, 0.0
    %v1157 = vmax.f32 %v1091, 0.0
    %v1158 = vmax.f32 %v1094, 0.0
    %v1159 = vmax.f32 %v1099, 0.0
    %v1160 = vmax.f32 %v1102, 0.0
    %v1161 = vmax.f32 %v1107, 0.0
    %v1162 = vmax.f32 %v1110, 0.0
    %v1163 = vpack.c.bf16 %v1114, %v1113
    %v1164 = vpack.c.bf16 %v1116, %v1115
    %v1165 = vpack.c.bf16 %v1118, %v1117
    %v1166 = vpack.c.bf16 %v1120, %v1119
    %v1167 = vpack.c.bf16 %v1122, %v1121
    %v1168 = vpack.c.bf16 %v1124, %v1123
    %v1169 = vpack.c.bf16 %v1126, %v1125
    %v1170 = vpack.c.bf16 %v1128, %v1127
    %v1171 = vpack.c.bf16 %v1130, %v1129
    %v1172 = vpack.c.bf16 %v1132, %v1131
    %v1173 = vpack.c.bf16 %v1134, %v1133
    %v1174 = vpack.c.bf16 %v1136, %v1135
    %v1175 = vpack.c.bf16 %v1138, %v1137
    %v1176 = vpack.c.bf16 %v1140, %v1139
    %v1177 = vpack.c.bf16 %v1142, %v1141
    %v1178 = vpack.c.bf16 %v1144, %v1143
    %v1179 = vpack.c.bf16 %v1146, %v1145
    %v1180 = vpack.c.bf16 %v1148, %v1147
    %v1181 = vpack.c.bf16 %v1150, %v1149
    %v1182 = vpack.c.bf16 %v1152, %v1151
    %v1183 = vpack.c.bf16 %v1154, %v1153
    %v1184 = vpack.c.bf16 %v1156, %v1155
    %v1185 = vpack.c.bf16 %v1158, %v1157
    %v1186 = vpack.c.bf16 %v1160, %v1159
    %v1187 = vpack.c.bf16 %v1162, %v1161
    %v1188 = vld [vmem:[#allocation7] sm:$0xf]
    %v1189 = vld [vmem:[#allocation7 + $0x4] sm:$0xf]
    %v1190 = vld [vmem:[#allocation7 + $0x8] sm:$0xf]
    %v1191 = vld [vmem:[#allocation7 + $0xc] sm:$0xf]
    %v1192 = vld [vmem:[#allocation7 + $0x10] sm:$0xf]
    %v1193 = vld [vmem:[#allocation7 + $0x14] sm:$0xf]
    %v1194 = vld [vmem:[#allocation7 + $0x18] sm:$0xf]
    %v1195 = vld [vmem:[#allocation7 + $0x1c] sm:$0xf]
    %v1196 = vld [vmem:[#allocation7 + $0x20] sm:$0xf]
    %v1197 = vld [vmem:[#allocation7 + $0x24] sm:$0xf]
    %v1198 = vld [vmem:[#allocation7 + $0x28] sm:$0xf]
    %v1199 = vld [vmem:[#allocation7 + $0x2c] sm:$0xf]
    %v1200 = vld [vmem:[#allocation7 + $0x30] sm:$0xf]
    %v1201 = vld [vmem:[#allocation7 + $0x34] sm:$0xf]
    %v1202 = vld [vmem:[#allocation7 + $0x38] sm:$0xf]
    %v1203 = vld [vmem:[#allocation7 + $0x3c] sm:$0xf]
    %v1204 = vld [vmem:[%s6] sm:$0x1]
    %v1206 = vlaneseq
    %v1207 = vshrl.u32 %v1206, 7
    %v1208 = vsub.s32 0, %v1207
    %v1209 = vrot.slane %v1204, %v1208
    %v1227 = vunpack.c.l.b16 %v1188
    %v1228 = vunpack.c.l.b16 %v1189
    %v1229 = vunpack.c.l.b16 %v1190
    %v1230 = vunpack.c.l.b16 %v1191
    %v1231 = vunpack.c.l.b16 %v1192
    %v1232 = vunpack.c.l.b16 %v1193
    %v1233 = vunpack.c.l.b16 %v1194
    %v1234 = vunpack.c.l.b16 %v1195
    %v1235 = vunpack.c.l.b16 %v1196
    %v1236 = vunpack.c.l.b16 %v1197
    %v1237 = vunpack.c.l.b16 %v1198
    %v1238 = vunpack.c.l.b16 %v1199
    %v1239 = vunpack.c.l.b16 %v1200
    %v1240 = vunpack.c.l.b16 %v1201
    %v1241 = vunpack.c.l.b16 %v1202
    %v1242 = vunpack.c.l.b16 %v1203
    %v1243 = vpack.c.b16 %v1228, %v1227
    %v1244 = vpack.c.b16 %v1230, %v1229
    %v1245 = vpack.c.b16 %v1232, %v1231
    %v1246 = vpack.c.b16 %v1234, %v1233
    %v1247 = vpack.c.b16 %v1236, %v1235
    %v1248 = vpack.c.b16 %v1238, %v1237
    %v1249 = vpack.c.b16 %v1240, %v1239
    %v1250 = vpack.c.b16 %v1242, %v1241
    %1259 = vmatprep.subr.bf16.mxu0 0
    %1260 = vmatpush1.bf16.msra.mxu0 %v1250
    %1261 = vmatprep.subr.bf16.mxu0 0
    %1262 = vmatpush1.bf16.msra.mxu0 %v1249
    %1263 = vmatprep.subr.bf16.mxu0 0
    %1264 = vmatpush1.bf16.msra.mxu0 %v1248
    %1265 = vmatprep.subr.bf16.mxu0 0
    %1266 = vmatpush1.bf16.msra.mxu0 %v1247
    %1267 = vmatprep.subr.bf16.mxu0 0
    %1268 = vmatpush1.bf16.msra.mxu0 %v1246
    %1269 = vmatprep.subr.bf16.mxu0 0
    %1270 = vmatpush1.bf16.msra.mxu0 %v1245
    %1271 = vmatprep.subr.bf16.mxu0 0
    %1272 = vmatpush1.bf16.msra.mxu0 %v1244
    %1273 = vmatprep.subr.bf16.mxu0 0
    %1274 = vmatpush1.bf16.msra.mxu0 %v1243
    %1275 = vmatprep.subr.bf16.mxu0 0
    %1276 = vmatpush2.bf16.msra.mxu0 0
    %1277 = vmatprep.subr.bf16.mxu0 0
    %1278 = vmatpush2.bf16.msra.mxu0 0
    %1279 = vmatprep.subr.bf16.mxu0 0
    %1280 = vmatpush2.bf16.msra.mxu0 0
    %1281 = vmatprep.subr.bf16.mxu0 0
    %1282 = vmatpush2.bf16.msra.mxu0 0
    %1283 = vmatprep.subr.bf16.mxu0 0
    %1284 = vmatpush2.bf16.msra.mxu0 0
    %1285 = vmatprep.subr.bf16.mxu0 0
    %1286 = vmatpush2.bf16.msra.mxu0 0
    %1287 = vmatprep.subr.bf16.mxu0 0
    %1288 = vmatpush2.bf16.msra.mxu0 0
    %1289 = vmatprep.subr.bf16.mxu0 0
    %1290 = vmatpush2.bf16.msra.mxu0 0
    %1291 = vmatprep.mubr.bf16.mxu0 0
    %1292 = vmatmul.mubr.bf16.gmra.mxu0 %v1163
    %v1293 = vpop.f32.mrf.mxu0
    %v1294 = vadd.f32 %v1209, %v1293
    %v1295 = vpop.f32.mrf.mxu0
    %v1296 = vpop.f32.mrf.mxu0
    %v1297 = vadd.f32 %v1209, %v1296
    %v1298 = vpop.f32.mrf.mxu0
    %1299 = vmatprep.mubr.bf16.mxu0 0
    %1300 = vmatmul.mubr.bf16.gmra.mxu0 %v1164
    %v1301 = vpop.f32.mrf.mxu0
    %v1302 = vadd.f32 %v1209, %v1301
    %v1303 = vpop.f32.mrf.mxu0
    %v1304 = vpop.f32.mrf.mxu0
    %v1305 = vadd.f32 %v1209, %v1304
    %v1306 = vpop.f32.mrf.mxu0
    %1307 = vmatprep.mubr.bf16.mxu0 0
    %1308 = vmatmul.mubr.bf16.gmra.mxu0 %v1165
    %v1309 = vpop.f32.mrf.mxu0
    %v1310 = vadd.f32 %v1209, %v1309
    %v1311 = vpop.f32.mrf.mxu0
    %v1312 = vpop.f32.mrf.mxu0
    %v1313 = vadd.f32 %v1209, %v1312
    %v1314 = vpop.f32.mrf.mxu0
    %1315 = vmatprep.mubr.bf16.mxu0 0
    %1316 = vmatmul.mubr.bf16.gmra.mxu0 %v1166
    %v1317 = vpop.f32.mrf.mxu0
    %v1318 = vadd.f32 %v1209, %v1317
    %v1319 = vpop.f32.mrf.mxu0
    %v1320 = vpop.f32.mrf.mxu0
    %v1321 = vadd.f32 %v1209, %v1320
    %v1322 = vpop.f32.mrf.mxu0
    %1323 = vmatprep.mubr.bf16.mxu0 0
    %1324 = vmatmul.mubr.bf16.gmra.mxu0 %v1167
    %v1325 = vpop.f32.mrf.mxu0
    %v1326 = vadd.f32 %v1209, %v1325
    %v1327 = vpop.f32.mrf.mxu0
    %v1328 = vpop.f32.mrf.mxu0
    %v1329 = vadd.f32 %v1209, %v1328
    %v1330 = vpop.f32.mrf.mxu0
    %1331 = vmatprep.mubr.bf16.mxu0 0
    %1332 = vmatmul.mubr.bf16.gmra.mxu0 %v1168
    %v1333 = vpop.f32.mrf.mxu0
    %v1334 = vadd.f32 %v1209, %v1333
    %v1335 = vpop.f32.mrf.mxu0
    %v1336 = vpop.f32.mrf.mxu0
    %v1337 = vadd.f32 %v1209, %v1336
    %v1338 = vpop.f32.mrf.mxu0
    %1339 = vmatprep.mubr.bf16.mxu0 0
    %1340 = vmatmul.mubr.bf16.gmra.mxu0 %v1169
    %v1341 = vpop.f32.mrf.mxu0
    %v1342 = vadd.f32 %v1209, %v1341
    %v1343 = vpop.f32.mrf.mxu0
    %v1344 = vpop.f32.mrf.mxu0
    %v1345 = vadd.f32 %v1209, %v1344
    %v1346 = vpop.f32.mrf.mxu0
    %1347 = vmatprep.mubr.bf16.mxu0 0
    %1348 = vmatmul.mubr.bf16.gmra.mxu0 %v1170
    %v1349 = vpop.f32.mrf.mxu0
    %v1350 = vadd.f32 %v1209, %v1349
    %v1351 = vpop.f32.mrf.mxu0
    %v1352 = vpop.f32.mrf.mxu0
    %v1353 = vadd.f32 %v1209, %v1352
    %v1354 = vpop.f32.mrf.mxu0
    %1355 = vmatprep.mubr.bf16.mxu0 0
    %1356 = vmatmul.mubr.bf16.gmra.mxu0 %v1171
    %v1357 = vpop.f32.mrf.mxu0
    %v1358 = vadd.f32 %v1209, %v1357
    %v1359 = vpop.f32.mrf.mxu0
    %v1360 = vpop.f32.mrf.mxu0
    %v1361 = vadd.f32 %v1209, %v1360
    %v1362 = vpop.f32.mrf.mxu0
    %1363 = vmatprep.mubr.bf16.mxu0 0
    %1364 = vmatmul.mubr.bf16.gmra.mxu0 %v1172
    %v1365 = vpop.f32.mrf.mxu0
    %v1366 = vadd.f32 %v1209, %v1365
    %v1367 = vpop.f32.mrf.mxu0
    %v1368 = vpop.f32.mrf.mxu0
    %v1369 = vadd.f32 %v1209, %v1368
    %v1370 = vpop.f32.mrf.mxu0
    %1371 = vmatprep.mubr.bf16.mxu0 0
    %1372 = vmatmul.mubr.bf16.gmra.mxu0 %v1173
    %v1373 = vpop.f32.mrf.mxu0
    %v1374 = vadd.f32 %v1209, %v1373
    %v1375 = vpop.f32.mrf.mxu0
    %v1376 = vpop.f32.mrf.mxu0
    %v1377 = vadd.f32 %v1209, %v1376
    %v1378 = vpop.f32.mrf.mxu0
    %1379 = vmatprep.mubr.bf16.mxu0 0
    %1380 = vmatmul.mubr.bf16.gmra.mxu0 %v1174
    %v1381 = vpop.f32.mrf.mxu0
    %v1382 = vadd.f32 %v1209, %v1381
    %v1383 = vpop.f32.mrf.mxu0
    %v1384 = vpop.f32.mrf.mxu0
    %v1385 = vadd.f32 %v1209, %v1384
    %v1386 = vpop.f32.mrf.mxu0
    %1387 = vmatprep.mubr.bf16.mxu0 0
    %1388 = vmatmul.mubr.bf16.gmra.mxu0 %v1175
    %v1389 = vpop.f32.mrf.mxu0
    %v1390 = vadd.f32 %v1209, %v1389
    %v1391 = vpop.f32.mrf.mxu0
    %v1392 = vpop.f32.mrf.mxu0
    %v1393 = vadd.f32 %v1209, %v1392
    %v1394 = vpop.f32.mrf.mxu0
    %1395 = vmatprep.mubr.bf16.mxu0 0
    %1396 = vmatmul.mubr.bf16.gmra.mxu0 %v1176
    %v1397 = vpop.f32.mrf.mxu0
    %v1398 = vadd.f32 %v1209, %v1397
    %v1399 = vpop.f32.mrf.mxu0
    %v1400 = vpop.f32.mrf.mxu0
    %v1401 = vadd.f32 %v1209, %v1400
    %v1402 = vpop.f32.mrf.mxu0
    %1403 = vmatprep.mubr.bf16.mxu0 0
    %1404 = vmatmul.mubr.bf16.gmra.mxu0 %v1177
    %v1405 = vpop.f32.mrf.mxu0
    %v1406 = vadd.f32 %v1209, %v1405
    %v1407 = vpop.f32.mrf.mxu0
    %v1408 = vpop.f32.mrf.mxu0
    %v1409 = vadd.f32 %v1209, %v1408
    %v1410 = vpop.f32.mrf.mxu0
    %1411 = vmatprep.mubr.bf16.mxu0 0
    %1412 = vmatmul.mubr.bf16.gmra.mxu0 %v1178
    %v1413 = vpop.f32.mrf.mxu0
    %v1414 = vadd.f32 %v1209, %v1413
    %v1415 = vpop.f32.mrf.mxu0
    %v1416 = vpop.f32.mrf.mxu0
    %v1417 = vadd.f32 %v1209, %v1416
    %v1418 = vpop.f32.mrf.mxu0
    %1419 = vmatprep.mubr.bf16.mxu0 0
    %1420 = vmatmul.mubr.bf16.gmra.mxu0 %v1179
    %v1421 = vpop.f32.mrf.mxu0
    %v1422 = vadd.f32 %v1209, %v1421
    %v1423 = vpop.f32.mrf.mxu0
    %v1424 = vpop.f32.mrf.mxu0
    %v1425 = vadd.f32 %v1209, %v1424
    %v1426 = vpop.f32.mrf.mxu0
    %1427 = vmatprep.mubr.bf16.mxu0 0
    %1428 = vmatmul.mubr.bf16.gmra.mxu0 %v1180
    %v1429 = vpop.f32.mrf.mxu0
    %v1430 = vadd.f32 %v1209, %v1429
    %v1431 = vpop.f32.mrf.mxu0
    %v1432 = vpop.f32.mrf.mxu0
    %v1433 = vadd.f32 %v1209, %v1432
    %v1434 = vpop.f32.mrf.mxu0
    %1435 = vmatprep.mubr.bf16.mxu0 0
    %1436 = vmatmul.mubr.bf16.gmra.mxu0 %v1181
    %v1437 = vpop.f32.mrf.mxu0
    %v1438 = vadd.f32 %v1209, %v1437
    %v1439 = vpop.f32.mrf.mxu0
    %v1440 = vpop.f32.mrf.mxu0
    %v1441 = vadd.f32 %v1209, %v1440
    %v1442 = vpop.f32.mrf.mxu0
    %1443 = vmatprep.mubr.bf16.mxu0 0
    %1444 = vmatmul.mubr.bf16.gmra.mxu0 %v1182
    %v1445 = vpop.f32.mrf.mxu0
    %v1446 = vadd.f32 %v1209, %v1445
    %v1447 = vpop.f32.mrf.mxu0
    %v1448 = vpop.f32.mrf.mxu0
    %v1449 = vadd.f32 %v1209, %v1448
    %v1450 = vpop.f32.mrf.mxu0
    %1451 = vmatprep.mubr.bf16.mxu0 0
    %1452 = vmatmul.mubr.bf16.gmra.mxu0 %v1183
    %v1453 = vpop.f32.mrf.mxu0
    %v1454 = vadd.f32 %v1209, %v1453
    %v1455 = vpop.f32.mrf.mxu0
    %v1456 = vpop.f32.mrf.mxu0
    %v1457 = vadd.f32 %v1209, %v1456
    %v1458 = vpop.f32.mrf.mxu0
    %1459 = vmatprep.mubr.bf16.mxu0 0
    %1460 = vmatmul.mubr.bf16.gmra.mxu0 %v1184
    %v1461 = vpop.f32.mrf.mxu0
    %v1462 = vadd.f32 %v1209, %v1461
    %v1463 = vpop.f32.mrf.mxu0
    %v1464 = vpop.f32.mrf.mxu0
    %v1465 = vadd.f32 %v1209, %v1464
    %v1466 = vpop.f32.mrf.mxu0
    %1467 = vmatprep.mubr.bf16.mxu0 0
    %1468 = vmatmul.mubr.bf16.gmra.mxu0 %v1185
    %v1469 = vpop.f32.mrf.mxu0
    %v1470 = vadd.f32 %v1209, %v1469
    %v1471 = vpop.f32.mrf.mxu0
    %v1472 = vpop.f32.mrf.mxu0
    %v1473 = vadd.f32 %v1209, %v1472
    %v1474 = vpop.f32.mrf.mxu0
    %1475 = vmatprep.mubr.bf16.mxu0 0
    %1476 = vmatmul.mubr.bf16.gmra.mxu0 %v1186
    %v1477 = vpop.f32.mrf.mxu0
    %v1478 = vadd.f32 %v1209, %v1477
    %v1479 = vpop.f32.mrf.mxu0
    %v1480 = vpop.f32.mrf.mxu0
    %v1481 = vadd.f32 %v1209, %v1480
    %v1482 = vpop.f32.mrf.mxu0
    %1483 = vmatprep.mubr.bf16.mxu0 0
    %1484 = vmatmul.mubr.bf16.gmra.mxu0 %v1187
    %v1485 = vpop.f32.mrf.mxu0
    %v1486 = vadd.f32 %v1209, %v1485
    %v1487 = vpop.f32.mrf.mxu0
    %v1488 = vpop.f32.mrf.mxu0
    %v1489 = vadd.f32 %v1209, %v1488
    %v1490 = vpop.f32.mrf.mxu0
    %1491 = vdwg.mxu0
    %v1492 = vadd.f32 %v1294, %v69
    %v1493 = vadd.f32 %v1297, %v70
    %v1494 = vadd.f32 %v1302, %v71
    %v1495 = vadd.f32 %v1305, %v72
    %v1496 = vadd.f32 %v1310, %v73
    %v1497 = vadd.f32 %v1313, %v74
    %v1498 = vadd.f32 %v1318, %v75
    %v1499 = vadd.f32 %v1321, %v76
    %v1500 = vadd.f32 %v1326, %v77
    %v1501 = vadd.f32 %v1329, %v78
    %v1502 = vadd.f32 %v1334, %v79
    %v1503 = vadd.f32 %v1337, %v80
    %v1504 = vadd.f32 %v1342, %v81
    %v1505 = vadd.f32 %v1345, %v82
    %v1506 = vadd.f32 %v1350, %v83
    %v1507 = vadd.f32 %v1353, %v84
    %v1508 = vadd.f32 %v1358, %v85
    %v1509 = vadd.f32 %v1361, %v86
    %v1510 = vadd.f32 %v1366, %v87
    %v1511 = vadd.f32 %v1369, %v88
    %v1512 = vadd.f32 %v1374, %v89
    %v1513 = vadd.f32 %v1377, %v90
    %v1514 = vadd.f32 %v1382, %v91
    %v1515 = vadd.f32 %v1385, %v92
    %v1516 = vadd.f32 %v1390, %v93
    %v1517 = vadd.f32 %v1393, %v94
    %v1518 = vadd.f32 %v1398, %v95
    %v1519 = vadd.f32 %v1401, %v96
    %v1520 = vadd.f32 %v1406, %v97
    %v1521 = vadd.f32 %v1409, %v98
    %v1522 = vadd.f32 %v1414, %v99
    %v1523 = vadd.f32 %v1417, %v100
    %v1524 = vadd.f32 %v1422, %v101
    %v1525 = vadd.f32 %v1425, %v102
    %v1526 = vadd.f32 %v1430, %v103
    %v1527 = vadd.f32 %v1433, %v104
    %v1528 = vadd.f32 %v1438, %v105
    %v1529 = vadd.f32 %v1441, %v106
    %v1530 = vadd.f32 %v1446, %v107
    %v1531 = vadd.f32 %v1449, %v108
    %v1532 = vadd.f32 %v1454, %v109
    %v1533 = vadd.f32 %v1457, %v110
    %v1534 = vadd.f32 %v1462, %v111
    %v1535 = vadd.f32 %v1465, %v112
    %v1536 = vadd.f32 %v1470, %v113
    %v1537 = vadd.f32 %v1473, %v114
    %v1538 = vadd.f32 %v1478, %v115
    %v1539 = vadd.f32 %v1481, %v116
    %v1540 = vadd.f32 %v1486, %v117
    %v1541 = vadd.f32 %v1489, %v118
    %1542 = vst [vmem:[#allocation8] sm:$0xff] %v1492
    %1543 = vst [vmem:[#allocation8 + $0x8] sm:$0xff] %v1493
    %1544 = vst [vmem:[#allocation8 + $0x10] sm:$0xff] %v1494
    %1545 = vst [vmem:[#allocation8 + $0x18] sm:$0xff] %v1495
    %1546 = vst [vmem:[#allocation8 + $0x20] sm:$0xff] %v1496
    %1547 = vst [vmem:[#allocation8 + $0x28] sm:$0xff] %v1497
    %1548 = vst [vmem:[#allocation8 + $0x30] sm:$0xff] %v1498
    %1549 = vst [vmem:[#allocation8 + $0x38] sm:$0xff] %v1499
    %1550 = vst [vmem:[#allocation8 + $0x40] sm:$0xff] %v1500
    %1551 = vst [vmem:[#allocation8 + $0x48] sm:$0xff] %v1501
    %1552 = vst [vmem:[#allocation8 + $0x50] sm:$0xff] %v1502
    %1553 = vst [vmem:[#allocation8 + $0x58] sm:$0xff] %v1503
    %1554 = vst [vmem:[#allocation8 + $0x60] sm:$0xff] %v1504
    %1555 = vst [vmem:[#allocation8 + $0x68] sm:$0xff] %v1505
    %1556 = vst [vmem:[#allocation8 + $0x70] sm:$0xff] %v1506
    %1557 = vst [vmem:[#allocation8 + $0x78] sm:$0xff] %v1507
    %1558 = vst [vmem:[#allocation8 + $0x80] sm:$0xff] %v1508
    %1559 = vst [vmem:[#allocation8 + $0x88] sm:$0xff] %v1509
    %1560 = vst [vmem:[#allocation8 + $0x90] sm:$0xff] %v1510
    %1561 = vst [vmem:[#allocation8 + $0x98] sm:$0xff] %v1511
    %1562 = vst [vmem:[#allocation8 + $0xa0] sm:$0xff] %v1512
    %1563 = vst [vmem:[#allocation8 + $0xa8] sm:$0xff] %v1513
    %1564 = vst [vmem:[#allocation8 + $0xb0] sm:$0xff] %v1514
    %1565 = vst [vmem:[#allocation8 + $0xb8] sm:$0xff] %v1515
    %1566 = vst [vmem:[#allocation8 + $0xc0] sm:$0xff] %v1516
    %1567 = vst [vmem:[#allocation8 + $0xc8] sm:$0xff] %v1517
    %1568 = vst [vmem:[#allocation8 + $0xd0] sm:$0xff] %v1518
    %1569 = vst [vmem:[#allocation8 + $0xd8] sm:$0xff] %v1519
    %1570 = vst [vmem:[#allocation8 + $0xe0] sm:$0xff] %v1520
    %1571 = vst [vmem:[#allocation8 + $0xe8] sm:$0xff] %v1521
    %1572 = vst [vmem:[#allocation8 + $0xf0] sm:$0xff] %v1522
    %1573 = vst [vmem:[#allocation8 + $0xf8] sm:$0xff] %v1523
    %1574 = vst [vmem:[#allocation8 + $0x100] sm:$0xff] %v1524
    %1575 = vst [vmem:[#allocation8 + $0x108] sm:$0xff] %v1525
    %1576 = vst [vmem:[#allocation8 + $0x110] sm:$0xff] %v1526
    %1577 = vst [vmem:[#allocation8 + $0x118] sm:$0xff] %v1527
    %1578 = vst [vmem:[#allocation8 + $0x120] sm:$0xff] %v1528
    %1579 = vst [vmem:[#allocation8 + $0x128] sm:$0xff] %v1529
    %1580 = vst [vmem:[#allocation8 + $0x130] sm:$0xff] %v1530
    %1581 = vst [vmem:[#allocation8 + $0x138] sm:$0xff] %v1531
    %1582 = vst [vmem:[#allocation8 + $0x140] sm:$0xff] %v1532
    %1583 = vst [vmem:[#allocation8 + $0x148] sm:$0xff] %v1533
    %1584 = vst [vmem:[#allocation8 + $0x150] sm:$0xff] %v1534
    %1585 = vst [vmem:[#allocation8 + $0x158] sm:$0xff] %v1535
    %1586 = vst [vmem:[#allocation8 + $0x160] sm:$0xff] %v1536
    %1587 = vst [vmem:[#allocation8 + $0x168] sm:$0xff] %v1537
    %1588 = vst [vmem:[#allocation8 + $0x170] sm:$0xff] %v1538
    %1589 = vst [vmem:[#allocation8 + $0x178] sm:$0xff] %v1539
    %1590 = vst [vmem:[#allocation8 + $0x180] sm:$0xff] %v1540
    %1591 = vst [vmem:[#allocation8 + $0x188] sm:$0xff] %v1541
    // Predicated region
    $region42: #{tpu_custom_call.1} parent=1 // pred_check
      _
    $region43: #{tpu_custom_call.1} parent=1 // pred_check_branch
      %1593 = sbr.rel (0) target = $region45
    $region44: #{tpu_custom_call.1} parent=1 // pred_region
      %s1595 = ssub.s32 6400, 6400
      %1596 = vsyncadd [#allocation4], %s1595
      %s1597 = sshll.u32 [#allocation8], 4
      %s1598 = int_to_ptr.vmem [resolvable:$true] %s1597
      %1603 = dma.vmem_to_hbm [thread:$0]  %s1598, 6400, %s7, [#allocation4], 128, 128, 8
    $region45: #{tpu_custom_call.1} parent=1 // pred_fallthru
      _
    // Predicated region
    $region46: #{tpu_custom_call.1} parent=1 // pred_check
      _
    $region47: #{tpu_custom_call.1} parent=1 // pred_check_branch
      %1605 = sbr.rel (0) target = $region49
    $region48: #{tpu_custom_call.1} parent=1 // pred_region
      %1606 = dma.done [#allocation4], 6400
    $region49: #{tpu_custom_call.1} parent=1 // pred_fallthru
      _
    %1607 = vsyncpa [#allocation3], 1
    %1608 = vsyncpa [#allocation6], 1
    %1609 = vsyncpa [#allocation4], 1

// kernel: tpu_custom_call.1
$region0: #{tpu_custom_call.1}
  #allocation0 [shape = 'u32[]', space=smem, size = 0x4, offset = 0x4, fixed_abs, tag = 'smem constant byte address 0x4 - core index']
  #allocation1 [shape = 'u32[144,128]{1,0:T(1,128)}', space=vmem, size = 0x12000, scoped, tag = 'internal scratch']
  %s0 = inlined_call_operand.hbm [shape: f32[394,128], index: 0, kind: input, shape index: {}]
  %s1 = inlined_call_operand.vmem [shape: f32[1,128], index: 1, kind: input, shape index: {}]
  %s2 = inlined_call_operand.vmem [shape: f32[1,128], index: 2, kind: input, shape index: {}]
  %s3 = inlined_call_operand.hbm [shape: bf16[128,128], index: 3, kind: input, shape index: {}]
  %s4 = inlined_call_operand.vmem [shape: f32[1,128], index: 4, kind: input, shape index: {}]
  %s5 = inlined_call_operand.hbm [shape: bf16[128,128], index: 5, kind: input, shape index: {}]
  %s6 = inlined_call_operand.vmem [shape: f32[1,128], index: 6, kind: input, shape index: {}]
  %s7 = inlined_call_operand.hbm [shape: f32[394,128], index: 7, kind: output, shape index: {}]
  %s8 = sld [smem:[#allocation0]]
  $region50: #{tpu_custom_call.1} parent=0
    _
  %s10 = ssub.s32 1, %s8
  %s11 = scalar_select 0, %s10, %s8
  $region1: #{tpu_custom_call.1} parent=0
    #allocation2 [shape = 'u8[204800]{0}', space=vmem, size = 0x32000, scoped, tag = 'input window, operand 0, single buffered']
    #allocation3 [shape = 's32[1]{0}', space=sflag, size = 0x4, scoped, tag = 'scoped memory for tpu_custom_call.1']
    #allocation4 [shape = 's32[1]{0}', space=sflag, size = 0x4, scoped, tag = 'scoped memory for tpu_custom_call.1']
    #allocation5 [shape = 'u8[32768]{0}', space=vmem, size = 0x8000, scoped, tag = 'input window, operand 3, single buffered']
    #allocation6 [shape = 's32[1]{0}', space=sflag, size = 0x4, scoped, tag = 'scoped memory for tpu_custom_call.1']
    #allocation7 [shape = 'u8[32768]{0}', space=vmem, size = 0x8000, scoped, tag = 'input window, operand 5, single buffered']
    #allocation8 [shape = 'u8[204800]{0}', space=vmem, size = 0x32000, scoped, tag = 'output window, operand 0, single buffered']
    %12 = vsyncpa [#allocation3], 0
    %13 = vsyncpa [#allocation6], 0
    %14 = vsyncpa [#allocation4], 0
    // Predicated region
    $region2: #{tpu_custom_call.1} parent=1 // pred_check
      _
    $region3: #{tpu_custom_call.1} parent=1 // pred_check_branch
      %16 = sbr.rel (0) target = $region5
    $region4: #{tpu_custom_call.1} parent=1 // pred_region
      %s18 = ssub.s32 6400, 6400
      %19 = vsyncadd [#allocation3], %s18
      %s20 = sshll.u32 [#allocation2], 4
      %s21 = int_to_ptr.vmem [resolvable:$true] %s20
      %26 = dma.hbm_to_vmem [thread:$0]  %s0, 6400, %s21, [#allocation3], 128, 128, 8
    $region5: #{tpu_custom_call.1} parent=1 // pred_fallthru
      _
    // Predicated region
    $region6: #{tpu_custom_call.1} parent=1 // pred_check
      _
    $region7: #{tpu_custom_call.1} parent=1 // pred_check_branch
      %28 = sbr.rel (0) target = $region9
    $region8: #{tpu_custom_call.1} parent=1 // pred_region
      _
    $region9: #{tpu_custom_call.1} parent=1 // pred_fallthru
      _
    // Predicated region
    $region10: #{tpu_custom_call.1} parent=1 // pred_check
      _
    $region11: #{tpu_custom_call.1} parent=1 // pred_check_branch
      %30 = sbr.rel (0) target = $region13
    $region12: #{tpu_custom_call.1} parent=1 // pred_region
      _
    $region13: #{tpu_custom_call.1} parent=1 // pred_fallthru
      _
    // Predicated region
    $region14: #{tpu_custom_call.1} parent=1 // pred_check
      _
    $region15: #{tpu_custom_call.1} parent=1 // pred_check_branch
      %32 = sbr.rel (0) target = $region17
    $region16: #{tpu_custom_call.1} parent=1 // pred_region
      %s34 = ssub.s32 1024, 1024
      %35 = vsyncadd [#allocation6], %s34
      %s36 = sshll.u32 [#allocation5], 4
      %s37 = int_to_ptr.vmem [resolvable:$true] %s36
      %42 = dma.hbm_to_vmem [thread:$0]  %s3, 1024, %s37, [#allocation6], 64, 64, 4
    $region17: #{tpu_custom_call.1} parent=1 // pred_fallthru
      _
    // Predicated region
    $region18: #{tpu_custom_call.1} parent=1 // pred_check
      _
    $region19: #{tpu_custom_call.1} parent=1 // pred_check_branch
      %44 = sbr.rel (0) target = $region21
    $region20: #{tpu_custom_call.1} parent=1 // pred_region
      _
    $region21: #{tpu_custom_call.1} parent=1 // pred_fallthru
      _
    // Predicated region
    $region22: #{tpu_custom_call.1} parent=1 // pred_check
      _
    $region23: #{tpu_custom_call.1} parent=1 // pred_check_branch
      %46 = sbr.rel (0) target = $region25
    $region24: #{tpu_custom_call.1} parent=1 // pred_region
      %s48 = ssub.s32 1024, 1024
      %49 = vsyncadd [#allocation6], %s48
      %s50 = sshll.u32 [#allocation7], 4
      %s51 = int_to_ptr.vmem [resolvable:$true] %s50
      %56 = dma.hbm_to_vmem [thread:$0]  %s5, 1024, %s51, [#allocation6], 64, 64, 4
    $region25: #{tpu_custom_call.1} parent=1 // pred_fallthru
      _
    // Predicated region
    $region26: #{tpu_custom_call.1} parent=1 // pred_check
      _
    $region27: #{tpu_custom_call.1} parent=1 // pred_check_branch
      %58 = sbr.rel (0) target = $region29
    $region28: #{tpu_custom_call.1} parent=1 // pred_region
      _
    $region29: #{tpu_custom_call.1} parent=1 // pred_fallthru
      _
    // Predicated region
    $region30: #{tpu_custom_call.1} parent=1 // pred_check
      _
    $region31: #{tpu_custom_call.1} parent=1 // pred_check_branch
      %60 = sbr.rel (0) target = $region33
    $region32: #{tpu_custom_call.1} parent=1 // pred_region
      %61 = dma.done [#allocation3], 6400
    $region33: #{tpu_custom_call.1} parent=1 // pred_fallthru
      _
    // Predicated region
    $region34: #{tpu_custom_call.1} parent=1 // pred_check
      _
    $region35: #{tpu_custom_call.1} parent=1 // pred_check_branch
      %63 = sbr.rel (0) target = $region37
    $region36: #{tpu_custom_call.1} parent=1 // pred_region
      %64 = dma.done [#allocation6], 1024
    $region37: #{tpu_custom_call.1} parent=1 // pred_fallthru
      _
    // Predicated region
    $region38: #{tpu_custom_call.1} parent=1 // pred_check
      _
    $region39: #{tpu_custom_call.1} parent=1 // pred_check_branch
      %66 = sbr.rel (0) target = $region41
    $region40: #{tpu_custom_call.1} parent=1 // pred_region
      %67 = dma.done [#allocation6], 1024
    $region41: #{tpu_custom_call.1} parent=1 // pred_fallthru
      _
    %v69 = vld [vmem:[#allocation2] sm:$0xff]
    %v70 = vld [vmem:[#allocation2 + $0x8] sm:$0xff]
    %v71 = vld [vmem:[#allocation2 + $0x10] sm:$0xff]
    %v72 = vld [vmem:[#allocation2 + $0x18] sm:$0xff]
    %v73 = vld [vmem:[#allocation2 + $0x20] sm:$0xff]
    %v74 = vld [vmem:[#allocation2 + $0x28] sm:$0xff]
    %v75 = vld [vmem:[#allocation2 + $0x30] sm:$0xff]
    %v76 = vld [vmem:[#allocation2 + $0x38] sm:$0xff]
    %v77 = vld [vmem:[#allocation2 + $0x40] sm:$0xff]
    %v78 = vld [vmem:[#allocation2 + $0x48] sm:$0xff]
    %v79 = vld [vmem:[#allocation2 + $0x50] sm:$0xff]
    %v80 = vld [vmem:[#allocation2 + $0x58] sm:$0xff]
    %v81 = vld [vmem:[#allocation2 + $0x60] sm:$0xff]
    %v82 = vld [vmem:[#allocation2 + $0x68] sm:$0xff]
    %v83 = vld [vmem:[#allocation2 + $0x70] sm:$0xff]
    %v84 = vld [vmem:[#allocation2 + $0x78] sm:$0xff]
    %v85 = vld [vmem:[#allocation2 + $0x80] sm:$0xff]
    %v86 = vld [vmem:[#allocation2 + $0x88] sm:$0xff]
    %v87 = vld [vmem:[#allocation2 + $0x90] sm:$0xff]
    %v88 = vld [vmem:[#allocation2 + $0x98] sm:$0xff]
    %v89 = vld [vmem:[#allocation2 + $0xa0] sm:$0xff]
    %v90 = vld [vmem:[#allocation2 + $0xa8] sm:$0xff]
    %v91 = vld [vmem:[#allocation2 + $0xb0] sm:$0xff]
    %v92 = vld [vmem:[#allocation2 + $0xb8] sm:$0xff]
    %v93 = vld [vmem:[#allocation2 + $0xc0] sm:$0xff]
    %v94 = vld [vmem:[#allocation2 + $0xc8] sm:$0xff]
    %v95 = vld [vmem:[#allocation2 + $0xd0] sm:$0xff]
    %v96 = vld [vmem:[#allocation2 + $0xd8] sm:$0xff]
    %v97 = vld [vmem:[#allocation2 + $0xe0] sm:$0xff]
    %v98 = vld [vmem:[#allocation2 + $0xe8] sm:$0xff]
    %v99 = vld [vmem:[#allocation2 + $0xf0] sm:$0xff]
    %v100 = vld [vmem:[#allocation2 + $0xf8] sm:$0xff]
    %v101 = vld [vmem:[#allocation2 + $0x100] sm:$0xff]
    %v102 = vld [vmem:[#allocation2 + $0x108] sm:$0xff]
    %v103 = vld [vmem:[#allocation2 + $0x110] sm:$0xff]
    %v104 = vld [vmem:[#allocation2 + $0x118] sm:$0xff]
    %v105 = vld [vmem:[#allocation2 + $0x120] sm:$0xff]
    %v106 = vld [vmem:[#allocation2 + $0x128] sm:$0xff]
    %v107 = vld [vmem:[#allocation2 + $0x130] sm:$0xff]
    %v108 = vld [vmem:[#allocation2 + $0x138] sm:$0xff]
    %v109 = vld [vmem:[#allocation2 + $0x140] sm:$0xff]
    %v110 = vld [vmem:[#allocation2 + $0x148] sm:$0xff]
    %v111 = vld [vmem:[#allocation2 + $0x150] sm:$0xff]
    %v112 = vld [vmem:[#allocation2 + $0x158] sm:$0xff]
    %v113 = vld [vmem:[#allocation2 + $0x160] sm:$0xff]
    %v114 = vld [vmem:[#allocation2 + $0x168] sm:$0xff]
    %v115 = vld [vmem:[#allocation2 + $0x170] sm:$0xff]
    %v116 = vld [vmem:[#allocation2 + $0x178] sm:$0xff]
    %v117 = vld [vmem:[#allocation2 + $0x180] sm:$0xff]
    %v118 = vld [vmem:[#allocation2 + $0x188] sm:$0xff]
    %119 = vadd.xlane.f32.xlu0 %v69
    %v120 = vpop.xlane.xlu0 %119
    %121 = vadd.xlane.f32.xlu0 %v70
    %v122 = vpop.xlane.xlu0 %121
    %123 = vadd.xlane.f32.xlu0 %v71
    %v124 = vpop.xlane.xlu0 %123
    %125 = vadd.xlane.f32.xlu0 %v72
    %v126 = vpop.xlane.xlu0 %125
    %127 = vadd.xlane.f32.xlu0 %v73
    %v128 = vpop.xlane.xlu0 %127
    %129 = vadd.xlane.f32.xlu0 %v74
    %v130 = vpop.xlane.xlu0 %129
    %131 = vadd.xlane.f32.xlu0 %v75
    %v132 = vpop.xlane.xlu0 %131
    %133 = vadd.xlane.f32.xlu0 %v76
    %v134 = vpop.xlane.xlu0 %133
    %135 = vadd.xlane.f32.xlu0 %v77
    %v136 = vpop.xlane.xlu0 %135
    %137 = vadd.xlane.f32.xlu0 %v78
    %v138 = vpop.xlane.xlu0 %137
    %139 = vadd.xlane.f32.xlu0 %v79
    %v140 = vpop.xlane.xlu0 %139
    %141 = vadd.xlane.f32.xlu0 %v80
    %v142 = vpop.xlane.xlu0 %141
    %143 = vadd.xlane.f32.xlu0 %v81
    %v144 = vpop.xlane.xlu0 %143
    %145 = vadd.xlane.f32.xlu0 %v82
    %v146 = vpop.xlane.xlu0 %145
    %147 = vadd.xlane.f32.xlu0 %v83
    %v148 = vpop.xlane.xlu0 %147
    %149 = vadd.xlane.f32.xlu0 %v84
    %v150 = vpop.xlane.xlu0 %149
    %151 = vadd.xlane.f32.xlu0 %v85
    %v152 = vpop.xlane.xlu0 %151
    %153 = vadd.xlane.f32.xlu0 %v86
    %v154 = vpop.xlane.xlu0 %153
    %155 = vadd.xlane.f32.xlu0 %v87
    %v156 = vpop.xlane.xlu0 %155
    %157 = vadd.xlane.f32.xlu0 %v88
    %v158 = vpop.xlane.xlu0 %157
    %159 = vadd.xlane.f32.xlu0 %v89
    %v160 = vpop.xlane.xlu0 %159
    %161 = vadd.xlane.f32.xlu0 %v90
    %v162 = vpop.xlane.xlu0 %161
    %163 = vadd.xlane.f32.xlu0 %v91
    %v164 = vpop.xlane.xlu0 %163
    %165 = vadd.xlane.f32.xlu0 %v92
    %v166 = vpop.xlane.xlu0 %165
    %167 = vadd.xlane.f32.xlu0 %v93
    %v168 = vpop.xlane.xlu0 %167
    %169 = vadd.xlane.f32.xlu0 %v94
    %v170 = vpop.xlane.xlu0 %169
    %171 = vadd.xlane.f32.xlu0 %v95
    %v172 = vpop.xlane.xlu0 %171
    %173 = vadd.xlane.f32.xlu0 %v96
    %v174 = vpop.xlane.xlu0 %173
    %175 = vadd.xlane.f32.xlu0 %v97
    %v176 = vpop.xlane.xlu0 %175
    %177 = vadd.xlane.f32.xlu0 %v98
    %v178 = vpop.xlane.xlu0 %177
    %179 = vadd.xlane.f32.xlu0 %v99
    %v180 = vpop.xlane.xlu0 %179
    %181 = vadd.xlane.f32.xlu0 %v100
    %v182 = vpop.xlane.xlu0 %181
    %183 = vadd.xlane.f32.xlu0 %v101
    %v184 = vpop.xlane.xlu0 %183
    %185 = vadd.xlane.f32.xlu0 %v102
    %v186 = vpop.xlane.xlu0 %185
    %187 = vadd.xlane.f32.xlu0 %v103
    %v188 = vpop.xlane.xlu0 %187
    %189 = vadd.xlane.f32.xlu0 %v104
    %v190 = vpop.xlane.xlu0 %189
    %191 = vadd.xlane.f32.xlu0 %v105
    %v192 = vpop.xlane.xlu0 %191
    %193 = vadd.xlane.f32.xlu0 %v106
    %v194 = vpop.xlane.xlu0 %193
    %195 = vadd.xlane.f32.xlu0 %v107
    %v196 = vpop.xlane.xlu0 %195
    %197 = vadd.xlane.f32.xlu0 %v108
    %v198 = vpop.xlane.xlu0 %197
    %199 = vadd.xlane.f32.xlu0 %v109
    %v200 = vpop.xlane.xlu0 %199
    %201 = vadd.xlane.f32.xlu0 %v110
    %v202 = vpop.xlane.xlu0 %201
    %203 = vadd.xlane.f32.xlu0 %v111
    %v204 = vpop.xlane.xlu0 %203
    %205 = vadd.xlane.f32.xlu0 %v112
    %v206 = vpop.xlane.xlu0 %205
    %207 = vadd.xlane.f32.xlu0 %v113
    %v208 = vpop.xlane.xlu0 %207
    %209 = vadd.xlane.f32.xlu0 %v114
    %v210 = vpop.xlane.xlu0 %209
    %211 = vadd.xlane.f32.xlu0 %v115
    %v212 = vpop.xlane.xlu0 %211
    %213 = vadd.xlane.f32.xlu0 %v116
    %v214 = vpop.xlane.xlu0 %213
    %215 = vadd.xlane.f32.xlu0 %v117
    %v216 = vpop.xlane.xlu0 %215
    %217 = vadd.xlane.f32.xlu0 %v118
    %v218 = vpop.xlane.xlu0 %217
    %v219 = vrcp.pop 128.0
    %v220 = vmul.f32 %v120, %v219
    %v221 = vmul.f32 %v122, %v219
    %v222 = vmul.f32 %v124, %v219
    %v223 = vmul.f32 %v126, %v219
    %v224 = vmul.f32 %v128, %v219
    %v225 = vmul.f32 %v130, %v219
    %v226 = vmul.f32 %v132, %v219
    %v227 = vmul.f32 %v134, %v219
    %v228 = vmul.f32 %v136, %v219
    %v229 = vmul.f32 %v138, %v219
    %v230 = vmul.f32 %v140, %v219
    %v231 = vmul.f32 %v142, %v219
    %v232 = vmul.f32 %v144, %v219
    %v233 = vmul.f32 %v146, %v219
    %v234 = vmul.f32 %v148, %v219
    %v235 = vmul.f32 %v150, %v219
    %v236 = vmul.f32 %v152, %v219
    %v237 = vmul.f32 %v154, %v219
    %v238 = vmul.f32 %v156, %v219
    %v239 = vmul.f32 %v158, %v219
    %v240 = vmul.f32 %v160, %v219
    %v241 = vmul.f32 %v162, %v219
    %v242 = vmul.f32 %v164, %v219
    %v243 = vmul.f32 %v166, %v219
    %v244 = vmul.f32 %v168, %v219
    %v245 = vmul.f32 %v170, %v219
    %v246 = vmul.f32 %v172, %v219
    %v247 = vmul.f32 %v174, %v219
    %v248 = vmul.f32 %v176, %v219
    %v249 = vmul.f32 %v178, %v219
    %v250 = vmul.f32 %v180, %v219
    %v251 = vmul.f32 %v182, %v219
    %v252 = vmul.f32 %v184, %v219
    %v253 = vmul.f32 %v186, %v219
    %v254 = vmul.f32 %v188, %v219
    %v255 = vmul.f32 %v190, %v219
    %v256 = vmul.f32 %v192, %v219
    %v257 = vmul.f32 %v194, %v219
    %v258 = vmul.f32 %v196, %v219
    %v259 = vmul.f32 %v198, %v219
    %v260 = vmul.f32 %v200, %v219
    %v261 = vmul.f32 %v202, %v219
    %v262 = vmul.f32 %v204, %v219
    %v263 = vmul.f32 %v206, %v219
    %v264 = vmul.f32 %v208, %v219
    %v265 = vmul.f32 %v210, %v219
    %v266 = vmul.f32 %v212, %v219
    %v267 = vmul.f32 %v214, %v219
    %v268 = vmul.f32 %v216, %v219
    %v269 = vmul.f32 %v218, %v219
    %v270 = vsub.f32 %v69, %v220
    %v271 = vsub.f32 %v70, %v221
    %v272 = vsub.f32 %v71, %v222
    %v273 = vsub.f32 %v72, %v223
    %v274 = vsub.f32 %v73, %v224
    %v275 = vsub.f32 %v74, %v225
    %v276 = vsub.f32 %v75, %v226
    %v277 = vsub.f32 %v76, %v227
    %v278 = vsub.f32 %v77, %v228
    %v279 = vsub.f32 %v78, %v229
    %v280 = vsub.f32 %v79, %v230
    %v281 = vsub.f32 %v80, %v231
    %v282 = vsub.f32 %v81, %v232
    %v283 = vsub.f32 %v82, %v233
    %v284 = vsub.f32 %v83, %v234
    %v285 = vsub.f32 %v84, %v235
    %v286 = vsub.f32 %v85, %v236
    %v287 = vsub.f32 %v86, %v237
    %v288 = vsub.f32 %v87, %v238
    %v289 = vsub.f32 %v88, %v239
    %v290 = vsub.f32 %v89, %v240
    %v291 = vsub.f32 %v90, %v241
    %v292 = vsub.f32 %v91, %v242
    %v293 = vsub.f32 %v92, %v243
    %v294 = vsub.f32 %v93, %v244
    %v295 = vsub.f32 %v94, %v245
    %v296 = vsub.f32 %v95, %v246
    %v297 = vsub.f32 %v96, %v247
    %v298 = vsub.f32 %v97, %v248
    %v299 = vsub.f32 %v98, %v249
    %v300 = vsub.f32 %v99, %v250
    %v301 = vsub.f32 %v100, %v251
    %v302 = vsub.f32 %v101, %v252
    %v303 = vsub.f32 %v102, %v253
    %v304 = vsub.f32 %v103, %v254
    %v305 = vsub.f32 %v104, %v255
    %v306 = vsub.f32 %v105, %v256
    %v307 = vsub.f32 %v106, %v257
    %v308 = vsub.f32 %v107, %v258
    %v309 = vsub.f32 %v108, %v259
    %v310 = vsub.f32 %v109, %v260
    %v311 = vsub.f32 %v110, %v261
    %v312 = vsub.f32 %v111, %v262
    %v313 = vsub.f32 %v112, %v263
    %v314 = vsub.f32 %v113, %v264
    %v315 = vsub.f32 %v114, %v265
    %v316 = vsub.f32 %v115, %v266
    %v317 = vsub.f32 %v116, %v267
    %v318 = vsub.f32 %v117, %v268
    %v319 = vsub.f32 %v118, %v269
    %v320 = vmul.f32 %v270, %v270
    %v321 = vmul.f32 %v271, %v271
    %v322 = vmul.f32 %v272, %v272
    %v323 = vmul.f32 %v273, %v273
    %v324 = vmul.f32 %v274, %v274
    %v325 = vmul.f32 %v275, %v275
    %v326 = vmul.f32 %v276, %v276
    %v327 = vmul.f32 %v277, %v277
    %v328 = vmul.f32 %v278, %v278
    %v329 = vmul.f32 %v279, %v279
    %v330 = vmul.f32 %v280, %v280
    %v331 = vmul.f32 %v281, %v281
    %v332 = vmul.f32 %v282, %v282
    %v333 = vmul.f32 %v283, %v283
    %v334 = vmul.f32 %v284, %v284
    %v335 = vmul.f32 %v285, %v285
    %v336 = vmul.f32 %v286, %v286
    %v337 = vmul.f32 %v287, %v287
    %v338 = vmul.f32 %v288, %v288
    %v339 = vmul.f32 %v289, %v289
    %v340 = vmul.f32 %v290, %v290
    %v341 = vmul.f32 %v291, %v291
    %v342 = vmul.f32 %v292, %v292
    %v343 = vmul.f32 %v293, %v293
    %v344 = vmul.f32 %v294, %v294
    %v345 = vmul.f32 %v295, %v295
    %v346 = vmul.f32 %v296, %v296
    %v347 = vmul.f32 %v297, %v297
    %v348 = vmul.f32 %v298, %v298
    %v349 = vmul.f32 %v299, %v299
    %v350 = vmul.f32 %v300, %v300
    %v351 = vmul.f32 %v301, %v301
    %v352 = vmul.f32 %v302, %v302
    %v353 = vmul.f32 %v303, %v303
    %v354 = vmul.f32 %v304, %v304
    %v355 = vmul.f32 %v305, %v305
    %v356 = vmul.f32 %v306, %v306
    %v357 = vmul.f32 %v307, %v307
    %v358 = vmul.f32 %v308, %v308
    %v359 = vmul.f32 %v309, %v309
    %v360 = vmul.f32 %v310, %v310
    %v361 = vmul.f32 %v311, %v311
    %v362 = vmul.f32 %v312, %v312
    %v363 = vmul.f32 %v313, %v313
    %v364 = vmul.f32 %v314, %v314
    %v365 = vmul.f32 %v315, %v315
    %v366 = vmul.f32 %v316, %v316
    %v367 = vmul.f32 %v317, %v317
    %v368 = vmul.f32 %v318, %v318
    %v369 = vmul.f32 %v319, %v319
    %370 = vadd.xlane.f32.xlu0 %v320
    %v371 = vpop.xlane.xlu0 %370
    %372 = vadd.xlane.f32.xlu0 %v321
    %v373 = vpop.xlane.xlu0 %372
    %374 = vadd.xlane.f32.xlu0 %v322
    %v375 = vpop.xlane.xlu0 %374
    %376 = vadd.xlane.f32.xlu0 %v323
    %v377 = vpop.xlane.xlu0 %376
    %378 = vadd.xlane.f32.xlu0 %v324
    %v379 = vpop.xlane.xlu0 %378
    %380 = vadd.xlane.f32.xlu0 %v325
    %v381 = vpop.xlane.xlu0 %380
    %382 = vadd.xlane.f32.xlu0 %v326
    %v383 = vpop.xlane.xlu0 %382
    %384 = vadd.xlane.f32.xlu0 %v327
    %v385 = vpop.xlane.xlu0 %384
    %386 = vadd.xlane.f32.xlu0 %v328
    %v387 = vpop.xlane.xlu0 %386
    %388 = vadd.xlane.f32.xlu0 %v329
    %v389 = vpop.xlane.xlu0 %388
    %390 = vadd.xlane.f32.xlu0 %v330
    %v391 = vpop.xlane.xlu0 %390
    %392 = vadd.xlane.f32.xlu0 %v331
    %v393 = vpop.xlane.xlu0 %392
    %394 = vadd.xlane.f32.xlu0 %v332
    %v395 = vpop.xlane.xlu0 %394
    %396 = vadd.xlane.f32.xlu0 %v333
    %v397 = vpop.xlane.xlu0 %396
    %398 = vadd.xlane.f32.xlu0 %v334
    %v399 = vpop.xlane.xlu0 %398
    %400 = vadd.xlane.f32.xlu0 %v335
    %v401 = vpop.xlane.xlu0 %400
    %402 = vadd.xlane.f32.xlu0 %v336
    %v403 = vpop.xlane.xlu0 %402
    %404 = vadd.xlane.f32.xlu0 %v337
    %v405 = vpop.xlane.xlu0 %404
    %406 = vadd.xlane.f32.xlu0 %v338
    %v407 = vpop.xlane.xlu0 %406
    %408 = vadd.xlane.f32.xlu0 %v339
    %v409 = vpop.xlane.xlu0 %408
    %410 = vadd.xlane.f32.xlu0 %v340
    %v411 = vpop.xlane.xlu0 %410
    %412 = vadd.xlane.f32.xlu0 %v341
    %v413 = vpop.xlane.xlu0 %412
    %414 = vadd.xlane.f32.xlu0 %v342
    %v415 = vpop.xlane.xlu0 %414
    %416 = vadd.xlane.f32.xlu0 %v343
    %v417 = vpop.xlane.xlu0 %416
    %418 = vadd.xlane.f32.xlu0 %v344
    %v419 = vpop.xlane.xlu0 %418
    %420 = vadd.xlane.f32.xlu0 %v345
    %v421 = vpop.xlane.xlu0 %420
    %422 = vadd.xlane.f32.xlu0 %v346
    %v423 = vpop.xlane.xlu0 %422
    %424 = vadd.xlane.f32.xlu0 %v347
    %v425 = vpop.xlane.xlu0 %424
    %426 = vadd.xlane.f32.xlu0 %v348
    %v427 = vpop.xlane.xlu0 %426
    %428 = vadd.xlane.f32.xlu0 %v349
    %v429 = vpop.xlane.xlu0 %428
    %430 = vadd.xlane.f32.xlu0 %v350
    %v431 = vpop.xlane.xlu0 %430
    %432 = vadd.xlane.f32.xlu0 %v351
    %v433 = vpop.xlane.xlu0 %432
    %434 = vadd.xlane.f32.xlu0 %v352
    %v435 = vpop.xlane.xlu0 %434
    %436 = vadd.xlane.f32.xlu0 %v353
    %v437 = vpop.xlane.xlu0 %436
    %438 = vadd.xlane.f32.xlu0 %v354
    %v439 = vpop.xlane.xlu0 %438
    %440 = vadd.xlane.f32.xlu0 %v355
    %v441 = vpop.xlane.xlu0 %440
    %442 = vadd.xlane.f32.xlu0 %v356
    %v443 = vpop.xlane.xlu0 %442
    %444 = vadd.xlane.f32.xlu0 %v357
    %v445 = vpop.xlane.xlu0 %444
    %446 = vadd.xlane.f32.xlu0 %v358
    %v447 = vpop.xlane.xlu0 %446
    %448 = vadd.xlane.f32.xlu0 %v359
    %v449 = vpop.xlane.xlu0 %448
    %450 = vadd.xlane.f32.xlu0 %v360
    %v451 = vpop.xlane.xlu0 %450
    %452 = vadd.xlane.f32.xlu0 %v361
    %v453 = vpop.xlane.xlu0 %452
    %454 = vadd.xlane.f32.xlu0 %v362
    %v455 = vpop.xlane.xlu0 %454
    %456 = vadd.xlane.f32.xlu0 %v363
    %v457 = vpop.xlane.xlu0 %456
    %458 = vadd.xlane.f32.xlu0 %v364
    %v459 = vpop.xlane.xlu0 %458
    %460 = vadd.xlane.f32.xlu0 %v365
    %v461 = vpop.xlane.xlu0 %460
    %462 = vadd.xlane.f32.xlu0 %v366
    %v463 = vpop.xlane.xlu0 %462
    %464 = vadd.xlane.f32.xlu0 %v367
    %v465 = vpop.xlane.xlu0 %464
    %466 = vadd.xlane.f32.xlu0 %v368
    %v467 = vpop.xlane.xlu0 %466
    %468 = vadd.xlane.f32.xlu0 %v369
    %v469 = vpop.xlane.xlu0 %468
    %v470 = vmul.f32 %v371, %v219
    %v471 = vmul.f32 %v373, %v219
    %v472 = vmul.f32 %v375, %v219
    %v473 = vmul.f32 %v377, %v219
    %v474 = vmul.f32 %v379, %v219
    %v475 = vmul.f32 %v381, %v219
    %v476 = vmul.f32 %v383, %v219
    %v477 = vmul.f32 %v385, %v219
    %v478 = vmul.f32 %v387, %v219
    %v479 = vmul.f32 %v389, %v219
    %v480 = vmul.f32 %v391, %v219
    %v481 = vmul.f32 %v393, %v219
    %v482 = vmul.f32 %v395, %v219
    %v483 = vmul.f32 %v397, %v219
    %v484 = vmul.f32 %v399, %v219
    %v485 = vmul.f32 %v401, %v219
    %v486 = vmul.f32 %v403, %v219
    %v487 = vmul.f32 %v405, %v219
    %v488 = vmul.f32 %v407, %v219
    %v489 = vmul.f32 %v409, %v219
    %v490 = vmul.f32 %v411, %v219
    %v491 = vmul.f32 %v413, %v219
    %v492 = vmul.f32 %v415, %v219
    %v493 = vmul.f32 %v417, %v219
    %v494 = vmul.f32 %v419, %v219
    %v495 = vmul.f32 %v421, %v219
    %v496 = vmul.f32 %v423, %v219
    %v497 = vmul.f32 %v425, %v219
    %v498 = vmul.f32 %v427, %v219
    %v499 = vmul.f32 %v429, %v219
    %v500 = vmul.f32 %v431, %v219
    %v501 = vmul.f32 %v433, %v219
    %v502 = vmul.f32 %v435, %v219
    %v503 = vmul.f32 %v437, %v219
    %v504 = vmul.f32 %v439, %v219
    %v505 = vmul.f32 %v441, %v219
    %v506 = vmul.f32 %v443, %v219
    %v507 = vmul.f32 %v445, %v219
    %v508 = vmul.f32 %v447, %v219
    %v509 = vmul.f32 %v449, %v219
    %v510 = vmul.f32 %v451, %v219
    %v511 = vmul.f32 %v453, %v219
    %v512 = vmul.f32 %v455, %v219
    %v513 = vmul.f32 %v457, %v219
    %v514 = vmul.f32 %v459, %v219
    %v515 = vmul.f32 %v461, %v219
    %v516 = vmul.f32 %v463, %v219
    %v517 = vmul.f32 %v465, %v219
    %v518 = vmul.f32 %v467, %v219
    %v519 = vmul.f32 %v469, %v219
    %v520 = vadd.f32 %v470, 1e-05
    %v521 = vadd.f32 %v471, 1e-05
    %v522 = vadd.f32 %v472, 1e-05
    %v523 = vadd.f32 %v473, 1e-05
    %v524 = vadd.f32 %v474, 1e-05
    %v525 = vadd.f32 %v475, 1e-05
    %v526 = vadd.f32 %v476, 1e-05
    %v527 = vadd.f32 %v477, 1e-05
    %v528 = vadd.f32 %v478, 1e-05
    %v529 = vadd.f32 %v479, 1e-05
    %v530 = vadd.f32 %v480, 1e-05
    %v531 = vadd.f32 %v481, 1e-05
    %v532 = vadd.f32 %v482, 1e-05
    %v533 = vadd.f32 %v483, 1e-05
    %v534 = vadd.f32 %v484, 1e-05
    %v535 = vadd.f32 %v485, 1e-05
    %v536 = vadd.f32 %v486, 1e-05
    %v537 = vadd.f32 %v487, 1e-05
    %v538 = vadd.f32 %v488, 1e-05
    %v539 = vadd.f32 %v489, 1e-05
    %v540 = vadd.f32 %v490, 1e-05
    %v541 = vadd.f32 %v491, 1e-05
    %v542 = vadd.f32 %v492, 1e-05
    %v543 = vadd.f32 %v493, 1e-05
    %v544 = vadd.f32 %v494, 1e-05
    %v545 = vadd.f32 %v495, 1e-05
    %v546 = vadd.f32 %v496, 1e-05
    %v547 = vadd.f32 %v497, 1e-05
    %v548 = vadd.f32 %v498, 1e-05
    %v549 = vadd.f32 %v499, 1e-05
    %v550 = vadd.f32 %v500, 1e-05
    %v551 = vadd.f32 %v501, 1e-05
    %v552 = vadd.f32 %v502, 1e-05
    %v553 = vadd.f32 %v503, 1e-05
    %v554 = vadd.f32 %v504, 1e-05
    %v555 = vadd.f32 %v505, 1e-05
    %v556 = vadd.f32 %v506, 1e-05
    %v557 = vadd.f32 %v507, 1e-05
    %v558 = vadd.f32 %v508, 1e-05
    %v559 = vadd.f32 %v509, 1e-05
    %v560 = vadd.f32 %v510, 1e-05
    %v561 = vadd.f32 %v511, 1e-05
    %v562 = vadd.f32 %v512, 1e-05
    %v563 = vadd.f32 %v513, 1e-05
    %v564 = vadd.f32 %v514, 1e-05
    %v565 = vadd.f32 %v515, 1e-05
    %v566 = vadd.f32 %v516, 1e-05
    %v567 = vadd.f32 %v517, 1e-05
    %v568 = vadd.f32 %v518, 1e-05
    %v569 = vadd.f32 %v519, 1e-05
    %v570 = vrsqrt.pop %v520
    %v571 = vrsqrt.pop %v521
    %v572 = vrsqrt.pop %v522
    %v573 = vrsqrt.pop %v523
    %v574 = vrsqrt.pop %v524
    %v575 = vrsqrt.pop %v525
    %v576 = vrsqrt.pop %v526
    %v577 = vrsqrt.pop %v527
    %v578 = vrsqrt.pop %v528
    %v579 = vrsqrt.pop %v529
    %v580 = vrsqrt.pop %v530
    %v581 = vrsqrt.pop %v531
    %v582 = vrsqrt.pop %v532
    %v583 = vrsqrt.pop %v533
    %v584 = vrsqrt.pop %v534
    %v585 = vrsqrt.pop %v535
    %v586 = vrsqrt.pop %v536
    %v587 = vrsqrt.pop %v537
    %v588 = vrsqrt.pop %v538
    %v589 = vrsqrt.pop %v539
    %v590 = vrsqrt.pop %v540
    %v591 = vrsqrt.pop %v541
    %v592 = vrsqrt.pop %v542
    %v593 = vrsqrt.pop %v543
    %v594 = vrsqrt.pop %v544
    %v595 = vrsqrt.pop %v545
    %v596 = vrsqrt.pop %v546
    %v597 = vrsqrt.pop %v547
    %v598 = vrsqrt.pop %v548
    %v599 = vrsqrt.pop %v549
    %v600 = vrsqrt.pop %v550
    %v601 = vrsqrt.pop %v551
    %v602 = vrsqrt.pop %v552
    %v603 = vrsqrt.pop %v553
    %v604 = vrsqrt.pop %v554
    %v605 = vrsqrt.pop %v555
    %v606 = vrsqrt.pop %v556
    %v607 = vrsqrt.pop %v557
    %v608 = vrsqrt.pop %v558
    %v609 = vrsqrt.pop %v559
    %v610 = vrsqrt.pop %v560
    %v611 = vrsqrt.pop %v561
    %v612 = vrsqrt.pop %v562
    %v613 = vrsqrt.pop %v563
    %v614 = vrsqrt.pop %v564
    %v615 = vrsqrt.pop %v565
    %v616 = vrsqrt.pop %v566
    %v617 = vrsqrt.pop %v567
    %v618 = vrsqrt.pop %v568
    %v619 = vrsqrt.pop %v569
    %v620 = vmul.f32 %v270, %v570
    %v621 = vmul.f32 %v271, %v571
    %v622 = vmul.f32 %v272, %v572
    %v623 = vmul.f32 %v273, %v573
    %v624 = vmul.f32 %v274, %v574
    %v625 = vmul.f32 %v275, %v575
    %v626 = vmul.f32 %v276, %v576
    %v627 = vmul.f32 %v277, %v577
    %v628 = vmul.f32 %v278, %v578
    %v629 = vmul.f32 %v279, %v579
    %v630 = vmul.f32 %v280, %v580
    %v631 = vmul.f32 %v281, %v581
    %v632 = vmul.f32 %v282, %v582
    %v633 = vmul.f32 %v283, %v583
    %v634 = vmul.f32 %v284, %v584
    %v635 = vmul.f32 %v285, %v585
    %v636 = vmul.f32 %v286, %v586
    %v637 = vmul.f32 %v287, %v587
    %v638 = vmul.f32 %v288, %v588
    %v639 = vmul.f32 %v289, %v589
    %v640 = vmul.f32 %v290, %v590
    %v641 = vmul.f32 %v291, %v591
    %v642 = vmul.f32 %v292, %v592
    %v643 = vmul.f32 %v293, %v593
    %v644 = vmul.f32 %v294, %v594
    %v645 = vmul.f32 %v295, %v595
    %v646 = vmul.f32 %v296, %v596
    %v647 = vmul.f32 %v297, %v597
    %v648 = vmul.f32 %v298, %v598
    %v649 = vmul.f32 %v299, %v599
    %v650 = vmul.f32 %v300, %v600
    %v651 = vmul.f32 %v301, %v601
    %v652 = vmul.f32 %v302, %v602
    %v653 = vmul.f32 %v303, %v603
    %v654 = vmul.f32 %v304, %v604
    %v655 = vmul.f32 %v305, %v605
    %v656 = vmul.f32 %v306, %v606
    %v657 = vmul.f32 %v307, %v607
    %v658 = vmul.f32 %v308, %v608
    %v659 = vmul.f32 %v309, %v609
    %v660 = vmul.f32 %v310, %v610
    %v661 = vmul.f32 %v311, %v611
    %v662 = vmul.f32 %v312, %v612
    %v663 = vmul.f32 %v313, %v613
    %v664 = vmul.f32 %v314, %v614
    %v665 = vmul.f32 %v315, %v615
    %v666 = vmul.f32 %v316, %v616
    %v667 = vmul.f32 %v317, %v617
    %v668 = vmul.f32 %v318, %v618
    %v669 = vmul.f32 %v319, %v619
    %v670 = vld [vmem:[%s1] sm:$0x1]
    %v672 = vlaneseq
    %v673 = vshrl.u32 %v672, 7
    %v674 = vsub.s32 0, %v673
    %v675 = vrot.slane %v670, %v674
    %v677 = vmul.f32 %v620, %v675
    %v678 = vmul.f32 %v621, %v675
    %v679 = vmul.f32 %v622, %v675
    %v680 = vmul.f32 %v623, %v675
    %v681 = vmul.f32 %v624, %v675
    %v682 = vmul.f32 %v625, %v675
    %v683 = vmul.f32 %v626, %v675
    %v684 = vmul.f32 %v627, %v675
    %v685 = vmul.f32 %v628, %v675
    %v686 = vmul.f32 %v629, %v675
    %v687 = vmul.f32 %v630, %v675
    %v688 = vmul.f32 %v631, %v675
    %v689 = vmul.f32 %v632, %v675
    %v690 = vmul.f32 %v633, %v675
    %v691 = vmul.f32 %v634, %v675
    %v692 = vmul.f32 %v635, %v675
    %v693 = vmul.f32 %v636, %v675
    %v694 = vmul.f32 %v637, %v675
    %v695 = vmul.f32 %v638, %v675
    %v696 = vmul.f32 %v639, %v675
    %v697 = vmul.f32 %v640, %v675
    %v698 = vmul.f32 %v641, %v675
    %v699 = vmul.f32 %v642, %v675
    %v700 = vmul.f32 %v643, %v675
    %v701 = vmul.f32 %v644, %v675
    %v702 = vmul.f32 %v645, %v675
    %v703 = vmul.f32 %v646, %v675
    %v704 = vmul.f32 %v647, %v675
    %v705 = vmul.f32 %v648, %v675
    %v706 = vmul.f32 %v649, %v675
    %v707 = vmul.f32 %v650, %v675
    %v708 = vmul.f32 %v651, %v675
    %v709 = vmul.f32 %v652, %v675
    %v710 = vmul.f32 %v653, %v675
    %v711 = vmul.f32 %v654, %v675
    %v712 = vmul.f32 %v655, %v675
    %v713 = vmul.f32 %v656, %v675
    %v714 = vmul.f32 %v657, %v675
    %v715 = vmul.f32 %v658, %v675
    %v716 = vmul.f32 %v659, %v675
    %v717 = vmul.f32 %v660, %v675
    %v718 = vmul.f32 %v661, %v675
    %v719 = vmul.f32 %v662, %v675
    %v720 = vmul.f32 %v663, %v675
    %v721 = vmul.f32 %v664, %v675
    %v722 = vmul.f32 %v665, %v675
    %v723 = vmul.f32 %v666, %v675
    %v724 = vmul.f32 %v667, %v675
    %v725 = vmul.f32 %v668, %v675
    %v726 = vmul.f32 %v669, %v675
    %v727 = vld [vmem:[%s2] sm:$0x1]
    %v729 = vlaneseq
    %v730 = vshrl.u32 %v729, 7
    %v731 = vsub.s32 0, %v730
    %v732 = vrot.slane %v727, %v731
    %v734 = vadd.f32 %v677, %v732
    %v735 = vadd.f32 %v678, %v732
    %v736 = vadd.f32 %v679, %v732
    %v737 = vadd.f32 %v680, %v732
    %v738 = vadd.f32 %v681, %v732
    %v739 = vadd.f32 %v682, %v732
    %v740 = vadd.f32 %v683, %v732
    %v741 = vadd.f32 %v684, %v732
    %v742 = vadd.f32 %v685, %v732
    %v743 = vadd.f32 %v686, %v732
    %v744 = vadd.f32 %v687, %v732
    %v745 = vadd.f32 %v688, %v732
    %v746 = vadd.f32 %v689, %v732
    %v747 = vadd.f32 %v690, %v732
    %v748 = vadd.f32 %v691, %v732
    %v749 = vadd.f32 %v692, %v732
    %v750 = vadd.f32 %v693, %v732
    %v751 = vadd.f32 %v694, %v732
    %v752 = vadd.f32 %v695, %v732
    %v753 = vadd.f32 %v696, %v732
    %v754 = vadd.f32 %v697, %v732
    %v755 = vadd.f32 %v698, %v732
    %v756 = vadd.f32 %v699, %v732
    %v757 = vadd.f32 %v700, %v732
    %v758 = vadd.f32 %v701, %v732
    %v759 = vadd.f32 %v702, %v732
    %v760 = vadd.f32 %v703, %v732
    %v761 = vadd.f32 %v704, %v732
    %v762 = vadd.f32 %v705, %v732
    %v763 = vadd.f32 %v706, %v732
    %v764 = vadd.f32 %v707, %v732
    %v765 = vadd.f32 %v708, %v732
    %v766 = vadd.f32 %v709, %v732
    %v767 = vadd.f32 %v710, %v732
    %v768 = vadd.f32 %v711, %v732
    %v769 = vadd.f32 %v712, %v732
    %v770 = vadd.f32 %v713, %v732
    %v771 = vadd.f32 %v714, %v732
    %v772 = vadd.f32 %v715, %v732
    %v773 = vadd.f32 %v716, %v732
    %v774 = vadd.f32 %v717, %v732
    %v775 = vadd.f32 %v718, %v732
    %v776 = vadd.f32 %v719, %v732
    %v777 = vadd.f32 %v720, %v732
    %v778 = vadd.f32 %v721, %v732
    %v779 = vadd.f32 %v722, %v732
    %v780 = vadd.f32 %v723, %v732
    %v781 = vadd.f32 %v724, %v732
    %v782 = vadd.f32 %v725, %v732
    %v783 = vadd.f32 %v726, %v732
    %v784 = vpack.c.bf16 %v735, %v734
    %v785 = vpack.c.bf16 %v737, %v736
    %v786 = vpack.c.bf16 %v739, %v738
    %v787 = vpack.c.bf16 %v741, %v740
    %v788 = vpack.c.bf16 %v743, %v742
    %v789 = vpack.c.bf16 %v745, %v744
    %v790 = vpack.c.bf16 %v747, %v746
    %v791 = vpack.c.bf16 %v749, %v748
    %v792 = vpack.c.bf16 %v751, %v750
    %v793 = vpack.c.bf16 %v753, %v752
    %v794 = vpack.c.bf16 %v755, %v754
    %v795 = vpack.c.bf16 %v757, %v756
    %v796 = vpack.c.bf16 %v759, %v758
    %v797 = vpack.c.bf16 %v761, %v760
    %v798 = vpack.c.bf16 %v763, %v762
    %v799 = vpack.c.bf16 %v765, %v764
    %v800 = vpack.c.bf16 %v767, %v766
    %v801 = vpack.c.bf16 %v769, %v768
    %v802 = vpack.c.bf16 %v771, %v770
    %v803 = vpack.c.bf16 %v773, %v772
    %v804 = vpack.c.bf16 %v775, %v774
    %v805 = vpack.c.bf16 %v777, %v776
    %v806 = vpack.c.bf16 %v779, %v778
    %v807 = vpack.c.bf16 %v781, %v780
    %v808 = vpack.c.bf16 %v783, %v782
    %v809 = vld [vmem:[#allocation5] sm:$0xf]
    %v810 = vld [vmem:[#allocation5 + $0x4] sm:$0xf]
    %v811 = vld [vmem:[#allocation5 + $0x8] sm:$0xf]
    %v812 = vld [vmem:[#allocation5 + $0xc] sm:$0xf]
    %v813 = vld [vmem:[#allocation5 + $0x10] sm:$0xf]
    %v814 = vld [vmem:[#allocation5 + $0x14] sm:$0xf]
    %v815 = vld [vmem:[#allocation5 + $0x18] sm:$0xf]
    %v816 = vld [vmem:[#allocation5 + $0x1c] sm:$0xf]
    %v817 = vld [vmem:[#allocation5 + $0x20] sm:$0xf]
    %v818 = vld [vmem:[#allocation5 + $0x24] sm:$0xf]
    %v819 = vld [vmem:[#allocation5 + $0x28] sm:$0xf]
    %v820 = vld [vmem:[#allocation5 + $0x2c] sm:$0xf]
    %v821 = vld [vmem:[#allocation5 + $0x30] sm:$0xf]
    %v822 = vld [vmem:[#allocation5 + $0x34] sm:$0xf]
    %v823 = vld [vmem:[#allocation5 + $0x38] sm:$0xf]
    %v824 = vld [vmem:[#allocation5 + $0x3c] sm:$0xf]
    %v825 = vld [vmem:[%s4] sm:$0x1]
    %v827 = vlaneseq
    %v828 = vshrl.u32 %v827, 7
    %v829 = vsub.s32 0, %v828
    %v830 = vrot.slane %v825, %v829
    %v848 = vunpack.c.l.b16 %v809
    %v849 = vunpack.c.l.b16 %v810
    %v850 = vunpack.c.l.b16 %v811
    %v851 = vunpack.c.l.b16 %v812
    %v852 = vunpack.c.l.b16 %v813
    %v853 = vunpack.c.l.b16 %v814
    %v854 = vunpack.c.l.b16 %v815
    %v855 = vunpack.c.l.b16 %v816
    %v856 = vunpack.c.l.b16 %v817
    %v857 = vunpack.c.l.b16 %v818
    %v858 = vunpack.c.l.b16 %v819
    %v859 = vunpack.c.l.b16 %v820
    %v860 = vunpack.c.l.b16 %v821
    %v861 = vunpack.c.l.b16 %v822
    %v862 = vunpack.c.l.b16 %v823
    %v863 = vunpack.c.l.b16 %v824
    %v864 = vpack.c.b16 %v849, %v848
    %v865 = vpack.c.b16 %v851, %v850
    %v866 = vpack.c.b16 %v853, %v852
    %v867 = vpack.c.b16 %v855, %v854
    %v868 = vpack.c.b16 %v857, %v856
    %v869 = vpack.c.b16 %v859, %v858
    %v870 = vpack.c.b16 %v861, %v860
    %v871 = vpack.c.b16 %v863, %v862
    %880 = vmatprep.subr.bf16.mxu0 0
    %881 = vmatpush1.bf16.msra.mxu0 %v871
    %882 = vmatprep.subr.bf16.mxu0 0
    %883 = vmatpush1.bf16.msra.mxu0 %v870
    %884 = vmatprep.subr.bf16.mxu0 0
    %885 = vmatpush1.bf16.msra.mxu0 %v869
    %886 = vmatprep.subr.bf16.mxu0 0
    %887 = vmatpush1.bf16.msra.mxu0 %v868
    %888 = vmatprep.subr.bf16.mxu0 0
    %889 = vmatpush1.bf16.msra.mxu0 %v867
    %890 = vmatprep.subr.bf16.mxu0 0
    %891 = vmatpush1.bf16.msra.mxu0 %v866
    %892 = vmatprep.subr.bf16.mxu0 0
    %893 = vmatpush1.bf16.msra.mxu0 %v865
    %894 = vmatprep.subr.bf16.mxu0 0
    %895 = vmatpush1.bf16.msra.mxu0 %v864
    %896 = vmatprep.subr.bf16.mxu0 0
    %897 = vmatpush2.bf16.msra.mxu0 0
    %898 = vmatprep.subr.bf16.mxu0 0
    %899 = vmatpush2.bf16.msra.mxu0 0
    %900 = vmatprep.subr.bf16.mxu0 0
    %901 = vmatpush2.bf16.msra.mxu0 0
    %902 = vmatprep.subr.bf16.mxu0 0
    %903 = vmatpush2.bf16.msra.mxu0 0
    %904 = vmatprep.subr.bf16.mxu0 0
    %905 = vmatpush2.bf16.msra.mxu0 0
    %906 = vmatprep.subr.bf16.mxu0 0
    %907 = vmatpush2.bf16.msra.mxu0 0
    %908 = vmatprep.subr.bf16.mxu0 0
    %909 = vmatpush2.bf16.msra.mxu0 0
    %910 = vmatprep.subr.bf16.mxu0 0
    %911 = vmatpush2.bf16.msra.mxu0 0
    %912 = vmatprep.mubr.bf16.mxu0 0
    %913 = vmatmul.mubr.bf16.gmra.mxu0 %v784
    %v914 = vpop.f32.mrf.mxu0
    %v915 = vadd.f32 %v830, %v914
    %v916 = vpop.f32.mrf.mxu0
    %v917 = vpop.f32.mrf.mxu0
    %v918 = vadd.f32 %v830, %v917
    %v919 = vpop.f32.mrf.mxu0
    %920 = vmatprep.mubr.bf16.mxu0 0
    %921 = vmatmul.mubr.bf16.gmra.mxu0 %v785
    %v922 = vpop.f32.mrf.mxu0
    %v923 = vadd.f32 %v830, %v922
    %v924 = vpop.f32.mrf.mxu0
    %v925 = vpop.f32.mrf.mxu0
    %v926 = vadd.f32 %v830, %v925
    %v927 = vpop.f32.mrf.mxu0
    %928 = vmatprep.mubr.bf16.mxu0 0
    %929 = vmatmul.mubr.bf16.gmra.mxu0 %v786
    %v930 = vpop.f32.mrf.mxu0
    %v931 = vadd.f32 %v830, %v930
    %v932 = vpop.f32.mrf.mxu0
    %v933 = vpop.f32.mrf.mxu0
    %v934 = vadd.f32 %v830, %v933
    %v935 = vpop.f32.mrf.mxu0
    %936 = vmatprep.mubr.bf16.mxu0 0
    %937 = vmatmul.mubr.bf16.gmra.mxu0 %v787
    %v938 = vpop.f32.mrf.mxu0
    %v939 = vadd.f32 %v830, %v938
    %v940 = vpop.f32.mrf.mxu0
    %v941 = vpop.f32.mrf.mxu0
    %v942 = vadd.f32 %v830, %v941
    %v943 = vpop.f32.mrf.mxu0
    %944 = vmatprep.mubr.bf16.mxu0 0
    %945 = vmatmul.mubr.bf16.gmra.mxu0 %v788
    %v946 = vpop.f32.mrf.mxu0
    %v947 = vadd.f32 %v830, %v946
    %v948 = vpop.f32.mrf.mxu0
    %v949 = vpop.f32.mrf.mxu0
    %v950 = vadd.f32 %v830, %v949
    %v951 = vpop.f32.mrf.mxu0
    %952 = vmatprep.mubr.bf16.mxu0 0
    %953 = vmatmul.mubr.bf16.gmra.mxu0 %v789
    %v954 = vpop.f32.mrf.mxu0
    %v955 = vadd.f32 %v830, %v954
    %v956 = vpop.f32.mrf.mxu0
    %v957 = vpop.f32.mrf.mxu0
    %v958 = vadd.f32 %v830, %v957
    %v959 = vpop.f32.mrf.mxu0
    %960 = vmatprep.mubr.bf16.mxu0 0
    %961 = vmatmul.mubr.bf16.gmra.mxu0 %v790
    %v962 = vpop.f32.mrf.mxu0
    %v963 = vadd.f32 %v830, %v962
    %v964 = vpop.f32.mrf.mxu0
    %v965 = vpop.f32.mrf.mxu0
    %v966 = vadd.f32 %v830, %v965
    %v967 = vpop.f32.mrf.mxu0
    %968 = vmatprep.mubr.bf16.mxu0 0
    %969 = vmatmul.mubr.bf16.gmra.mxu0 %v791
    %v970 = vpop.f32.mrf.mxu0
    %v971 = vadd.f32 %v830, %v970
    %v972 = vpop.f32.mrf.mxu0
    %v973 = vpop.f32.mrf.mxu0
    %v974 = vadd.f32 %v830, %v973
    %v975 = vpop.f32.mrf.mxu0
    %976 = vmatprep.mubr.bf16.mxu0 0
    %977 = vmatmul.mubr.bf16.gmra.mxu0 %v792
    %v978 = vpop.f32.mrf.mxu0
    %v979 = vadd.f32 %v830, %v978
    %v980 = vpop.f32.mrf.mxu0
    %v981 = vpop.f32.mrf.mxu0
    %v982 = vadd.f32 %v830, %v981
    %v983 = vpop.f32.mrf.mxu0
    %984 = vmatprep.mubr.bf16.mxu0 0
    %985 = vmatmul.mubr.bf16.gmra.mxu0 %v793
    %v986 = vpop.f32.mrf.mxu0
    %v987 = vadd.f32 %v830, %v986
    %v988 = vpop.f32.mrf.mxu0
    %v989 = vpop.f32.mrf.mxu0
    %v990 = vadd.f32 %v830, %v989
    %v991 = vpop.f32.mrf.mxu0
    %992 = vmatprep.mubr.bf16.mxu0 0
    %993 = vmatmul.mubr.bf16.gmra.mxu0 %v794
    %v994 = vpop.f32.mrf.mxu0
    %v995 = vadd.f32 %v830, %v994
    %v996 = vpop.f32.mrf.mxu0
    %v997 = vpop.f32.mrf.mxu0
    %v998 = vadd.f32 %v830, %v997
    %v999 = vpop.f32.mrf.mxu0
    %1000 = vmatprep.mubr.bf16.mxu0 0
    %1001 = vmatmul.mubr.bf16.gmra.mxu0 %v795
    %v1002 = vpop.f32.mrf.mxu0
    %v1003 = vadd.f32 %v830, %v1002
    %v1004 = vpop.f32.mrf.mxu0
    %v1005 = vpop.f32.mrf.mxu0
    %v1006 = vadd.f32 %v830, %v1005
    %v1007 = vpop.f32.mrf.mxu0
    %1008 = vmatprep.mubr.bf16.mxu0 0
    %1009 = vmatmul.mubr.bf16.gmra.mxu0 %v796
    %v1010 = vpop.f32.mrf.mxu0
    %v1011 = vadd.f32 %v830, %v1010
    %v1012 = vpop.f32.mrf.mxu0
    %v1013 = vpop.f32.mrf.mxu0
    %v1014 = vadd.f32 %v830, %v1013
    %v1015 = vpop.f32.mrf.mxu0
    %1016 = vmatprep.mubr.bf16.mxu0 0
    %1017 = vmatmul.mubr.bf16.gmra.mxu0 %v797
    %v1018 = vpop.f32.mrf.mxu0
    %v1019 = vadd.f32 %v830, %v1018
    %v1020 = vpop.f32.mrf.mxu0
    %v1021 = vpop.f32.mrf.mxu0
    %v1022 = vadd.f32 %v830, %v1021
    %v1023 = vpop.f32.mrf.mxu0
    %1024 = vmatprep.mubr.bf16.mxu0 0
    %1025 = vmatmul.mubr.bf16.gmra.mxu0 %v798
    %v1026 = vpop.f32.mrf.mxu0
    %v1027 = vadd.f32 %v830, %v1026
    %v1028 = vpop.f32.mrf.mxu0
    %v1029 = vpop.f32.mrf.mxu0
    %v1030 = vadd.f32 %v830, %v1029
    %v1031 = vpop.f32.mrf.mxu0
    %1032 = vmatprep.mubr.bf16.mxu0 0
    %1033 = vmatmul.mubr.bf16.gmra.mxu0 %v799
    %v1034 = vpop.f32.mrf.mxu0
    %v1035 = vadd.f32 %v830, %v1034
    %v1036 = vpop.f32.mrf.mxu0
    %v1037 = vpop.f32.mrf.mxu0
    %v1038 = vadd.f32 %v830, %v1037
    %v1039 = vpop.f32.mrf.mxu0
    %1040 = vmatprep.mubr.bf16.mxu0 0
    %1041 = vmatmul.mubr.bf16.gmra.mxu0 %v800
    %v1042 = vpop.f32.mrf.mxu0
    %v1043 = vadd.f32 %v830, %v1042
    %v1044 = vpop.f32.mrf.mxu0
    %v1045 = vpop.f32.mrf.mxu0
    %v1046 = vadd.f32 %v830, %v1045
    %v1047 = vpop.f32.mrf.mxu0
    %1048 = vmatprep.mubr.bf16.mxu0 0
    %1049 = vmatmul.mubr.bf16.gmra.mxu0 %v801
    %v1050 = vpop.f32.mrf.mxu0
    %v1051 = vadd.f32 %v830, %v1050
    %v1052 = vpop.f32.mrf.mxu0
    %v1053 = vpop.f32.mrf.mxu0
    %v1054 = vadd.f32 %v830, %v1053
    %v1055 = vpop.f32.mrf.mxu0
    %1056 = vmatprep.mubr.bf16.mxu0 0
    %1057 = vmatmul.mubr.bf16.gmra.mxu0 %v802
    %v1058 = vpop.f32.mrf.mxu0
    %v1059 = vadd.f32 %v830, %v1058
    %v1060 = vpop.f32.mrf.mxu0
    %v1061 = vpop.f32.mrf.mxu0
    %v1062 = vadd.f32 %v830, %v1061
    %v1063 = vpop.f32.mrf.mxu0
    %1064 = vmatprep.mubr.bf16.mxu0 0
    %1065 = vmatmul.mubr.bf16.gmra.mxu0 %v803
    %v1066 = vpop.f32.mrf.mxu0
    %v1067 = vadd.f32 %v830, %v1066
    %v1068 = vpop.f32.mrf.mxu0
    %v1069 = vpop.f32.mrf.mxu0
    %v1070 = vadd.f32 %v830, %v1069
    %v1071 = vpop.f32.mrf.mxu0
    %1072 = vmatprep.mubr.bf16.mxu0 0
    %1073 = vmatmul.mubr.bf16.gmra.mxu0 %v804
    %v1074 = vpop.f32.mrf.mxu0
    %v1075 = vadd.f32 %v830, %v1074
    %v1076 = vpop.f32.mrf.mxu0
    %v1077 = vpop.f32.mrf.mxu0
    %v1078 = vadd.f32 %v830, %v1077
    %v1079 = vpop.f32.mrf.mxu0
    %1080 = vmatprep.mubr.bf16.mxu0 0
    %1081 = vmatmul.mubr.bf16.gmra.mxu0 %v805
    %v1082 = vpop.f32.mrf.mxu0
    %v1083 = vadd.f32 %v830, %v1082
    %v1084 = vpop.f32.mrf.mxu0
    %v1085 = vpop.f32.mrf.mxu0
    %v1086 = vadd.f32 %v830, %v1085
    %v1087 = vpop.f32.mrf.mxu0
    %1088 = vmatprep.mubr.bf16.mxu0 0
    %1089 = vmatmul.mubr.bf16.gmra.mxu0 %v806
    %v1090 = vpop.f32.mrf.mxu0
    %v1091 = vadd.f32 %v830, %v1090
    %v1092 = vpop.f32.mrf.mxu0
    %v1093 = vpop.f32.mrf.mxu0
    %v1094 = vadd.f32 %v830, %v1093
    %v1095 = vpop.f32.mrf.mxu0
    %1096 = vmatprep.mubr.bf16.mxu0 0
    %1097 = vmatmul.mubr.bf16.gmra.mxu0 %v807
    %v1098 = vpop.f32.mrf.mxu0
    %v1099 = vadd.f32 %v830, %v1098
    %v1100 = vpop.f32.mrf.mxu0
    %v1101 = vpop.f32.mrf.mxu0
    %v1102 = vadd.f32 %v830, %v1101
    %v1103 = vpop.f32.mrf.mxu0
    %1104 = vmatprep.mubr.bf16.mxu0 0
    %1105 = vmatmul.mubr.bf16.gmra.mxu0 %v808
    %v1106 = vpop.f32.mrf.mxu0
    %v1107 = vadd.f32 %v830, %v1106
    %v1108 = vpop.f32.mrf.mxu0
    %v1109 = vpop.f32.mrf.mxu0
    %v1110 = vadd.f32 %v830, %v1109
    %v1111 = vpop.f32.mrf.mxu0
    %1112 = vdwg.mxu0
    %v1113 = vmax.f32 %v915, 0.0
    %v1114 = vmax.f32 %v918, 0.0
    %v1115 = vmax.f32 %v923, 0.0
    %v1116 = vmax.f32 %v926, 0.0
    %v1117 = vmax.f32 %v931, 0.0
    %v1118 = vmax.f32 %v934, 0.0
    %v1119 = vmax.f32 %v939, 0.0
    %v1120 = vmax.f32 %v942, 0.0
    %v1121 = vmax.f32 %v947, 0.0
    %v1122 = vmax.f32 %v950, 0.0
    %v1123 = vmax.f32 %v955, 0.0
    %v1124 = vmax.f32 %v958, 0.0
    %v1125 = vmax.f32 %v963, 0.0
    %v1126 = vmax.f32 %v966, 0.0
    %v1127 = vmax.f32 %v971, 0.0
    %v1128 = vmax.f32 %v974, 0.0
    %v1129 = vmax.f32 %v979, 0.0
    %v1130 = vmax.f32 %v982, 0.0
    %v1131 = vmax.f32 %v987, 0.0
    %v1132 = vmax.f32 %v990, 0.0
    %v1133 = vmax.f32 %v995, 0.0
    %v1134 = vmax.f32 %v998, 0.0
    %v1135 = vmax.f32 %v1003, 0.0
    %v1136 = vmax.f32 %v1006, 0.0
    %v1137 = vmax.f32 %v1011, 0.0
    %v1138 = vmax.f32 %v1014, 0.0
    %v1139 = vmax.f32 %v1019, 0.0
    %v1140 = vmax.f32 %v1022, 0.0
    %v1141 = vmax.f32 %v1027, 0.0
    %v1142 = vmax.f32 %v1030, 0.0
    %v1143 = vmax.f32 %v1035, 0.0
    %v1144 = vmax.f32 %v1038, 0.0
    %v1145 = vmax.f32 %v1043, 0.0
    %v1146 = vmax.f32 %v1046, 0.0
    %v1147 = vmax.f32 %v1051, 0.0
    %v1148 = vmax.f32 %v1054, 0.0
    %v1149 = vmax.f32 %v1059, 0.0
    %v1150 = vmax.f32 %v1062, 0.0
    %v1151 = vmax.f32 %v1067, 0.0
    %v1152 = vmax.f32 %v1070, 0.0
    %v1153 = vmax.f32 %v1075, 0.0
    %v1154 = vmax.f32 %v1078, 0.0
    %v1155 = vmax.f32 %v1083, 0.0
    %v1156 = vmax.f32 %v1086, 0.0
    %v1157 = vmax.f32 %v1091, 0.0
    %v1158 = vmax.f32 %v1094, 0.0
    %v1159 = vmax.f32 %v1099, 0.0
    %v1160 = vmax.f32 %v1102, 0.0
    %v1161 = vmax.f32 %v1107, 0.0
    %v1162 = vmax.f32 %v1110, 0.0
    %v1163 = vpack.c.bf16 %v1114, %v1113
    %v1164 = vpack.c.bf16 %v1116, %v1115
    %v1165 = vpack.c.bf16 %v1118, %v1117
    %v1166 = vpack.c.bf16 %v1120, %v1119
    %v1167 = vpack.c.bf16 %v1122, %v1121
    %v1168 = vpack.c.bf16 %v1124, %v1123
    %v1169 = vpack.c.bf16 %v1126, %v1125
    %v1170 = vpack.c.bf16 %v1128, %v1127
    %v1171 = vpack.c.bf16 %v1130, %v1129
    %v1172 = vpack.c.bf16 %v1132, %v1131
    %v1173 = vpack.c.bf16 %v1134, %v1133
    %v1174 = vpack.c.bf16 %v1136, %v1135
    %v1175 = vpack.c.bf16 %v1138, %v1137
    %v1176 = vpack.c.bf16 %v1140, %v1139
    %v1177 = vpack.c.bf16 %v1142, %v1141
    %v1178 = vpack.c.bf16 %v1144, %v1143
    %v1179 = vpack.c.bf16 %v1146, %v1145
    %v1180 = vpack.c.bf16 %v1148, %v1147
    %v1181 = vpack.c.bf16 %v1150, %v1149
    %v1182 = vpack.c.bf16 %v1152, %v1151
    %v1183 = vpack.c.bf16 %v1154, %v1153
    %v1184 = vpack.c.bf16 %v1156, %v1155
    %v1185 = vpack.c.bf16 %v1158, %v1157
    %v1186 = vpack.c.bf16 %v1160, %v1159
    %v1187 = vpack.c.bf16 %v1162, %v1161
    %v1188 = vld [vmem:[#allocation7] sm:$0xf]
    %v1189 = vld [vmem:[#allocation7 + $0x4] sm:$0xf]
    %v1190 = vld [vmem:[#allocation7 + $0x8] sm:$0xf]
    %v1191 = vld [vmem:[#allocation7 + $0xc] sm:$0xf]
    %v1192 = vld [vmem:[#allocation7 + $0x10] sm:$0xf]
    %v1193 = vld [vmem:[#allocation7 + $0x14] sm:$0xf]
    %v1194 = vld [vmem:[#allocation7 + $0x18] sm:$0xf]
    %v1195 = vld [vmem:[#allocation7 + $0x1c] sm:$0xf]
    %v1196 = vld [vmem:[#allocation7 + $0x20] sm:$0xf]
    %v1197 = vld [vmem:[#allocation7 + $0x24] sm:$0xf]
    %v1198 = vld [vmem:[#allocation7 + $0x28] sm:$0xf]
    %v1199 = vld [vmem:[#allocation7 + $0x2c] sm:$0xf]
    %v1200 = vld [vmem:[#allocation7 + $0x30] sm:$0xf]
    %v1201 = vld [vmem:[#allocation7 + $0x34] sm:$0xf]
    %v1202 = vld [vmem:[#allocation7 + $0x38] sm:$0xf]
    %v1203 = vld [vmem:[#allocation7 + $0x3c] sm:$0xf]
    %v1204 = vld [vmem:[%s6] sm:$0x1]
    %v1206 = vlaneseq
    %v1207 = vshrl.u32 %v1206, 7
    %v1208 = vsub.s32 0, %v1207
    %v1209 = vrot.slane %v1204, %v1208
    %v1227 = vunpack.c.l.b16 %v1188
    %v1228 = vunpack.c.l.b16 %v1189
    %v1229 = vunpack.c.l.b16 %v1190
    %v1230 = vunpack.c.l.b16 %v1191
    %v1231 = vunpack.c.l.b16 %v1192
    %v1232 = vunpack.c.l.b16 %v1193
    %v1233 = vunpack.c.l.b16 %v1194
    %v1234 = vunpack.c.l.b16 %v1195
    %v1235 = vunpack.c.l.b16 %v1196
    %v1236 = vunpack.c.l.b16 %v1197
    %v1237 = vunpack.c.l.b16 %v1198
    %v1238 = vunpack.c.l.b16 %v1199
    %v1239 = vunpack.c.l.b16 %v1200
    %v1240 = vunpack.c.l.b16 %v1201
    %v1241 = vunpack.c.l.b16 %v1202
    %v1242 = vunpack.c.l.b16 %v1203
    %v1243 = vpack.c.b16 %v1228, %v1227
    %v1244 = vpack.c.b16 %v1230, %v1229
    %v1245 = vpack.c.b16 %v1232, %v1231
    %v1246 = vpack.c.b16 %v1234, %v1233
    %v1247 = vpack.c.b16 %v1236, %v1235
    %v1248 = vpack.c.b16 %v1238, %v1237
    %v1249 = vpack.c.b16 %v1240, %v1239
    %v1250 = vpack.c.b16 %v1242, %v1241
    %1259 = vmatprep.subr.bf16.mxu0 0
    %1260 = vmatpush1.bf16.msra.mxu0 %v1250
    %1261 = vmatprep.subr.bf16.mxu0 0
    %1262 = vmatpush1.bf16.msra.mxu0 %v1249
    %1263 = vmatprep.subr.bf16.mxu0 0
    %1264 = vmatpush1.bf16.msra.mxu0 %v1248
    %1265 = vmatprep.subr.bf16.mxu0 0
    %1266 = vmatpush1.bf16.msra.mxu0 %v1247
    %1267 = vmatprep.subr.bf16.mxu0 0
    %1268 = vmatpush1.bf16.msra.mxu0 %v1246
    %1269 = vmatprep.subr.bf16.mxu0 0
    %1270 = vmatpush1.bf16.msra.mxu0 %v1245
    %1271 = vmatprep.subr.bf16.mxu0 0
    %1272 = vmatpush1.bf16.msra.mxu0 %v1244
    %1273 = vmatprep.subr.bf16.mxu0 0
    %1274 = vmatpush1.bf16.msra.mxu0 %v1243
    %1275 = vmatprep.subr.bf16.mxu0 0
    %1276 = vmatpush2.bf16.msra.mxu0 0
    %1277 = vmatprep.subr.bf16.mxu0 0
    %1278 = vmatpush2.bf16.msra.mxu0 0
    %1279 = vmatprep.subr.bf16.mxu0 0
    %1280 = vmatpush2.bf16.msra.mxu0 0
    %1281 = vmatprep.subr.bf16.mxu0 0
    %1282 = vmatpush2.bf16.msra.mxu0 0
    %1283 = vmatprep.subr.bf16.mxu0 0
    %1284 = vmatpush2.bf16.msra.mxu0 0
    %1285 = vmatprep.subr.bf16.mxu0 0
    %1286 = vmatpush2.bf16.msra.mxu0 0
    %1287 = vmatprep.subr.bf16.mxu0 0
    %1288 = vmatpush2.bf16.msra.mxu0 0
    %1289 = vmatprep.subr.bf16.mxu0 0
    %1290 = vmatpush2.bf16.msra.mxu0 0
    %1291 = vmatprep.mubr.bf16.mxu0 0
    %1292 = vmatmul.mubr.bf16.gmra.mxu0 %v1163
    %v1293 = vpop.f32.mrf.mxu0
    %v1294 = vadd.f32 %v1209, %v1293
    %v1295 = vpop.f32.mrf.mxu0
    %v1296 = vpop.f32.mrf.mxu0
    %v1297 = vadd.f32 %v1209, %v1296
    %v1298 = vpop.f32.mrf.mxu0
    %1299 = vmatprep.mubr.bf16.mxu0 0
    %1300 = vmatmul.mubr.bf16.gmra.mxu0 %v1164
    %v1301 = vpop.f32.mrf.mxu0
    %v1302 = vadd.f32 %v1209, %v1301
    %v1303 = vpop.f32.mrf.mxu0
    %v1304 = vpop.f32.mrf.mxu0
    %v1305 = vadd.f32 %v1209, %v1304
    %v1306 = vpop.f32.mrf.mxu0
    %1307 = vmatprep.mubr.bf16.mxu0 0
    %1308 = vmatmul.mubr.bf16.gmra.mxu0 %v1165
    %v1309 = vpop.f32.mrf.mxu0
    %v1310 = vadd.f32 %v1209, %v1309
    %v1311 = vpop.f32.mrf.mxu0
    %v1312 = vpop.f32.mrf.mxu0
    %v1313 = vadd.f32 %v1209, %v1312
    %v1314 = vpop.f32.mrf.mxu0
    %1315 = vmatprep.mubr.bf16.mxu0 0
    %1316 = vmatmul.mubr.bf16.gmra.mxu0 %v1166
    %v1317 = vpop.f32.mrf.mxu0
    %v1318 = vadd.f32 %v1209, %v1317
    %v1319 = vpop.f32.mrf.mxu0
    %v1320 = vpop.f32.mrf.mxu0
    %v1321 = vadd.f32 %v1209, %v1320
    %v1322 = vpop.f32.mrf.mxu0
    %1323 = vmatprep.mubr.bf16.mxu0 0
    %1324 = vmatmul.mubr.bf16.gmra.mxu0 %v1167
    %v1325 = vpop.f32.mrf.mxu0
    %v1326 = vadd.f32 %v1209, %v1325
    %v1327 = vpop.f32.mrf.mxu0
    %v1328 = vpop.f32.mrf.mxu0
    %v1329 = vadd.f32 %v1209, %v1328
    %v1330 = vpop.f32.mrf.mxu0
    %1331 = vmatprep.mubr.bf16.mxu0 0
    %1332 = vmatmul.mubr.bf16.gmra.mxu0 %v1168
    %v1333 = vpop.f32.mrf.mxu0
    %v1334 = vadd.f32 %v1209, %v1333
    %v1335 = vpop.f32.mrf.mxu0
    %v1336 = vpop.f32.mrf.mxu0
    %v1337 = vadd.f32 %v1209, %v1336
    %v1338 = vpop.f32.mrf.mxu0
    %1339 = vmatprep.mubr.bf16.mxu0 0
    %1340 = vmatmul.mubr.bf16.gmra.mxu0 %v1169
    %v1341 = vpop.f32.mrf.mxu0
    %v1342 = vadd.f32 %v1209, %v1341
    %v1343 = vpop.f32.mrf.mxu0
    %v1344 = vpop.f32.mrf.mxu0
    %v1345 = vadd.f32 %v1209, %v1344
    %v1346 = vpop.f32.mrf.mxu0
    %1347 = vmatprep.mubr.bf16.mxu0 0
    %1348 = vmatmul.mubr.bf16.gmra.mxu0 %v1170
    %v1349 = vpop.f32.mrf.mxu0
    %v1350 = vadd.f32 %v1209, %v1349
    %v1351 = vpop.f32.mrf.mxu0
    %v1352 = vpop.f32.mrf.mxu0
    %v1353 = vadd.f32 %v1209, %v1352
    %v1354 = vpop.f32.mrf.mxu0
    %1355 = vmatprep.mubr.bf16.mxu0 0
    %1356 = vmatmul.mubr.bf16.gmra.mxu0 %v1171
    %v1357 = vpop.f32.mrf.mxu0
    %v1358 = vadd.f32 %v1209, %v1357
    %v1359 = vpop.f32.mrf.mxu0
    %v1360 = vpop.f32.mrf.mxu0
    %v1361 = vadd.f32 %v1209, %v1360
    %v1362 = vpop.f32.mrf.mxu0
    %1363 = vmatprep.mubr.bf16.mxu0 0
    %1364 = vmatmul.mubr.bf16.gmra.mxu0 %v1172
    %v1365 = vpop.f32.mrf.mxu0
    %v1366 = vadd.f32 %v1209, %v1365
    %v1367 = vpop.f32.mrf.mxu0
    %v1368 = vpop.f32.mrf.mxu0
    %v1369 = vadd.f32 %v1209, %v1368
    %v1370 = vpop.f32.mrf.mxu0
    %1371 = vmatprep.mubr.bf16.mxu0 0
    %1372 = vmatmul.mubr.bf16.gmra.mxu0 %v1173
    %v1373 = vpop.f32.mrf.mxu0
    %v1374 = vadd.f32 %v1209, %v1373
    %v1375 = vpop.f32.mrf.mxu0
    %v1376 = vpop.f32.mrf.mxu0
    %v1377 = vadd.f32 %v1209, %v1376
    %v1378 = vpop.f32.mrf.mxu0
    %1379 = vmatprep.mubr.bf16.mxu0 0
    %1380 = vmatmul.mubr.bf16.gmra.mxu0 %v1174
    %v1381 = vpop.f32.mrf.mxu0
    %v1382 = vadd.f32 %v1209, %v1381
    %v1383 = vpop.f32.mrf.mxu0
    %v1384 = vpop.f32.mrf.mxu0
    %v1385 = vadd.f32 %v1209, %v1384
    %v1386 = vpop.f32.mrf.mxu0
    %1387 = vmatprep.mubr.bf16.mxu0 0
    %1388 = vmatmul.mubr.bf16.gmra.mxu0 %v1175
    %v1389 = vpop.f32.mrf.mxu0
    %v1390 = vadd.f32 %v1209, %v1389
    %v1391 = vpop.f32.mrf.mxu0
    %v1392 = vpop.f32.mrf.mxu0
    %v1393 = vadd.f32 %v1209, %v1392
    %v1394 = vpop.f32.mrf.mxu0
    %1395 = vmatprep.mubr.bf16.mxu0 0
    %1396 = vmatmul.mubr.bf16.gmra.mxu0 %v1176
    %v1397 = vpop.f32.mrf.mxu0
    %v1398 = vadd.f32 %v1209, %v1397
    %v1399 = vpop.f32.mrf.mxu0
    %v1400 = vpop.f32.mrf.mxu0
    %v1401 = vadd.f32 %v1209, %v1400
    %v1402 = vpop.f32.mrf.mxu0
    %1403 = vmatprep.mubr.bf16.mxu0 0
    %1404 = vmatmul.mubr.bf16.gmra.mxu0 %v1177
    %v1405 = vpop.f32.mrf.mxu0
    %v1406 = vadd.f32 %v1209, %v1405
    %v1407 = vpop.f32.mrf.mxu0
    %v1408 = vpop.f32.mrf.mxu0
    %v1409 = vadd.f32 %v1209, %v1408
    %v1410 = vpop.f32.mrf.mxu0
    %1411 = vmatprep.mubr.bf16.mxu0 0
    %1412 = vmatmul.mubr.bf16.gmra.mxu0 %v1178
    %v1413 = vpop.f32.mrf.mxu0
    %v1414 = vadd.f32 %v1209, %v1413
    %v1415 = vpop.f32.mrf.mxu0
    %v1416 = vpop.f32.mrf.mxu0
    %v1417 = vadd.f32 %v1209, %v1416
    %v1418 = vpop.f32.mrf.mxu0
    %1419 = vmatprep.mubr.bf16.mxu0 0
    %1420 = vmatmul.mubr.bf16.gmra.mxu0 %v1179
    %v1421 = vpop.f32.mrf.mxu0
    %v1422 = vadd.f32 %v1209, %v1421
    %v1423 = vpop.f32.mrf.mxu0
    %v1424 = vpop.f32.mrf.mxu0
    %v1425 = vadd.f32 %v1209, %v1424
    %v1426 = vpop.f32.mrf.mxu0
    %1427 = vmatprep.mubr.bf16.mxu0 0
    %1428 = vmatmul.mubr.bf16.gmra.mxu0 %v1180
    %v1429 = vpop.f32.mrf.mxu0
    %v1430 = vadd.f32 %v1209, %v1429
    %v1431 = vpop.f32.mrf.mxu0
    %v1432 = vpop.f32.mrf.mxu0
    %v1433 = vadd.f32 %v1209, %v1432
    %v1434 = vpop.f32.mrf.mxu0
    %1435 = vmatprep.mubr.bf16.mxu0 0
    %1436 = vmatmul.mubr.bf16.gmra.mxu0 %v1181
    %v1437 = vpop.f32.mrf.mxu0
    %v1438 = vadd.f32 %v1209, %v1437
    %v1439 = vpop.f32.mrf.mxu0
    %v1440 = vpop.f32.mrf.mxu0
    %v1441 = vadd.f32 %v1209, %v1440
    %v1442 = vpop.f32.mrf.mxu0
    %1443 = vmatprep.mubr.bf16.mxu0 0
    %1444 = vmatmul.mubr.bf16.gmra.mxu0 %v1182
    %v1445 = vpop.f32.mrf.mxu0
    %v1446 = vadd.f32 %v1209, %v1445
    %v1447 = vpop.f32.mrf.mxu0
    %v1448 = vpop.f32.mrf.mxu0
    %v1449 = vadd.f32 %v1209, %v1448
    %v1450 = vpop.f32.mrf.mxu0
    %1451 = vmatprep.mubr.bf16.mxu0 0
    %1452 = vmatmul.mubr.bf16.gmra.mxu0 %v1183
    %v1453 = vpop.f32.mrf.mxu0
    %v1454 = vadd.f32 %v1209, %v1453
    %v1455 = vpop.f32.mrf.mxu0
    %v1456 = vpop.f32.mrf.mxu0
    %v1457 = vadd.f32 %v1209, %v1456
    %v1458 = vpop.f32.mrf.mxu0
    %1459 = vmatprep.mubr.bf16.mxu0 0
    %1460 = vmatmul.mubr.bf16.gmra.mxu0 %v1184
    %v1461 = vpop.f32.mrf.mxu0
    %v1462 = vadd.f32 %v1209, %v1461
    %v1463 = vpop.f32.mrf.mxu0
    %v1464 = vpop.f32.mrf.mxu0
    %v1465 = vadd.f32 %v1209, %v1464
    %v1466 = vpop.f32.mrf.mxu0
    %1467 = vmatprep.mubr.bf16.mxu0 0
    %1468 = vmatmul.mubr.bf16.gmra.mxu0 %v1185
    %v1469 = vpop.f32.mrf.mxu0
    %v1470 = vadd.f32 %v1209, %v1469
    %v1471 = vpop.f32.mrf.mxu0
    %v1472 = vpop.f32.mrf.mxu0
    %v1473 = vadd.f32 %v1209, %v1472
    %v1474 = vpop.f32.mrf.mxu0
    %1475 = vmatprep.mubr.bf16.mxu0 0
    %1476 = vmatmul.mubr.bf16.gmra.mxu0 %v1186
    %v1477 = vpop.f32.mrf.mxu0
    %v1478 = vadd.f32 %v1209, %v1477
    %v1479 = vpop.f32.mrf.mxu0
    %v1480 = vpop.f32.mrf.mxu0
    %v1481 = vadd.f32 %v1209, %v1480
    %v1482 = vpop.f32.mrf.mxu0
    %1483 = vmatprep.mubr.bf16.mxu0 0
    %1484 = vmatmul.mubr.bf16.gmra.mxu0 %v1187
    %v1485 = vpop.f32.mrf.mxu0
    %v1486 = vadd.f32 %v1209, %v1485
    %v1487 = vpop.f32.mrf.mxu0
    %v1488 = vpop.f32.mrf.mxu0
    %v1489 = vadd.f32 %v1209, %v1488
    %v1490 = vpop.f32.mrf.mxu0
    %1491 = vdwg.mxu0
    %v1492 = vadd.f32 %v1294, %v69
    %v1493 = vadd.f32 %v1297, %v70
    %v1494 = vadd.f32 %v1302, %v71
    %v1495 = vadd.f32 %v1305, %v72
    %v1496 = vadd.f32 %v1310, %v73
    %v1497 = vadd.f32 %v1313, %v74
    %v1498 = vadd.f32 %v1318, %v75
    %v1499 = vadd.f32 %v1321, %v76
    %v1500 = vadd.f32 %v1326, %v77
    %v1501 = vadd.f32 %v1329, %v78
    %v1502 = vadd.f32 %v1334, %v79
    %v1503 = vadd.f32 %v1337, %v80
    %v1504 = vadd.f32 %v1342, %v81
    %v1505 = vadd.f32 %v1345, %v82
    %v1506 = vadd.f32 %v1350, %v83
    %v1507 = vadd.f32 %v1353, %v84
    %v1508 = vadd.f32 %v1358, %v85
    %v1509 = vadd.f32 %v1361, %v86
    %v1510 = vadd.f32 %v1366, %v87
    %v1511 = vadd.f32 %v1369, %v88
    %v1512 = vadd.f32 %v1374, %v89
    %v1513 = vadd.f32 %v1377, %v90
    %v1514 = vadd.f32 %v1382, %v91
    %v1515 = vadd.f32 %v1385, %v92
    %v1516 = vadd.f32 %v1390, %v93
    %v1517 = vadd.f32 %v1393, %v94
    %v1518 = vadd.f32 %v1398, %v95
    %v1519 = vadd.f32 %v1401, %v96
    %v1520 = vadd.f32 %v1406, %v97
    %v1521 = vadd.f32 %v1409, %v98
    %v1522 = vadd.f32 %v1414, %v99
    %v1523 = vadd.f32 %v1417, %v100
    %v1524 = vadd.f32 %v1422, %v101
    %v1525 = vadd.f32 %v1425, %v102
    %v1526 = vadd.f32 %v1430, %v103
    %v1527 = vadd.f32 %v1433, %v104
    %v1528 = vadd.f32 %v1438, %v105
    %v1529 = vadd.f32 %v1441, %v106
    %v1530 = vadd.f32 %v1446, %v107
    %v1531 = vadd.f32 %v1449, %v108
    %v1532 = vadd.f32 %v1454, %v109
    %v1533 = vadd.f32 %v1457, %v110
    %v1534 = vadd.f32 %v1462, %v111
    %v1535 = vadd.f32 %v1465, %v112
    %v1536 = vadd.f32 %v1470, %v113
    %v1537 = vadd.f32 %v1473, %v114
    %v1538 = vadd.f32 %v1478, %v115
    %v1539 = vadd.f32 %v1481, %v116
    %v1540 = vadd.f32 %v1486, %v117
    %v1541 = vadd.f32 %v1489, %v118
    %1542 = vst [vmem:[#allocation8] sm:$0xff] %v1492
    %1543 = vst [vmem:[#allocation8 + $0x8] sm:$0xff] %v1493
    %1544 = vst [vmem:[#allocation8 + $0x10] sm:$0xff] %v1494
    %1545 = vst [vmem:[#allocation8 + $0x18] sm:$0xff] %v1495
    %1546 = vst [vmem:[#allocation8 + $0x20] sm:$0xff] %v1496
    %1547 = vst [vmem:[#allocation8 + $0x28] sm:$0xff] %v1497
    %1548 = vst [vmem:[#allocation8 + $0x30] sm:$0xff] %v1498
    %1549 = vst [vmem:[#allocation8 + $0x38] sm:$0xff] %v1499
    %1550 = vst [vmem:[#allocation8 + $0x40] sm:$0xff] %v1500
    %1551 = vst [vmem:[#allocation8 + $0x48] sm:$0xff] %v1501
    %1552 = vst [vmem:[#allocation8 + $0x50] sm:$0xff] %v1502
    %1553 = vst [vmem:[#allocation8 + $0x58] sm:$0xff] %v1503
    %1554 = vst [vmem:[#allocation8 + $0x60] sm:$0xff] %v1504
    %1555 = vst [vmem:[#allocation8 + $0x68] sm:$0xff] %v1505
    %1556 = vst [vmem:[#allocation8 + $0x70] sm:$0xff] %v1506
    %1557 = vst [vmem:[#allocation8 + $0x78] sm:$0xff] %v1507
    %1558 = vst [vmem:[#allocation8 + $0x80] sm:$0xff] %v1508
    %1559 = vst [vmem:[#allocation8 + $0x88] sm:$0xff] %v1509
    %1560 = vst [vmem:[#allocation8 + $0x90] sm:$0xff] %v1510
    %1561 = vst [vmem:[#allocation8 + $0x98] sm:$0xff] %v1511
    %1562 = vst [vmem:[#allocation8 + $0xa0] sm:$0xff] %v1512
    %1563 = vst [vmem:[#allocation8 + $0xa8] sm:$0xff] %v1513
    %1564 = vst [vmem:[#allocation8 + $0xb0] sm:$0xff] %v1514
    %1565 = vst [vmem:[#allocation8 + $0xb8] sm:$0xff] %v1515
    %1566 = vst [vmem:[#allocation8 + $0xc0] sm:$0xff] %v1516
    %1567 = vst [vmem:[#allocation8 + $0xc8] sm:$0xff] %v1517
    %1568 = vst [vmem:[#allocation8 + $0xd0] sm:$0xff] %v1518
    %1569 = vst [vmem:[#allocation8 + $0xd8] sm:$0xff] %v1519
    %1570 = vst [vmem:[#allocation8 + $0xe0] sm:$0xff] %v1520
    %1571 = vst [vmem:[#allocation8 + $0xe8] sm:$0xff] %v1521
    %1572 = vst [vmem:[#allocation8 + $0xf0] sm:$0xff] %v1522
    %1573 = vst [vmem:[#allocation8 + $0xf8] sm:$0xff] %v1523
    %1574 = vst [vmem:[#allocation8 + $0x100] sm:$0xff] %v1524
    %1575 = vst [vmem:[#allocation8 + $0x108] sm:$0xff] %v1525
    %1576 = vst [vmem:[#allocation8 + $0x110] sm:$0xff] %v1526
    %1577 = vst [vmem:[#allocation8 + $0x118] sm:$0xff] %v1527
    %1578 = vst [vmem:[#allocation8 + $0x120] sm:$0xff] %v1528
    %1579 = vst [vmem:[#allocation8 + $0x128] sm:$0xff] %v1529
    %1580 = vst [vmem:[#allocation8 + $0x130] sm:$0xff] %v1530
    %1581 = vst [vmem:[#allocation8 + $0x138] sm:$0xff] %v1531
    %1582 = vst [vmem:[#allocation8 + $0x140] sm:$0xff] %v1532
    %1583 = vst [vmem:[#allocation8 + $0x148] sm:$0xff] %v1533
    %1584 = vst [vmem:[#allocation8 + $0x150] sm:$0xff] %v1534
    %1585 = vst [vmem:[#allocation8 + $0x158] sm:$0xff] %v1535
    %1586 = vst [vmem:[#allocation8 + $0x160] sm:$0xff] %v1536
    %1587 = vst [vmem:[#allocation8 + $0x168] sm:$0xff] %v1537
    %1588 = vst [vmem:[#allocation8 + $0x170] sm:$0xff] %v1538
    %1589 = vst [vmem:[#allocation8 + $0x178] sm:$0xff] %v1539
    %1590 = vst [vmem:[#allocation8 + $0x180] sm:$0xff] %v1540
    %1591 = vst [vmem:[#allocation8 + $0x188] sm:$0xff] %v1541
    // Predicated region
    $region42: #{tpu_custom_call.1} parent=1 // pred_check
      _
    $region43: #{tpu_custom_call.1} parent=1 // pred_check_branch
      %1593 = sbr.rel (0) target = $region45
    $region44: #{tpu_custom_call.1} parent=1 // pred_region
      %s1595 = ssub.s32 6400, 6400
      %1596 = vsyncadd [#allocation4], %s1595
      %s1597 = sshll.u32 [#allocation8], 4
      %s1598 = int_to_ptr.vmem [resolvable:$true] %s1597
      %1603 = dma.vmem_to_hbm [thread:$0]  %s1598, 6400, %s7, [#allocation4], 128, 128, 8
    $region45: #{tpu_custom_call.1} parent=1 // pred_fallthru
      _
    // Predicated region
    $region46: #{tpu_custom_call.1} parent=1 // pred_check
      _
    $region47: #{tpu_custom_call.1} parent=1 // pred_check_branch
      %1605 = sbr.rel (0) target = $region49
    $region48: #{tpu_custom_call.1} parent=1 // pred_region
      %1606 = dma.done [#allocation4], 6400
    $region49: #{tpu_custom_call.1} parent=1 // pred_fallthru
      _
    %1607 = vsyncpa [#allocation3], 1
    %1608 = vsyncpa [#allocation6], 1
    %1609 = vsyncpa [#allocation4], 1

</llo_original>
